<compile_context>
chip_gen: v7x
topology: tpu7x:2x2x1
jax: 0.10.0
libtpu: 0.0.40
codegen_flags: <defaults>
</compile_context>

<pallas_src>
import functools
import math

import jax
import jax.numpy as jnp
from jax.experimental import pallas as pl
from jax.experimental.pallas import tpu as pltpu

ACT_DTYPE = jnp.bfloat16   # activation / MXU-operand dtype (bf16 fast path)
LN_EPS = 1e-12
_PER_LAYER_REFS = 12       # qkv_w, qkv_b, ao_w, ao_b, ln1_g, ln1_b,
                           # ffn_w1, ffn_b1, ffn_w2, ffn_b2, ln2_g, ln2_b


# ----------------------------------------------------------------------------
# In-kernel math helpers (all f32)
# ----------------------------------------------------------------------------

def _erf_f32(x):
    # Abramowitz & Stegun 7.1.26 rational approximation (max abs err ~1.5e-7).
    # Matches PyTorch's exact-erf GELU to f32 precision without relying on an
    # erf primitive lowering inside Mosaic.
    a1, a2, a3, a4, a5 = 0.254829592, -0.284496736, 1.421413741, -1.453152027, 1.061405429
    p = 0.3275911
    ax = jnp.abs(x)
    t = 1.0 / (1.0 + p * ax)
    poly = ((((a5 * t + a4) * t + a3) * t + a2) * t + a1) * t
    y = 1.0 - poly * jnp.exp(-ax * ax)
    return jnp.where(x >= 0.0, y, -y)


def _gelu_exact(x):
    # PyTorch / HF BERT default "gelu" = exact erf form.
    return 0.5 * x * (1.0 + _erf_f32(x * (1.0 / math.sqrt(2.0))))


def _layernorm_f32(x, gamma, beta, eps=LN_EPS):
    mu = jnp.mean(x, axis=-1, keepdims=True)
    var = jnp.mean(jnp.square(x - mu), axis=-1, keepdims=True)
    return (x - mu) * jax.lax.rsqrt(var + eps) * gamma + beta


# ----------------------------------------------------------------------------
# Encoder layer body (VMEM-resident values, traced inside the fused kernel)
# ----------------------------------------------------------------------------

def _encoder_layer_body(x_f32, mask, refs, num_heads, head_dim):
    (qkv_w_ref, qkv_b_ref, ao_w_ref, ao_b_ref, ln1_g_ref, ln1_b_ref,
     ffn_w1_ref, ffn_b1_ref, ffn_w2_ref, ffn_b2_ref,
     ln2_g_ref, ln2_b_ref) = refs

    H = num_heads * head_dim
    scale = 1.0 / math.sqrt(head_dim)
    x_in = x_f32.astype(ACT_DTYPE)                       # (S, H) bf16 MXU operand

    # ---- fused QKV projection: one MXU pass with N=3H (bf16 operands, f32 acc)
    qkv = jnp.dot(x_in, qkv_w_ref[...], preferred_element_type=jnp.float32)
    qkv = qkv + qkv_b_ref[...]                           # (S, 3H) f32

    # ---- per-head scaled-dot-product attention, fully VMEM resident.
    # TODO(synk): for long sequences tile this flash-style (tq/tk ~ 128, online
    #             softmax) instead of materializing the (S, S) scores per head.
    ctx_parts = []
    for h in range(num_heads):
        lo = h * head_dim
        qh = qkv[:, lo:lo + head_dim].astype(ACT_DTYPE)              # (S, Dh)
        kh = qkv[:, H + lo:H + lo + head_dim].astype(ACT_DTYPE)      # (S, Dh)
        vh = qkv[:, 2 * H + lo:2 * H + lo + head_dim].astype(ACT_DTYPE)
        s = jnp.dot(qh, kh.T, preferred_element_type=jnp.float32) * scale
        s = s + mask                                     # broadcast (1, S)
        s = s - jnp.max(s, axis=-1, keepdims=True)
        p = jnp.exp(s)
        # normalize with the EUP reciprocal (separate VLIW slot -> ~free)
        p = p * pl.reciprocal(jnp.sum(p, axis=-1, keepdims=True), approx=True)
        ctx_parts.append(jnp.dot(p.astype(ACT_DTYPE), vh,
                                 preferred_element_type=jnp.float32))
    ctx = jnp.concatenate(ctx_parts, axis=-1)            # (S, H) f32

    # ---- attention output projection with fused residual + LayerNorm epilogue
    attn_out = jnp.dot(ctx.astype(ACT_DTYPE), ao_w_ref[...],
                       preferred_element_type=jnp.float32) + ao_b_ref[...]
    x1 = _layernorm_f32(attn_out + x_f32, ln1_g_ref[...], ln1_b_ref[...])

    # ---- FFN (exact-erf GELU) with fused residual + LayerNorm epilogue
    h1 = jnp.dot(x1.astype(ACT_DTYPE), ffn_w1_ref[...],
                 preferred_element_type=jnp.float32) + ffn_b1_ref[...]
    h1 = _gelu_exact(h1)
    h2 = jnp.dot(h1.astype(ACT_DTYPE), ffn_w2_ref[...],
                 preferred_element_type=jnp.float32) + ffn_b2_ref[...]
    return _layernorm_f32(h2 + x1, ln2_g_ref[...], ln2_b_ref[...])   # (S, H) f32


# ----------------------------------------------------------------------------
# Single fused kernel: embedding LN -> encoder stack -> pooler -> classifier
# ----------------------------------------------------------------------------

def _bert_fwd_kernel(emb_ref, mask_ref, emb_ln_g_ref, emb_ln_b_ref, *rest,
                     num_layers, num_heads, head_dim):
    n_layer_refs = num_layers * _PER_LAYER_REFS
    layer_refs = rest[:n_layer_refs]
    pw_ref, pb_ref, cw_ref, cb_ref = rest[n_layer_refs:n_layer_refs + 4]
    o_ref = rest[-1]

    mask = mask_ref[0].astype(jnp.float32)               # (1, S) additive mask

    # embedding LayerNorm (f32 math); residual stream stays in f32 in VMEM.
    x = _layernorm_f32(emb_ref[0].astype(jnp.float32),
                       emb_ln_g_ref[...], emb_ln_b_ref[...])         # (S, H)

    # encoder stack, fully VMEM resident between layers.
    for l in range(num_layers):
        refs = layer_refs[l * _PER_LAYER_REFS:(l + 1) * _PER_LAYER_REFS]
        x = _encoder_layer_body(x, mask, refs, num_heads, head_dim)

    # pooler: tanh(dense(CLS)); Dropout(pooled) = identity in inference mode.
    cls = x[0:1, :].astype(ACT_DTYPE)                    # (1, H) CLS token
    pooled = jnp.tanh(jnp.dot(cls, pw_ref[...],
                              preferred_element_type=jnp.float32) + pb_ref[...])
    logits = jnp.dot(pooled.astype(ACT_DTYPE), cw_ref[...],
                     preferred_element_type=jnp.float32) + cb_ref[...]
    o_ref[0] = logits.astype(o_ref.dtype)                # (1, T)


def bert_for_sequence_classification(params, token_ids, attention_masks,
                                     token_type_ids, cfg):
    B, S = token_ids.shape
    H, T = cfg["hidden"], cfg["num_tags"]
    num_heads, num_layers = cfg["heads"], cfg["num_layers"]

    # --- embeddings: gather/sum is XLA glue (no clean rectangular-tile form).
    emb = (jnp.take(params["word_emb"], token_ids, axis=0)
           + params["pos_emb"][None, :S, :]
           + jnp.take(params["type_emb"], token_type_ids, axis=0))   # (B,S,H) f32

    # additive attention mask: 0 where attended, -10000 where masked (HF BERT)
    add_mask = ((1.0 - attention_masks.astype(jnp.float32))
                * -10000.0).reshape(B, 1, S)

    # weights / biases / LN params: full blocks with constant index maps so the
    # pipeline fetches them once and reuses them across the batch grid.
    w_args = [params["emb_ln_g"].reshape(1, H), params["emb_ln_b"].reshape(1, H)]
    for lyr in params["layers"]:
        w_args += [
            lyr["qkv_w"], lyr["qkv_b"].reshape(1, -1),
            lyr["ao_w"], lyr["ao_b"].reshape(1, -1),
            lyr["ln1_g"].reshape(1, -1), lyr["ln1_b"].reshape(1, -1),
            lyr["ffn_w1"], lyr["ffn_b1"].reshape(1, -1),
            lyr["ffn_w2"], lyr["ffn_b2"].reshape(1, -1),
            lyr["ln2_g"].reshape(1, -1), lyr["ln2_b"].reshape(1, -1),
        ]
    w_args += [params["pooler_w"], params["pooler_b"].reshape(1, H),
               params["cls_w"], params["cls_b"].reshape(1, T)]
    weight_specs = [pl.BlockSpec(a.shape, lambda b: (0, 0)) for a in w_args]

    kernel = functools.partial(_bert_fwd_kernel, num_layers=num_layers,
                               num_heads=num_heads, head_dim=H // num_heads)

    logits = pl.pallas_call(
        kernel,
        # logits emitted as (B, 1, T) so the block's trailing two dims equal
        # the full array dims (keeps the (8,128) block rule satisfied).
        out_shape=jax.ShapeDtypeStruct((B, 1, T), jnp.float32),
        grid=(B,),
        in_specs=[pl.BlockSpec((1, S, H), lambda b: (b, 0, 0)),
                  pl.BlockSpec((1, 1, S), lambda b: (b, 0, 0))] + weight_specs,
        out_specs=pl.BlockSpec((1, 1, T), lambda b: (b, 0, 0)),
        compiler_params=pltpu.CompilerParams(
            dimension_semantics=("parallel",),
            vmem_limit_bytes=32 * 1024 * 1024),
    )(emb, add_mask, *w_args)
    return logits.reshape(B, T)


# ----------------------------------------------------------------------------
# Model: parameter init
# ----------------------------------------------------------------------------

CFG = dict(
    vocab_size=50,
    type_vocab_size=2,
    max_position=32,
    hidden=32,          # config.bert_dim
    heads=2,
    intermediate=64,
    num_layers=2,
    num_tags=3,
    dropout_prob=0.1,   # inference mode -> identity
)


def init_params(key, cfg):
    H, I = cfg["hidden"], cfg["intermediate"]
    wdt = ACT_DTYPE    # matmul weights stored in bf16 (MXU operand dtype)

    def nrm(k, shape, dtype=jnp.float32):
        return (0.02 * jax.random.normal(k, shape, dtype=jnp.float32)).astype(dtype)

    keys = iter(jax.random.split(key, 64))
    params = {
        "word_emb": nrm(next(keys), (cfg["vocab_size"], H)),
        "pos_emb": nrm(next(keys), (cfg["max_position"], H)),
        "type_emb": nrm(next(keys), (cfg["type_vocab_size"], H)),
        "emb_ln_g": jnp.ones((H,), jnp.float32),
        "emb_ln_b": jnp.zeros((H,), jnp.float32),
        "layers": [],
        "pooler_w": nrm(next(keys), (H, H), wdt),
        "pooler_b": jnp.zeros((H,), jnp.float32),
        "cls_w": nrm(next(keys), (H, cfg["num_tags"]), wdt),
        "cls_b": jnp.zeros((cfg["num_tags"],), jnp.float32),
    }
    for _ in range(cfg["num_layers"]):
        q_w = nrm(next(keys), (H, H), wdt)
        k_w = nrm(next(keys), (H, H), wdt)
        v_w = nrm(next(keys), (H, H), wdt)
        params["layers"].append({
            # fused QKV: one (H, 3H) weight -> one wide MXU pass per layer
            "qkv_w": jnp.concatenate([q_w, k_w, v_w], axis=1),
            "qkv_b": jnp.zeros((3 * H,), jnp.float32),
            "ao_w": nrm(next(keys), (H, H), wdt),
            "ao_b": jnp.zeros((H,), jnp.float32),
            "ln1_g": jnp.ones((H,), jnp.float32),
            "ln1_b": jnp.zeros((H,), jnp.float32),
            "ffn_w1": nrm(next(keys), (H, I), wdt),
            "ffn_b1": jnp.zeros((I,), jnp.float32),
            "ffn_w2": nrm(next(keys), (I, H), wdt),
            "ffn_b2": jnp.zeros((H,), jnp.float32),
            "ln2_g": jnp.ones((H,), jnp.float32),
            "ln2_b": jnp.zeros((H,), jnp.float32),
        })
    return params


if __name__ == "__main__":
    cfg = CFG
    B, S = 2, 8

    key = jax.random.PRNGKey(0)
    kp, k1, k2 = jax.random.split(key, 3)
    params = init_params(kp, cfg)

    token_ids = jax.random.randint(k1, (B, S), 0, cfg["vocab_size"], dtype=jnp.int32)
    token_type_ids = jax.random.randint(k2, (B, S), 0, cfg["type_vocab_size"],
                                        dtype=jnp.int32)
    # mask out the last two tokens of the second example
    attention_masks = jnp.ones((B, S), jnp.int32).at[1, -2:].set(0)

    fwd = jax.jit(functools.partial(bert_for_sequence_classification, cfg=cfg))
    logits = fwd(params, token_ids, attention_masks, token_type_ids)
    jax.block_until_ready(logits)

    assert logits.shape == (B, cfg["num_tags"])
    assert bool(jnp.all(jnp.isfinite(logits)))
    print("KERNEL_OK")
</pallas_src>

<mosaic_0001>
module attributes {stable_mosaic.version = 11 : i64} {
  func.func @_bert_fwd_kernel(%arg0: i32, %arg1: memref<1x8x32xf32, #tpu.memory_space<vmem>>, %arg2: memref<1x1x8xf32, #tpu.memory_space<vmem>>, %arg3: memref<1x32xf32, #tpu.memory_space<vmem>>, %arg4: memref<1x32xf32, #tpu.memory_space<vmem>>, %arg5: memref<32x96xbf16, #tpu.memory_space<vmem>>, %arg6: memref<1x96xf32, #tpu.memory_space<vmem>>, %arg7: memref<32x32xbf16, #tpu.memory_space<vmem>>, %arg8: memref<1x32xf32, #tpu.memory_space<vmem>>, %arg9: memref<1x32xf32, #tpu.memory_space<vmem>>, %arg10: memref<1x32xf32, #tpu.memory_space<vmem>>, %arg11: memref<32x64xbf16, #tpu.memory_space<vmem>>, %arg12: memref<1x64xf32, #tpu.memory_space<vmem>>, %arg13: memref<64x32xbf16, #tpu.memory_space<vmem>>, %arg14: memref<1x32xf32, #tpu.memory_space<vmem>>, %arg15: memref<1x32xf32, #tpu.memory_space<vmem>>, %arg16: memref<1x32xf32, #tpu.memory_space<vmem>>, %arg17: memref<32x96xbf16, #tpu.memory_space<vmem>>, %arg18: memref<1x96xf32, #tpu.memory_space<vmem>>, %arg19: memref<32x32xbf16, #tpu.memory_space<vmem>>, %arg20: memref<1x32xf32, #tpu.memory_space<vmem>>, %arg21: memref<1x32xf32, #tpu.memory_space<vmem>>, %arg22: memref<1x32xf32, #tpu.memory_space<vmem>>, %arg23: memref<32x64xbf16, #tpu.memory_space<vmem>>, %arg24: memref<1x64xf32, #tpu.memory_space<vmem>>, %arg25: memref<64x32xbf16, #tpu.memory_space<vmem>>, %arg26: memref<1x32xf32, #tpu.memory_space<vmem>>, %arg27: memref<1x32xf32, #tpu.memory_space<vmem>>, %arg28: memref<1x32xf32, #tpu.memory_space<vmem>>, %arg29: memref<32x32xbf16, #tpu.memory_space<vmem>>, %arg30: memref<1x32xf32, #tpu.memory_space<vmem>>, %arg31: memref<32x3xbf16, #tpu.memory_space<vmem>>, %arg32: memref<1x3xf32, #tpu.memory_space<vmem>>, %arg33: memref<1x1x3xf32, #tpu.memory_space<vmem>>) attributes {dimension_semantics = [#tpu.dimension_semantics<parallel>], iteration_bounds = array<i64: 2>, scalar_prefetch = 0 : i64, scratch_operands = 0 : i64, tpu.core_type = #tpu.core_type<tc>, window_params = [{transform_indices = @transform_0, window_bounds = array<i64: 1, 8, 32>}, {transform_indices = @transform_1, window_bounds = array<i64: 1, 1, 8>}, {pipeline_mode = #tpu.pipeline_mode<synchronous>, transform_indices = @transform_2, window_bounds = array<i64: 1, 32>}, {pipeline_mode = #tpu.pipeline_mode<synchronous>, transform_indices = @transform_3, window_bounds = array<i64: 1, 32>}, {pipeline_mode = #tpu.pipeline_mode<synchronous>, transform_indices = @transform_4, window_bounds = array<i64: 32, 96>}, {pipeline_mode = #tpu.pipeline_mode<synchronous>, transform_indices = @transform_5, window_bounds = array<i64: 1, 96>}, {pipeline_mode = #tpu.pipeline_mode<synchronous>, transform_indices = @transform_6, window_bounds = array<i64: 32, 32>}, {pipeline_mode = #tpu.pipeline_mode<synchronous>, transform_indices = @transform_7, window_bounds = array<i64: 1, 32>}, {pipeline_mode = #tpu.pipeline_mode<synchronous>, transform_indices = @transform_8, window_bounds = array<i64: 1, 32>}, {pipeline_mode = #tpu.pipeline_mode<synchronous>, transform_indices = @transform_9, window_bounds = array<i64: 1, 32>}, {pipeline_mode = #tpu.pipeline_mode<synchronous>, transform_indices = @transform_10, window_bounds = array<i64: 32, 64>}, {pipeline_mode = #tpu.pipeline_mode<synchronous>, transform_indices = @transform_11, window_bounds = array<i64: 1, 64>}, {pipeline_mode = #tpu.pipeline_mode<synchronous>, transform_indices = @transform_12, window_bounds = array<i64: 64, 32>}, {pipeline_mode = #tpu.pipeline_mode<synchronous>, transform_indices = @transform_13, window_bounds = array<i64: 1, 32>}, {pipeline_mode = #tpu.pipeline_mode<synchronous>, transform_indices = @transform_14, window_bounds = array<i64: 1, 32>}, {pipeline_mode = #tpu.pipeline_mode<synchronous>, transform_indices = @transform_15, window_bounds = array<i64: 1, 32>}, {pipeline_mode = #tpu.pipeline_mode<synchronous>, transform_indices = @transform_16, window_bounds = array<i64: 32, 96>}, {pipeline_mode = #tpu.pipeline_mode<synchronous>, transform_indices = @transform_17, window_bounds = array<i64: 1, 96>}, {pipeline_mode = #tpu.pipeline_mode<synchronous>, transform_indices = @transform_18, window_bounds = array<i64: 32, 32>}, {pipeline_mode = #tpu.pipeline_mode<synchronous>, transform_indices = @transform_19, window_bounds = array<i64: 1, 32>}, {pipeline_mode = #tpu.pipeline_mode<synchronous>, transform_indices = @transform_20, window_bounds = array<i64: 1, 32>}, {pipeline_mode = #tpu.pipeline_mode<synchronous>, transform_indices = @transform_21, window_bounds = array<i64: 1, 32>}, {pipeline_mode = #tpu.pipeline_mode<synchronous>, transform_indices = @transform_22, window_bounds = array<i64: 32, 64>}, {pipeline_mode = #tpu.pipeline_mode<synchronous>, transform_indices = @transform_23, window_bounds = array<i64: 1, 64>}, {pipeline_mode = #tpu.pipeline_mode<synchronous>, transform_indices = @transform_24, window_bounds = array<i64: 64, 32>}, {pipeline_mode = #tpu.pipeline_mode<synchronous>, transform_indices = @transform_25, window_bounds = array<i64: 1, 32>}, {pipeline_mode = #tpu.pipeline_mode<synchronous>, transform_indices = @transform_26, window_bounds = array<i64: 1, 32>}, {pipeline_mode = #tpu.pipeline_mode<synchronous>, transform_indices = @transform_27, window_bounds = array<i64: 1, 32>}, {pipeline_mode = #tpu.pipeline_mode<synchronous>, transform_indices = @transform_28, window_bounds = array<i64: 32, 32>}, {pipeline_mode = #tpu.pipeline_mode<synchronous>, transform_indices = @transform_29, window_bounds = array<i64: 1, 32>}, {pipeline_mode = #tpu.pipeline_mode<synchronous>, transform_indices = @transform_30, window_bounds = array<i64: 32, 3>}, {pipeline_mode = #tpu.pipeline_mode<synchronous>, transform_indices = @transform_31, window_bounds = array<i64: 1, 3>}, {transform_indices = @transform_32, window_bounds = array<i64: 1, 1, 3>}]} {
    %c0 = arith.constant 0 : index
    %c0_0 = arith.constant 0 : index
    %c0_1 = arith.constant 0 : index
    %0 = vector.load %arg2[%c0, %c0_0, %c0_1] : memref<1x1x8xf32, #tpu.memory_space<vmem>>, vector<1x1x8xf32>
    %1 = vector.shape_cast %0 : vector<1x1x8xf32> to vector<1x8xf32>
    %c0_2 = arith.constant 0 : index
    %c0_3 = arith.constant 0 : index
    %c0_4 = arith.constant 0 : index
    %2 = vector.load %arg1[%c0_2, %c0_3, %c0_4] : memref<1x8x32xf32, #tpu.memory_space<vmem>>, vector<1x8x32xf32>
    %3 = vector.shape_cast %2 : vector<1x8x32xf32> to vector<8x32xf32>
    %c0_5 = arith.constant 0 : index
    %c0_6 = arith.constant 0 : index
    %4 = vector.load %arg3[%c0_5, %c0_6] : memref<1x32xf32, #tpu.memory_space<vmem>>, vector<1x32xf32>
    %c0_7 = arith.constant 0 : index
    %c0_8 = arith.constant 0 : index
    %5 = vector.load %arg4[%c0_7, %c0_8] : memref<1x32xf32, #tpu.memory_space<vmem>>, vector<1x32xf32>
    %cst = arith.constant dense<0.000000e+00> : vector<8xf32>
    %6 = vector.multi_reduction <add>, %3, %cst [1] : vector<8x32xf32> to vector<8xf32>
    %7 = vector.shape_cast %6 : vector<8xf32> to vector<8x1xf32>
    %cst_9 = arith.constant 3.200000e+01 : f32
    %8 = vector.broadcast %cst_9 : f32 to vector<8x1xf32>
    %9 = arith.divf %7, %8 : vector<8x1xf32>
    %10 = vector.broadcast %9 : vector<8x1xf32> to vector<8x32xf32>
    %11 = arith.subf %3, %10 : vector<8x32xf32>
    %12 = arith.mulf %11, %11 : vector<8x32xf32>
    %cst_10 = arith.constant dense<0.000000e+00> : vector<8xf32>
    %13 = vector.multi_reduction <add>, %12, %cst_10 [1] : vector<8x32xf32> to vector<8xf32>
    %14 = vector.shape_cast %13 : vector<8xf32> to vector<8x1xf32>
    %cst_11 = arith.constant 3.200000e+01 : f32
    %15 = vector.broadcast %cst_11 : f32 to vector<8x1xf32>
    %16 = arith.divf %14, %15 : vector<8x1xf32>
    %17 = vector.broadcast %9 : vector<8x1xf32> to vector<8x32xf32>
    %18 = arith.subf %3, %17 : vector<8x32xf32>
    %cst_12 = arith.constant 9.99999996E-13 : f32
    %19 = vector.broadcast %cst_12 : f32 to vector<8x1xf32>
    %20 = arith.addf %16, %19 : vector<8x1xf32>
    %21 = math.rsqrt %20 : vector<8x1xf32>
    %22 = vector.broadcast %21 : vector<8x1xf32> to vector<8x32xf32>
    %23 = arith.mulf %18, %22 : vector<8x32xf32>
    %24 = vector.broadcast %4 : vector<1x32xf32> to vector<8x32xf32>
    %25 = arith.mulf %23, %24 : vector<8x32xf32>
    %26 = vector.broadcast %5 : vector<1x32xf32> to vector<8x32xf32>
    %27 = arith.addf %25, %26 : vector<8x32xf32>
    %28 = arith.truncf %27 : vector<8x32xf32> to vector<8x32xbf16>
    %c0_13 = arith.constant 0 : index
    %c0_14 = arith.constant 0 : index
    %29 = vector.load %arg5[%c0_13, %c0_14] : memref<32x96xbf16, #tpu.memory_space<vmem>>, vector<32x96xbf16>
    %cst_15 = arith.constant dense<0.000000e+00> : vector<8x96xf32>
    %30 = tpu.matmul %28, %29, %cst_15 {dimension_numbers = #tpu.dot_dimension_numbers<[1], [0], [0], [1], [0, 0, 1, 1], [], []>} : vector<8x32xbf16>, vector<32x96xbf16>, vector<8x96xf32> -> vector<8x96xf32>
    %c0_16 = arith.constant 0 : index
    %c0_17 = arith.constant 0 : index
    %31 = vector.load %arg6[%c0_16, %c0_17] : memref<1x96xf32, #tpu.memory_space<vmem>>, vector<1x96xf32>
    %32 = vector.broadcast %31 : vector<1x96xf32> to vector<8x96xf32>
    %33 = arith.addf %30, %32 : vector<8x96xf32>
    %34 = vector.extract_strided_slice %33 {offsets = [0, 0], sizes = [8, 16], strides = [1, 1]} : vector<8x96xf32> to vector<8x16xf32>
    %35 = arith.truncf %34 : vector<8x16xf32> to vector<8x16xbf16>
    %36 = vector.extract_strided_slice %33 {offsets = [0, 32], sizes = [8, 16], strides = [1, 1]} : vector<8x96xf32> to vector<8x16xf32>
    %37 = arith.truncf %36 : vector<8x16xf32> to vector<8x16xbf16>
    %38 = vector.extract_strided_slice %33 {offsets = [0, 64], sizes = [8, 16], strides = [1, 1]} : vector<8x96xf32> to vector<8x16xf32>
    %39 = arith.truncf %38 : vector<8x16xf32> to vector<8x16xbf16>
    %40 = tpu.transpose %37, [1, 0] : vector<8x16xbf16> -> vector<16x8xbf16>
    %cst_18 = arith.constant dense<0.000000e+00> : vector<8x8xf32>
    %41 = tpu.matmul %35, %40, %cst_18 {dimension_numbers = #tpu.dot_dimension_numbers<[1], [0], [0], [1], [0, 0, 1, 1], [], []>} : vector<8x16xbf16>, vector<16x8xbf16>, vector<8x8xf32> -> vector<8x8xf32>
    %cst_19 = arith.constant 2.500000e-01 : f32
    %42 = vector.broadcast %cst_19 : f32 to vector<8x8xf32>
    %43 = arith.mulf %41, %42 : vector<8x8xf32>
    %44 = vector.broadcast %1 : vector<1x8xf32> to vector<8x8xf32>
    %45 = arith.addf %43, %44 : vector<8x8xf32>
    %cst_20 = arith.constant dense<0xFF800000> : vector<8xf32>
    %46 = vector.multi_reduction <maximumf>, %45, %cst_20 [1] : vector<8x8xf32> to vector<8xf32>
    %47 = vector.shape_cast %46 : vector<8xf32> to vector<8x1xf32>
    %48 = vector.broadcast %47 : vector<8x1xf32> to vector<8x8xf32>
    %49 = arith.subf %45, %48 : vector<8x8xf32>
    %50 = math.exp %49 : vector<8x8xf32>
    %cst_21 = arith.constant dense<0.000000e+00> : vector<8xf32>
    %51 = vector.multi_reduction <add>, %50, %cst_21 [1] : vector<8x8xf32> to vector<8xf32>
    %52 = vector.shape_cast %51 : vector<8xf32> to vector<8x1xf32>
    %53 = tpu.reciprocal %52 {approx = true} : vector<8x1xf32> -> vector<8x1xf32>
    %54 = vector.broadcast %53 : vector<8x1xf32> to vector<8x8xf32>
    %55 = arith.mulf %50, %54 : vector<8x8xf32>
    %56 = arith.truncf %55 : vector<8x8xf32> to vector<8x8xbf16>
    %cst_22 = arith.constant dense<0.000000e+00> : vector<8x16xf32>
    %57 = tpu.matmul %56, %39, %cst_22 {dimension_numbers = #tpu.dot_dimension_numbers<[1], [0], [0], [1], [0, 0, 1, 1], [], []>} : vector<8x8xbf16>, vector<8x16xbf16>, vector<8x16xf32> -> vector<8x16xf32>
    %58 = vector.extract_strided_slice %33 {offsets = [0, 16], sizes = [8, 16], strides = [1, 1]} : vector<8x96xf32> to vector<8x16xf32>
    %59 = arith.truncf %58 : vector<8x16xf32> to vector<8x16xbf16>
    %60 = vector.extract_strided_slice %33 {offsets = [0, 48], sizes = [8, 16], strides = [1, 1]} : vector<8x96xf32> to vector<8x16xf32>
    %61 = arith.truncf %60 : vector<8x16xf32> to vector<8x16xbf16>
    %62 = vector.extract_strided_slice %33 {offsets = [0, 80], sizes = [8, 16], strides = [1, 1]} : vector<8x96xf32> to vector<8x16xf32>
    %63 = arith.truncf %62 : vector<8x16xf32> to vector<8x16xbf16>
    %64 = tpu.transpose %61, [1, 0] : vector<8x16xbf16> -> vector<16x8xbf16>
    %cst_23 = arith.constant dense<0.000000e+00> : vector<8x8xf32>
    %65 = tpu.matmul %59, %64, %cst_23 {dimension_numbers = #tpu.dot_dimension_numbers<[1], [0], [0], [1], [0, 0, 1, 1], [], []>} : vector<8x16xbf16>, vector<16x8xbf16>, vector<8x8xf32> -> vector<8x8xf32>
    %cst_24 = arith.constant 2.500000e-01 : f32
    %66 = vector.broadcast %cst_24 : f32 to vector<8x8xf32>
    %67 = arith.mulf %65, %66 : vector<8x8xf32>
    %68 = vector.broadcast %1 : vector<1x8xf32> to vector<8x8xf32>
    %69 = arith.addf %67, %68 : vector<8x8xf32>
    %cst_25 = arith.constant dense<0xFF800000> : vector<8xf32>
    %70 = vector.multi_reduction <maximumf>, %69, %cst_25 [1] : vector<8x8xf32> to vector<8xf32>
    %71 = vector.shape_cast %70 : vector<8xf32> to vector<8x1xf32>
    %72 = vector.broadcast %71 : vector<8x1xf32> to vector<8x8xf32>
    %73 = arith.subf %69, %72 : vector<8x8xf32>
    %74 = math.exp %73 : vector<8x8xf32>
    %cst_26 = arith.constant dense<0.000000e+00> : vector<8xf32>
    %75 = vector.multi_reduction <add>, %74, %cst_26 [1] : vector<8x8xf32> to vector<8xf32>
    %76 = vector.shape_cast %75 : vector<8xf32> to vector<8x1xf32>
    %77 = tpu.reciprocal %76 {approx = true} : vector<8x1xf32> -> vector<8x1xf32>
    %78 = vector.broadcast %77 : vector<8x1xf32> to vector<8x8xf32>
    %79 = arith.mulf %74, %78 : vector<8x8xf32>
    %80 = arith.truncf %79 : vector<8x8xf32> to vector<8x8xbf16>
    %cst_27 = arith.constant dense<0.000000e+00> : vector<8x16xf32>
    %81 = tpu.matmul %80, %63, %cst_27 {dimension_numbers = #tpu.dot_dimension_numbers<[1], [0], [0], [1], [0, 0, 1, 1], [], []>} : vector<8x8xbf16>, vector<8x16xbf16>, vector<8x16xf32> -> vector<8x16xf32>
    %82 = tpu.concatenate %57, %81 in 1 : vector<8x16xf32>, vector<8x16xf32> -> vector<8x32xf32>
    %83 = arith.truncf %82 : vector<8x32xf32> to vector<8x32xbf16>
    %c0_28 = arith.constant 0 : index
    %c0_29 = arith.constant 0 : index
    %84 = vector.load %arg7[%c0_28, %c0_29] : memref<32x32xbf16, #tpu.memory_space<vmem>>, vector<32x32xbf16>
    %cst_30 = arith.constant dense<0.000000e+00> : vector<8x32xf32>
    %85 = tpu.matmul %83, %84, %cst_30 {dimension_numbers = #tpu.dot_dimension_numbers<[1], [0], [0], [1], [0, 0, 1, 1], [], []>} : vector<8x32xbf16>, vector<32x32xbf16>, vector<8x32xf32> -> vector<8x32xf32>
    %c0_31 = arith.constant 0 : index
    %c0_32 = arith.constant 0 : index
    %86 = vector.load %arg8[%c0_31, %c0_32] : memref<1x32xf32, #tpu.memory_space<vmem>>, vector<1x32xf32>
    %87 = vector.broadcast %86 : vector<1x32xf32> to vector<8x32xf32>
    %88 = arith.addf %85, %87 : vector<8x32xf32>
    %89 = arith.addf %88, %27 : vector<8x32xf32>
    %c0_33 = arith.constant 0 : index
    %c0_34 = arith.constant 0 : index
    %90 = vector.load %arg9[%c0_33, %c0_34] : memref<1x32xf32, #tpu.memory_space<vmem>>, vector<1x32xf32>
    %c0_35 = arith.constant 0 : index
    %c0_36 = arith.constant 0 : index
    %91 = vector.load %arg10[%c0_35, %c0_36] : memref<1x32xf32, #tpu.memory_space<vmem>>, vector<1x32xf32>
    %cst_37 = arith.constant dense<0.000000e+00> : vector<8xf32>
    %92 = vector.multi_reduction <add>, %89, %cst_37 [1] : vector<8x32xf32> to vector<8xf32>
    %93 = vector.shape_cast %92 : vector<8xf32> to vector<8x1xf32>
    %cst_38 = arith.constant 3.200000e+01 : f32
    %94 = vector.broadcast %cst_38 : f32 to vector<8x1xf32>
    %95 = arith.divf %93, %94 : vector<8x1xf32>
    %96 = vector.broadcast %95 : vector<8x1xf32> to vector<8x32xf32>
    %97 = arith.subf %89, %96 : vector<8x32xf32>
    %98 = arith.mulf %97, %97 : vector<8x32xf32>
    %cst_39 = arith.constant dense<0.000000e+00> : vector<8xf32>
    %99 = vector.multi_reduction <add>, %98, %cst_39 [1] : vector<8x32xf32> to vector<8xf32>
    %100 = vector.shape_cast %99 : vector<8xf32> to vector<8x1xf32>
    %cst_40 = arith.constant 3.200000e+01 : f32
    %101 = vector.broadcast %cst_40 : f32 to vector<8x1xf32>
    %102 = arith.divf %100, %101 : vector<8x1xf32>
    %103 = vector.broadcast %95 : vector<8x1xf32> to vector<8x32xf32>
    %104 = arith.subf %89, %103 : vector<8x32xf32>
    %cst_41 = arith.constant 9.99999996E-13 : f32
    %105 = vector.broadcast %cst_41 : f32 to vector<8x1xf32>
    %106 = arith.addf %102, %105 : vector<8x1xf32>
    %107 = math.rsqrt %106 : vector<8x1xf32>
    %108 = vector.broadcast %107 : vector<8x1xf32> to vector<8x32xf32>
    %109 = arith.mulf %104, %108 : vector<8x32xf32>
    %110 = vector.broadcast %90 : vector<1x32xf32> to vector<8x32xf32>
    %111 = arith.mulf %109, %110 : vector<8x32xf32>
    %112 = vector.broadcast %91 : vector<1x32xf32> to vector<8x32xf32>
    %113 = arith.addf %111, %112 : vector<8x32xf32>
    %114 = arith.truncf %113 : vector<8x32xf32> to vector<8x32xbf16>
    %c0_42 = arith.constant 0 : index
    %c0_43 = arith.constant 0 : index
    %115 = vector.load %arg11[%c0_42, %c0_43] : memref<32x64xbf16, #tpu.memory_space<vmem>>, vector<32x64xbf16>
    %cst_44 = arith.constant dense<0.000000e+00> : vector<8x64xf32>
    %116 = tpu.matmul %114, %115, %cst_44 {dimension_numbers = #tpu.dot_dimension_numbers<[1], [0], [0], [1], [0, 0, 1, 1], [], []>} : vector<8x32xbf16>, vector<32x64xbf16>, vector<8x64xf32> -> vector<8x64xf32>
    %c0_45 = arith.constant 0 : index
    %c0_46 = arith.constant 0 : index
    %117 = vector.load %arg12[%c0_45, %c0_46] : memref<1x64xf32, #tpu.memory_space<vmem>>, vector<1x64xf32>
    %118 = vector.broadcast %117 : vector<1x64xf32> to vector<8x64xf32>
    %119 = arith.addf %116, %118 : vector<8x64xf32>
    %cst_47 = arith.constant 5.000000e-01 : f32
    %120 = vector.broadcast %cst_47 : f32 to vector<8x64xf32>
    %121 = arith.mulf %120, %119 : vector<8x64xf32>
    %cst_48 = arith.constant 0.707106769 : f32
    %122 = vector.broadcast %cst_48 : f32 to vector<8x64xf32>
    %123 = arith.mulf %119, %122 : vector<8x64xf32>
    %124 = math.absf %123 : vector<8x64xf32>
    %cst_49 = arith.constant 0.327591091 : f32
    %125 = vector.broadcast %cst_49 : f32 to vector<8x64xf32>
    %126 = arith.mulf %125, %124 : vector<8x64xf32>
    %cst_50 = arith.constant 1.000000e+00 : f32
    %127 = vector.broadcast %cst_50 : f32 to vector<8x64xf32>
    %128 = arith.addf %127, %126 : vector<8x64xf32>
    %cst_51 = arith.constant 1.000000e+00 : f32
    %129 = vector.broadcast %cst_51 : f32 to vector<8x64xf32>
    %130 = arith.divf %129, %128 : vector<8x64xf32>
    %cst_52 = arith.constant 1.06140542 : f32
    %131 = vector.broadcast %cst_52 : f32 to vector<8x64xf32>
    %132 = arith.mulf %131, %130 : vector<8x64xf32>
    %cst_53 = arith.constant -1.45315206 : f32
    %133 = vector.broadcast %cst_53 : f32 to vector<8x64xf32>
    %134 = arith.addf %132, %133 : vector<8x64xf32>
    %135 = arith.mulf %134, %130 : vector<8x64xf32>
    %cst_54 = arith.constant 1.42141378 : f32
    %136 = vector.broadcast %cst_54 : f32 to vector<8x64xf32>
    %137 = arith.addf %135, %136 : vector<8x64xf32>
    %138 = arith.mulf %137, %130 : vector<8x64xf32>
    %cst_55 = arith.constant -0.284496725 : f32
    %139 = vector.broadcast %cst_55 : f32 to vector<8x64xf32>
    %140 = arith.addf %138, %139 : vector<8x64xf32>
    %141 = arith.mulf %140, %130 : vector<8x64xf32>
    %cst_56 = arith.constant 0.254829586 : f32
    %142 = vector.broadcast %cst_56 : f32 to vector<8x64xf32>
    %143 = arith.addf %141, %142 : vector<8x64xf32>
    %144 = arith.mulf %143, %130 : vector<8x64xf32>
    %cst_57 = arith.constant 0.000000e+00 : f32
    %145 = vector.broadcast %cst_57 : f32 to vector<8x64xf32>
    %146 = arith.subf %145, %124 : vector<8x64xf32>
    %147 = arith.mulf %146, %124 : vector<8x64xf32>
    %148 = math.exp %147 : vector<8x64xf32>
    %149 = arith.mulf %144, %148 : vector<8x64xf32>
    %cst_58 = arith.constant 1.000000e+00 : f32
    %150 = vector.broadcast %cst_58 : f32 to vector<8x64xf32>
    %151 = arith.subf %150, %149 : vector<8x64xf32>
    %cst_59 = arith.constant 0.000000e+00 : f32
    %152 = vector.broadcast %cst_59 : f32 to vector<8x64xf32>
    %153 = arith.cmpf oge, %123, %152 : vector<8x64xf32>
    %cst_60 = arith.constant 0.000000e+00 : f32
    %154 = vector.broadcast %cst_60 : f32 to vector<8x64xf32>
    %155 = arith.subf %154, %151 : vector<8x64xf32>
    %156 = arith.select %153, %151, %155 : vector<8x64xi1>, vector<8x64xf32>
    %cst_61 = arith.constant 1.000000e+00 : f32
    %157 = vector.broadcast %cst_61 : f32 to vector<8x64xf32>
    %158 = arith.addf %157, %156 : vector<8x64xf32>
    %159 = arith.mulf %121, %158 : vector<8x64xf32>
    %160 = arith.truncf %159 : vector<8x64xf32> to vector<8x64xbf16>
    %c0_62 = arith.constant 0 : index
    %c0_63 = arith.constant 0 : index
    %161 = vector.load %arg13[%c0_62, %c0_63] : memref<64x32xbf16, #tpu.memory_space<vmem>>, vector<64x32xbf16>
    %cst_64 = arith.constant dense<0.000000e+00> : vector<8x32xf32>
    %162 = tpu.matmul %160, %161, %cst_64 {dimension_numbers = #tpu.dot_dimension_numbers<[1], [0], [0], [1], [0, 0, 1, 1], [], []>} : vector<8x64xbf16>, vector<64x32xbf16>, vector<8x32xf32> -> vector<8x32xf32>
    %c0_65 = arith.constant 0 : index
    %c0_66 = arith.constant 0 : index
    %163 = vector.load %arg14[%c0_65, %c0_66] : memref<1x32xf32, #tpu.memory_space<vmem>>, vector<1x32xf32>
    %164 = vector.broadcast %163 : vector<1x32xf32> to vector<8x32xf32>
    %165 = arith.addf %162, %164 : vector<8x32xf32>
    %166 = arith.addf %165, %113 : vector<8x32xf32>
    %c0_67 = arith.constant 0 : index
    %c0_68 = arith.constant 0 : index
    %167 = vector.load %arg15[%c0_67, %c0_68] : memref<1x32xf32, #tpu.memory_space<vmem>>, vector<1x32xf32>
    %c0_69 = arith.constant 0 : index
    %c0_70 = arith.constant 0 : index
    %168 = vector.load %arg16[%c0_69, %c0_70] : memref<1x32xf32, #tpu.memory_space<vmem>>, vector<1x32xf32>
    %cst_71 = arith.constant dense<0.000000e+00> : vector<8xf32>
    %169 = vector.multi_reduction <add>, %166, %cst_71 [1] : vector<8x32xf32> to vector<8xf32>
    %170 = vector.shape_cast %169 : vector<8xf32> to vector<8x1xf32>
    %cst_72 = arith.constant 3.200000e+01 : f32
    %171 = vector.broadcast %cst_72 : f32 to vector<8x1xf32>
    %172 = arith.divf %170, %171 : vector<8x1xf32>
    %173 = vector.broadcast %172 : vector<8x1xf32> to vector<8x32xf32>
    %174 = arith.subf %166, %173 : vector<8x32xf32>
    %175 = arith.mulf %174, %174 : vector<8x32xf32>
    %cst_73 = arith.constant dense<0.000000e+00> : vector<8xf32>
    %176 = vector.multi_reduction <add>, %175, %cst_73 [1] : vector<8x32xf32> to vector<8xf32>
    %177 = vector.shape_cast %176 : vector<8xf32> to vector<8x1xf32>
    %cst_74 = arith.constant 3.200000e+01 : f32
    %178 = vector.broadcast %cst_74 : f32 to vector<8x1xf32>
    %179 = arith.divf %177, %178 : vector<8x1xf32>
    %180 = vector.broadcast %172 : vector<8x1xf32> to vector<8x32xf32>
    %181 = arith.subf %166, %180 : vector<8x32xf32>
    %cst_75 = arith.constant 9.99999996E-13 : f32
    %182 = vector.broadcast %cst_75 : f32 to vector<8x1xf32>
    %183 = arith.addf %179, %182 : vector<8x1xf32>
    %184 = math.rsqrt %183 : vector<8x1xf32>
    %185 = vector.broadcast %184 : vector<8x1xf32> to vector<8x32xf32>
    %186 = arith.mulf %181, %185 : vector<8x32xf32>
    %187 = vector.broadcast %167 : vector<1x32xf32> to vector<8x32xf32>
    %188 = arith.mulf %186, %187 : vector<8x32xf32>
    %189 = vector.broadcast %168 : vector<1x32xf32> to vector<8x32xf32>
    %190 = arith.addf %188, %189 : vector<8x32xf32>
    %191 = arith.truncf %190 : vector<8x32xf32> to vector<8x32xbf16>
    %c0_76 = arith.constant 0 : index
    %c0_77 = arith.constant 0 : index
    %192 = vector.load %arg17[%c0_76, %c0_77] : memref<32x96xbf16, #tpu.memory_space<vmem>>, vector<32x96xbf16>
    %cst_78 = arith.constant dense<0.000000e+00> : vector<8x96xf32>
    %193 = tpu.matmul %191, %192, %cst_78 {dimension_numbers = #tpu.dot_dimension_numbers<[1], [0], [0], [1], [0, 0, 1, 1], [], []>} : vector<8x32xbf16>, vector<32x96xbf16>, vector<8x96xf32> -> vector<8x96xf32>
    %c0_79 = arith.constant 0 : index
    %c0_80 = arith.constant 0 : index
    %194 = vector.load %arg18[%c0_79, %c0_80] : memref<1x96xf32, #tpu.memory_space<vmem>>, vector<1x96xf32>
    %195 = vector.broadcast %194 : vector<1x96xf32> to vector<8x96xf32>
    %196 = arith.addf %193, %195 : vector<8x96xf32>
    %197 = vector.extract_strided_slice %196 {offsets = [0, 0], sizes = [8, 16], strides = [1, 1]} : vector<8x96xf32> to vector<8x16xf32>
    %198 = arith.truncf %197 : vector<8x16xf32> to vector<8x16xbf16>
    %199 = vector.extract_strided_slice %196 {offsets = [0, 32], sizes = [8, 16], strides = [1, 1]} : vector<8x96xf32> to vector<8x16xf32>
    %200 = arith.truncf %199 : vector<8x16xf32> to vector<8x16xbf16>
    %201 = vector.extract_strided_slice %196 {offsets = [0, 64], sizes = [8, 16], strides = [1, 1]} : vector<8x96xf32> to vector<8x16xf32>
    %202 = arith.truncf %201 : vector<8x16xf32> to vector<8x16xbf16>
    %203 = tpu.transpose %200, [1, 0] : vector<8x16xbf16> -> vector<16x8xbf16>
    %cst_81 = arith.constant dense<0.000000e+00> : vector<8x8xf32>
    %204 = tpu.matmul %198, %203, %cst_81 {dimension_numbers = #tpu.dot_dimension_numbers<[1], [0], [0], [1], [0, 0, 1, 1], [], []>} : vector<8x16xbf16>, vector<16x8xbf16>, vector<8x8xf32> -> vector<8x8xf32>
    %cst_82 = arith.constant 2.500000e-01 : f32
    %205 = vector.broadcast %cst_82 : f32 to vector<8x8xf32>
    %206 = arith.mulf %204, %205 : vector<8x8xf32>
    %207 = vector.broadcast %1 : vector<1x8xf32> to vector<8x8xf32>
    %208 = arith.addf %206, %207 : vector<8x8xf32>
    %cst_83 = arith.constant dense<0xFF800000> : vector<8xf32>
    %209 = vector.multi_reduction <maximumf>, %208, %cst_83 [1] : vector<8x8xf32> to vector<8xf32>
    %210 = vector.shape_cast %209 : vector<8xf32> to vector<8x1xf32>
    %211 = vector.broadcast %210 : vector<8x1xf32> to vector<8x8xf32>
    %212 = arith.subf %208, %211 : vector<8x8xf32>
    %213 = math.exp %212 : vector<8x8xf32>
    %cst_84 = arith.constant dense<0.000000e+00> : vector<8xf32>
    %214 = vector.multi_reduction <add>, %213, %cst_84 [1] : vector<8x8xf32> to vector<8xf32>
    %215 = vector.shape_cast %214 : vector<8xf32> to vector<8x1xf32>
    %216 = tpu.reciprocal %215 {approx = true} : vector<8x1xf32> -> vector<8x1xf32>
    %217 = vector.broadcast %216 : vector<8x1xf32> to vector<8x8xf32>
    %218 = arith.mulf %213, %217 : vector<8x8xf32>
    %219 = arith.truncf %218 : vector<8x8xf32> to vector<8x8xbf16>
    %cst_85 = arith.constant dense<0.000000e+00> : vector<8x16xf32>
    %220 = tpu.matmul %219, %202, %cst_85 {dimension_numbers = #tpu.dot_dimension_numbers<[1], [0], [0], [1], [0, 0, 1, 1], [], []>} : vector<8x8xbf16>, vector<8x16xbf16>, vector<8x16xf32> -> vector<8x16xf32>
    %221 = vector.extract_strided_slice %196 {offsets = [0, 16], sizes = [8, 16], strides = [1, 1]} : vector<8x96xf32> to vector<8x16xf32>
    %222 = arith.truncf %221 : vector<8x16xf32> to vector<8x16xbf16>
    %223 = vector.extract_strided_slice %196 {offsets = [0, 48], sizes = [8, 16], strides = [1, 1]} : vector<8x96xf32> to vector<8x16xf32>
    %224 = arith.truncf %223 : vector<8x16xf32> to vector<8x16xbf16>
    %225 = vector.extract_strided_slice %196 {offsets = [0, 80], sizes = [8, 16], strides = [1, 1]} : vector<8x96xf32> to vector<8x16xf32>
    %226 = arith.truncf %225 : vector<8x16xf32> to vector<8x16xbf16>
    %227 = tpu.transpose %224, [1, 0] : vector<8x16xbf16> -> vector<16x8xbf16>
    %cst_86 = arith.constant dense<0.000000e+00> : vector<8x8xf32>
    %228 = tpu.matmul %222, %227, %cst_86 {dimension_numbers = #tpu.dot_dimension_numbers<[1], [0], [0], [1], [0, 0, 1, 1], [], []>} : vector<8x16xbf16>, vector<16x8xbf16>, vector<8x8xf32> -> vector<8x8xf32>
    %cst_87 = arith.constant 2.500000e-01 : f32
    %229 = vector.broadcast %cst_87 : f32 to vector<8x8xf32>
    %230 = arith.mulf %228, %229 : vector<8x8xf32>
    %231 = vector.broadcast %1 : vector<1x8xf32> to vector<8x8xf32>
    %232 = arith.addf %230, %231 : vector<8x8xf32>
    %cst_88 = arith.constant dense<0xFF800000> : vector<8xf32>
    %233 = vector.multi_reduction <maximumf>, %232, %cst_88 [1] : vector<8x8xf32> to vector<8xf32>
    %234 = vector.shape_cast %233 : vector<8xf32> to vector<8x1xf32>
    %235 = vector.broadcast %234 : vector<8x1xf32> to vector<8x8xf32>
    %236 = arith.subf %232, %235 : vector<8x8xf32>
    %237 = math.exp %236 : vector<8x8xf32>
    %cst_89 = arith.constant dense<0.000000e+00> : vector<8xf32>
    %238 = vector.multi_reduction <add>, %237, %cst_89 [1] : vector<8x8xf32> to vector<8xf32>
    %239 = vector.shape_cast %238 : vector<8xf32> to vector<8x1xf32>
    %240 = tpu.reciprocal %239 {approx = true} : vector<8x1xf32> -> vector<8x1xf32>
    %241 = vector.broadcast %240 : vector<8x1xf32> to vector<8x8xf32>
    %242 = arith.mulf %237, %241 : vector<8x8xf32>
    %243 = arith.truncf %242 : vector<8x8xf32> to vector<8x8xbf16>
    %cst_90 = arith.constant dense<0.000000e+00> : vector<8x16xf32>
    %244 = tpu.matmul %243, %226, %cst_90 {dimension_numbers = #tpu.dot_dimension_numbers<[1], [0], [0], [1], [0, 0, 1, 1], [], []>} : vector<8x8xbf16>, vector<8x16xbf16>, vector<8x16xf32> -> vector<8x16xf32>
    %245 = tpu.concatenate %220, %244 in 1 : vector<8x16xf32>, vector<8x16xf32> -> vector<8x32xf32>
    %246 = arith.truncf %245 : vector<8x32xf32> to vector<8x32xbf16>
    %c0_91 = arith.constant 0 : index
    %c0_92 = arith.constant 0 : index
    %247 = vector.load %arg19[%c0_91, %c0_92] : memref<32x32xbf16, #tpu.memory_space<vmem>>, vector<32x32xbf16>
    %cst_93 = arith.constant dense<0.000000e+00> : vector<8x32xf32>
    %248 = tpu.matmul %246, %247, %cst_93 {dimension_numbers = #tpu.dot_dimension_numbers<[1], [0], [0], [1], [0, 0, 1, 1], [], []>} : vector<8x32xbf16>, vector<32x32xbf16>, vector<8x32xf32> -> vector<8x32xf32>
    %c0_94 = arith.constant 0 : index
    %c0_95 = arith.constant 0 : index
    %249 = vector.load %arg20[%c0_94, %c0_95] : memref<1x32xf32, #tpu.memory_space<vmem>>, vector<1x32xf32>
    %250 = vector.broadcast %249 : vector<1x32xf32> to vector<8x32xf32>
    %251 = arith.addf %248, %250 : vector<8x32xf32>
    %252 = arith.addf %251, %190 : vector<8x32xf32>
    %c0_96 = arith.constant 0 : index
    %c0_97 = arith.constant 0 : index
    %253 = vector.load %arg21[%c0_96, %c0_97] : memref<1x32xf32, #tpu.memory_space<vmem>>, vector<1x32xf32>
    %c0_98 = arith.constant 0 : index
    %c0_99 = arith.constant 0 : index
    %254 = vector.load %arg22[%c0_98, %c0_99] : memref<1x32xf32, #tpu.memory_space<vmem>>, vector<1x32xf32>
    %cst_100 = arith.constant dense<0.000000e+00> : vector<8xf32>
    %255 = vector.multi_reduction <add>, %252, %cst_100 [1] : vector<8x32xf32> to vector<8xf32>
    %256 = vector.shape_cast %255 : vector<8xf32> to vector<8x1xf32>
    %cst_101 = arith.constant 3.200000e+01 : f32
    %257 = vector.broadcast %cst_101 : f32 to vector<8x1xf32>
    %258 = arith.divf %256, %257 : vector<8x1xf32>
    %259 = vector.broadcast %258 : vector<8x1xf32> to vector<8x32xf32>
    %260 = arith.subf %252, %259 : vector<8x32xf32>
    %261 = arith.mulf %260, %260 : vector<8x32xf32>
    %cst_102 = arith.constant dense<0.000000e+00> : vector<8xf32>
    %262 = vector.multi_reduction <add>, %261, %cst_102 [1] : vector<8x32xf32> to vector<8xf32>
    %263 = vector.shape_cast %262 : vector<8xf32> to vector<8x1xf32>
    %cst_103 = arith.constant 3.200000e+01 : f32
    %264 = vector.broadcast %cst_103 : f32 to vector<8x1xf32>
    %265 = arith.divf %263, %264 : vector<8x1xf32>
    %266 = vector.broadcast %258 : vector<8x1xf32> to vector<8x32xf32>
    %267 = arith.subf %252, %266 : vector<8x32xf32>
    %cst_104 = arith.constant 9.99999996E-13 : f32
    %268 = vector.broadcast %cst_104 : f32 to vector<8x1xf32>
    %269 = arith.addf %265, %268 : vector<8x1xf32>
    %270 = math.rsqrt %269 : vector<8x1xf32>
    %271 = vector.broadcast %270 : vector<8x1xf32> to vector<8x32xf32>
    %272 = arith.mulf %267, %271 : vector<8x32xf32>
    %273 = vector.broadcast %253 : vector<1x32xf32> to vector<8x32xf32>
    %274 = arith.mulf %272, %273 : vector<8x32xf32>
    %275 = vector.broadcast %254 : vector<1x32xf32> to vector<8x32xf32>
    %276 = arith.addf %274, %275 : vector<8x32xf32>
    %277 = arith.truncf %276 : vector<8x32xf32> to vector<8x32xbf16>
    %c0_105 = arith.constant 0 : index
    %c0_106 = arith.constant 0 : index
    %278 = vector.load %arg23[%c0_105, %c0_106] : memref<32x64xbf16, #tpu.memory_space<vmem>>, vector<32x64xbf16>
    %cst_107 = arith.constant dense<0.000000e+00> : vector<8x64xf32>
    %279 = tpu.matmul %277, %278, %cst_107 {dimension_numbers = #tpu.dot_dimension_numbers<[1], [0], [0], [1], [0, 0, 1, 1], [], []>} : vector<8x32xbf16>, vector<32x64xbf16>, vector<8x64xf32> -> vector<8x64xf32>
    %c0_108 = arith.constant 0 : index
    %c0_109 = arith.constant 0 : index
    %280 = vector.load %arg24[%c0_108, %c0_109] : memref<1x64xf32, #tpu.memory_space<vmem>>, vector<1x64xf32>
    %281 = vector.broadcast %280 : vector<1x64xf32> to vector<8x64xf32>
    %282 = arith.addf %279, %281 : vector<8x64xf32>
    %cst_110 = arith.constant 5.000000e-01 : f32
    %283 = vector.broadcast %cst_110 : f32 to vector<8x64xf32>
    %284 = arith.mulf %283, %282 : vector<8x64xf32>
    %cst_111 = arith.constant 0.707106769 : f32
    %285 = vector.broadcast %cst_111 : f32 to vector<8x64xf32>
    %286 = arith.mulf %282, %285 : vector<8x64xf32>
    %287 = math.absf %286 : vector<8x64xf32>
    %cst_112 = arith.constant 0.327591091 : f32
    %288 = vector.broadcast %cst_112 : f32 to vector<8x64xf32>
    %289 = arith.mulf %288, %287 : vector<8x64xf32>
    %cst_113 = arith.constant 1.000000e+00 : f32
    %290 = vector.broadcast %cst_113 : f32 to vector<8x64xf32>
    %291 = arith.addf %290, %289 : vector<8x64xf32>
    %cst_114 = arith.constant 1.000000e+00 : f32
    %292 = vector.broadcast %cst_114 : f32 to vector<8x64xf32>
    %293 = arith.divf %292, %291 : vector<8x64xf32>
    %cst_115 = arith.constant 1.06140542 : f32
    %294 = vector.broadcast %cst_115 : f32 to vector<8x64xf32>
    %295 = arith.mulf %294, %293 : vector<8x64xf32>
    %cst_116 = arith.constant -1.45315206 : f32
    %296 = vector.broadcast %cst_116 : f32 to vector<8x64xf32>
    %297 = arith.addf %295, %296 : vector<8x64xf32>
    %298 = arith.mulf %297, %293 : vector<8x64xf32>
    %cst_117 = arith.constant 1.42141378 : f32
    %299 = vector.broadcast %cst_117 : f32 to vector<8x64xf32>
    %300 = arith.addf %298, %299 : vector<8x64xf32>
    %301 = arith.mulf %300, %293 : vector<8x64xf32>
    %cst_118 = arith.constant -0.284496725 : f32
    %302 = vector.broadcast %cst_118 : f32 to vector<8x64xf32>
    %303 = arith.addf %301, %302 : vector<8x64xf32>
    %304 = arith.mulf %303, %293 : vector<8x64xf32>
    %cst_119 = arith.constant 0.254829586 : f32
    %305 = vector.broadcast %cst_119 : f32 to vector<8x64xf32>
    %306 = arith.addf %304, %305 : vector<8x64xf32>
    %307 = arith.mulf %306, %293 : vector<8x64xf32>
    %cst_120 = arith.constant 0.000000e+00 : f32
    %308 = vector.broadcast %cst_120 : f32 to vector<8x64xf32>
    %309 = arith.subf %308, %287 : vector<8x64xf32>
    %310 = arith.mulf %309, %287 : vector<8x64xf32>
    %311 = math.exp %310 : vector<8x64xf32>
    %312 = arith.mulf %307, %311 : vector<8x64xf32>
    %cst_121 = arith.constant 1.000000e+00 : f32
    %313 = vector.broadcast %cst_121 : f32 to vector<8x64xf32>
    %314 = arith.subf %313, %312 : vector<8x64xf32>
    %cst_122 = arith.constant 0.000000e+00 : f32
    %315 = vector.broadcast %cst_122 : f32 to vector<8x64xf32>
    %316 = arith.cmpf oge, %286, %315 : vector<8x64xf32>
    %cst_123 = arith.constant 0.000000e+00 : f32
    %317 = vector.broadcast %cst_123 : f32 to vector<8x64xf32>
    %318 = arith.subf %317, %314 : vector<8x64xf32>
    %319 = arith.select %316, %314, %318 : vector<8x64xi1>, vector<8x64xf32>
    %cst_124 = arith.constant 1.000000e+00 : f32
    %320 = vector.broadcast %cst_124 : f32 to vector<8x64xf32>
    %321 = arith.addf %320, %319 : vector<8x64xf32>
    %322 = arith.mulf %284, %321 : vector<8x64xf32>
    %323 = arith.truncf %322 : vector<8x64xf32> to vector<8x64xbf16>
    %c0_125 = arith.constant 0 : index
    %c0_126 = arith.constant 0 : index
    %324 = vector.load %arg25[%c0_125, %c0_126] : memref<64x32xbf16, #tpu.memory_space<vmem>>, vector<64x32xbf16>
    %cst_127 = arith.constant dense<0.000000e+00> : vector<8x32xf32>
    %325 = tpu.matmul %323, %324, %cst_127 {dimension_numbers = #tpu.dot_dimension_numbers<[1], [0], [0], [1], [0, 0, 1, 1], [], []>} : vector<8x64xbf16>, vector<64x32xbf16>, vector<8x32xf32> -> vector<8x32xf32>
    %c0_128 = arith.constant 0 : index
    %c0_129 = arith.constant 0 : index
    %326 = vector.load %arg26[%c0_128, %c0_129] : memref<1x32xf32, #tpu.memory_space<vmem>>, vector<1x32xf32>
    %327 = vector.broadcast %326 : vector<1x32xf32> to vector<8x32xf32>
    %328 = arith.addf %325, %327 : vector<8x32xf32>
    %329 = arith.addf %328, %276 : vector<8x32xf32>
    %c0_130 = arith.constant 0 : index
    %c0_131 = arith.constant 0 : index
    %330 = vector.load %arg27[%c0_130, %c0_131] : memref<1x32xf32, #tpu.memory_space<vmem>>, vector<1x32xf32>
    %c0_132 = arith.constant 0 : index
    %c0_133 = arith.constant 0 : index
    %331 = vector.load %arg28[%c0_132, %c0_133] : memref<1x32xf32, #tpu.memory_space<vmem>>, vector<1x32xf32>
    %cst_134 = arith.constant dense<0.000000e+00> : vector<8xf32>
    %332 = vector.multi_reduction <add>, %329, %cst_134 [1] : vector<8x32xf32> to vector<8xf32>
    %333 = vector.shape_cast %332 : vector<8xf32> to vector<8x1xf32>
    %cst_135 = arith.constant 3.200000e+01 : f32
    %334 = vector.broadcast %cst_135 : f32 to vector<8x1xf32>
    %335 = arith.divf %333, %334 : vector<8x1xf32>
    %336 = vector.broadcast %335 : vector<8x1xf32> to vector<8x32xf32>
    %337 = arith.subf %329, %336 : vector<8x32xf32>
    %338 = arith.mulf %337, %337 : vector<8x32xf32>
    %cst_136 = arith.constant dense<0.000000e+00> : vector<8xf32>
    %339 = vector.multi_reduction <add>, %338, %cst_136 [1] : vector<8x32xf32> to vector<8xf32>
    %340 = vector.shape_cast %339 : vector<8xf32> to vector<8x1xf32>
    %cst_137 = arith.constant 3.200000e+01 : f32
    %341 = vector.broadcast %cst_137 : f32 to vector<8x1xf32>
    %342 = arith.divf %340, %341 : vector<8x1xf32>
    %343 = vector.broadcast %335 : vector<8x1xf32> to vector<8x32xf32>
    %344 = arith.subf %329, %343 : vector<8x32xf32>
    %cst_138 = arith.constant 9.99999996E-13 : f32
    %345 = vector.broadcast %cst_138 : f32 to vector<8x1xf32>
    %346 = arith.addf %342, %345 : vector<8x1xf32>
    %347 = math.rsqrt %346 : vector<8x1xf32>
    %348 = vector.broadcast %347 : vector<8x1xf32> to vector<8x32xf32>
    %349 = arith.mulf %344, %348 : vector<8x32xf32>
    %350 = vector.broadcast %330 : vector<1x32xf32> to vector<8x32xf32>
    %351 = arith.mulf %349, %350 : vector<8x32xf32>
    %352 = vector.broadcast %331 : vector<1x32xf32> to vector<8x32xf32>
    %353 = arith.addf %351, %352 : vector<8x32xf32>
    %354 = vector.extract_strided_slice %353 {offsets = [0, 0], sizes = [1, 32], strides = [1, 1]} : vector<8x32xf32> to vector<1x32xf32>
    %355 = arith.truncf %354 : vector<1x32xf32> to vector<1x32xbf16>
    %c0_139 = arith.constant 0 : index
    %c0_140 = arith.constant 0 : index
    %356 = vector.load %arg29[%c0_139, %c0_140] : memref<32x32xbf16, #tpu.memory_space<vmem>>, vector<32x32xbf16>
    %cst_141 = arith.constant dense<0.000000e+00> : vector<1x32xf32>
    %357 = tpu.matmul %355, %356, %cst_141 {dimension_numbers = #tpu.dot_dimension_numbers<[1], [0], [0], [1], [0, 0, 1, 1], [], []>} : vector<1x32xbf16>, vector<32x32xbf16>, vector<1x32xf32> -> vector<1x32xf32>
    %c0_142 = arith.constant 0 : index
    %c0_143 = arith.constant 0 : index
    %358 = vector.load %arg30[%c0_142, %c0_143] : memref<1x32xf32, #tpu.memory_space<vmem>>, vector<1x32xf32>
    %359 = arith.addf %357, %358 : vector<1x32xf32>
    %360 = math.tanh %359 : vector<1x32xf32>
    %361 = arith.truncf %360 : vector<1x32xf32> to vector<1x32xbf16>
    %c0_144 = arith.constant 0 : index
    %c0_145 = arith.constant 0 : index
    %362 = vector.load %arg31[%c0_144, %c0_145] : memref<32x3xbf16, #tpu.memory_space<vmem>>, vector<32x3xbf16>
    %cst_146 = arith.constant dense<0.000000e+00> : vector<1x3xf32>
    %363 = tpu.matmul %361, %362, %cst_146 {dimension_numbers = #tpu.dot_dimension_numbers<[1], [0], [0], [1], [0, 0, 1, 1], [], []>} : vector<1x32xbf16>, vector<32x3xbf16>, vector<1x3xf32> -> vector<1x3xf32>
    %c0_147 = arith.constant 0 : index
    %c0_148 = arith.constant 0 : index
    %364 = vector.load %arg32[%c0_147, %c0_148] : memref<1x3xf32, #tpu.memory_space<vmem>>, vector<1x3xf32>
    %365 = arith.addf %363, %364 : vector<1x3xf32>
    %c0_149 = arith.constant 0 : index
    %c0_150 = arith.constant 0 : index
    %c0_151 = arith.constant 0 : index
    %366 = vector.load %arg33[%c0_149, %c0_150, %c0_151] : memref<1x1x3xf32, #tpu.memory_space<vmem>>, vector<1x1x3xf32>
    %367 = vector.shape_cast %366 : vector<1x1x3xf32> to vector<1x3xf32>
    %368 = vector.shape_cast %365 : vector<1x3xf32> to vector<1x1x3xf32>
    tpu.vector_store %arg33[%c0_149, %c0_150, %c0_151], %368 {strides = array<i32>} : memref<1x1x3xf32, #tpu.memory_space<vmem>>, vector<1x1x3xf32>,
    return
  }
  func.func @transform_0(%arg0: i32) -> (i32, i32, i32) {
    %c0_i32 = arith.constant 0 : i32
    %c0_i32_0 = arith.constant 0 : i32
    %c0_i32_1 = arith.constant 0 : i32
    return %arg0, %c0_i32, %c0_i32_0 : i32, i32, i32
  }
  func.func @transform_1(%arg0: i32) -> (i32, i32, i32) {
    %c0_i32 = arith.constant 0 : i32
    %c0_i32_0 = arith.constant 0 : i32
    %c0_i32_1 = arith.constant 0 : i32
    return %arg0, %c0_i32, %c0_i32_0 : i32, i32, i32
  }
  func.func @transform_2(%arg0: i32) -> (i32, i32) {
    %c0_i32 = arith.constant 0 : i32
    %c0_i32_0 = arith.constant 0 : i32
    %c0_i32_1 = arith.constant 0 : i32
    return %c0_i32, %c0_i32_0 : i32, i32
  }
  func.func @transform_3(%arg0: i32) -> (i32, i32) {
    %c0_i32 = arith.constant 0 : i32
    %c0_i32_0 = arith.constant 0 : i32
    %c0_i32_1 = arith.constant 0 : i32
    return %c0_i32, %c0_i32_0 : i32, i32
  }
  func.func @transform_4(%arg0: i32) -> (i32, i32) {
    %c0_i32 = arith.constant 0 : i32
    %c0_i32_0 = arith.constant 0 : i32
    %c0_i32_1 = arith.constant 0 : i32
    return %c0_i32, %c0_i32_0 : i32, i32
  }
  func.func @transform_5(%arg0: i32) -> (i32, i32) {
    %c0_i32 = arith.constant 0 : i32
    %c0_i32_0 = arith.constant 0 : i32
    %c0_i32_1 = arith.constant 0 : i32
    return %c0_i32, %c0_i32_0 : i32, i32
  }
  func.func @transform_6(%arg0: i32) -> (i32, i32) {
    %c0_i32 = arith.constant 0 : i32
    %c0_i32_0 = arith.constant 0 : i32
    %c0_i32_1 = arith.constant 0 : i32
    return %c0_i32, %c0_i32_0 : i32, i32
  }
  func.func @transform_7(%arg0: i32) -> (i32, i32) {
    %c0_i32 = arith.constant 0 : i32
    %c0_i32_0 = arith.constant 0 : i32
    %c0_i32_1 = arith.constant 0 : i32
    return %c0_i32, %c0_i32_0 : i32, i32
  }
  func.func @transform_8(%arg0: i32) -> (i32, i32) {
    %c0_i32 = arith.constant 0 : i32
    %c0_i32_0 = arith.constant 0 : i32
    %c0_i32_1 = arith.constant 0 : i32
    return %c0_i32, %c0_i32_0 : i32, i32
  }
  func.func @transform_9(%arg0: i32) -> (i32, i32) {
    %c0_i32 = arith.constant 0 : i32
    %c0_i32_0 = arith.constant 0 : i32
    %c0_i32_1 = arith.constant 0 : i32
    return %c0_i32, %c0_i32_0 : i32, i32
  }
  func.func @transform_10(%arg0: i32) -> (i32, i32) {
    %c0_i32 = arith.constant 0 : i32
    %c0_i32_0 = arith.constant 0 : i32
    %c0_i32_1 = arith.constant 0 : i32
    return %c0_i32, %c0_i32_0 : i32, i32
  }
  func.func @transform_11(%arg0: i32) -> (i32, i32) {
    %c0_i32 = arith.constant 0 : i32
    %c0_i32_0 = arith.constant 0 : i32
    %c0_i32_1 = arith.constant 0 : i32
    return %c0_i32, %c0_i32_0 : i32, i32
  }
  func.func @transform_12(%arg0: i32) -> (i32, i32) {
    %c0_i32 = arith.constant 0 : i32
    %c0_i32_0 = arith.constant 0 : i32
    %c0_i32_1 = arith.constant 0 : i32
    return %c0_i32, %c0_i32_0 : i32, i32
  }
  func.func @transform_13(%arg0: i32) -> (i32, i32) {
    %c0_i32 = arith.constant 0 : i32
    %c0_i32_0 = arith.constant 0 : i32
    %c0_i32_1 = arith.constant 0 : i32
    return %c0_i32, %c0_i32_0 : i32, i32
  }
  func.func @transform_14(%arg0: i32) -> (i32, i32) {
    %c0_i32 = arith.constant 0 : i32
    %c0_i32_0 = arith.constant 0 : i32
    %c0_i32_1 = arith.constant 0 : i32
    return %c0_i32, %c0_i32_0 : i32, i32
  }
  func.func @transform_15(%arg0: i32) -> (i32, i32) {
    %c0_i32 = arith.constant 0 : i32
    %c0_i32_0 = arith.constant 0 : i32
    %c0_i32_1 = arith.constant 0 : i32
    return %c0_i32, %c0_i32_0 : i32, i32
  }
  func.func @transform_16(%arg0: i32) -> (i32, i32) {
    %c0_i32 = arith.constant 0 : i32
    %c0_i32_0 = arith.constant 0 : i32
    %c0_i32_1 = arith.constant 0 : i32
    return %c0_i32, %c0_i32_0 : i32, i32
  }
  func.func @transform_17(%arg0: i32) -> (i32, i32) {
    %c0_i32 = arith.constant 0 : i32
    %c0_i32_0 = arith.constant 0 : i32
    %c0_i32_1 = arith.constant 0 : i32
    return %c0_i32, %c0_i32_0 : i32, i32
  }
  func.func @transform_18(%arg0: i32) -> (i32, i32) {
    %c0_i32 = arith.constant 0 : i32
    %c0_i32_0 = arith.constant 0 : i32
    %c0_i32_1 = arith.constant 0 : i32
    return %c0_i32, %c0_i32_0 : i32, i32
  }
  func.func @transform_19(%arg0: i32) -> (i32, i32) {
    %c0_i32 = arith.constant 0 : i32
    %c0_i32_0 = arith.constant 0 : i32
    %c0_i32_1 = arith.constant 0 : i32
    return %c0_i32, %c0_i32_0 : i32, i32
  }
  func.func @transform_20(%arg0: i32) -> (i32, i32) {
    %c0_i32 = arith.constant 0 : i32
    %c0_i32_0 = arith.constant 0 : i32
    %c0_i32_1 = arith.constant 0 : i32
    return %c0_i32, %c0_i32_0 : i32, i32
  }
  func.func @transform_21(%arg0: i32) -> (i32, i32) {
    %c0_i32 = arith.constant 0 : i32
    %c0_i32_0 = arith.constant 0 : i32
    %c0_i32_1 = arith.constant 0 : i32
    return %c0_i32, %c0_i32_0 : i32, i32
  }
  func.func @transform_22(%arg0: i32) -> (i32, i32) {
    %c0_i32 = arith.constant 0 : i32
    %c0_i32_0 = arith.constant 0 : i32
    %c0_i32_1 = arith.constant 0 : i32
    return %c0_i32, %c0_i32_0 : i32, i32
  }
  func.func @transform_23(%arg0: i32) -> (i32, i32) {
    %c0_i32 = arith.constant 0 : i32
    %c0_i32_0 = arith.constant 0 : i32
    %c0_i32_1 = arith.constant 0 : i32
    return %c0_i32, %c0_i32_0 : i32, i32
  }
  func.func @transform_24(%arg0: i32) -> (i32, i32) {
    %c0_i32 = arith.constant 0 : i32
    %c0_i32_0 = arith.constant 0 : i32
    %c0_i32_1 = arith.constant 0 : i32
    return %c0_i32, %c0_i32_0 : i32, i32
  }
  func.func @transform_25(%arg0: i32) -> (i32, i32) {
    %c0_i32 = arith.constant 0 : i32
    %c0_i32_0 = arith.constant 0 : i32
    %c0_i32_1 = arith.constant 0 : i32
    return %c0_i32, %c0_i32_0 : i32, i32
  }
  func.func @transform_26(%arg0: i32) -> (i32, i32) {
    %c0_i32 = arith.constant 0 : i32
    %c0_i32_0 = arith.constant 0 : i32
    %c0_i32_1 = arith.constant 0 : i32
    return %c0_i32, %c0_i32_0 : i32, i32
  }
  func.func @transform_27(%arg0: i32) -> (i32, i32) {
    %c0_i32 = arith.constant 0 : i32
    %c0_i32_0 = arith.constant 0 : i32
    %c0_i32_1 = arith.constant 0 : i32
    return %c0_i32, %c0_i32_0 : i32, i32
  }
  func.func @transform_28(%arg0: i32) -> (i32, i32) {
    %c0_i32 = arith.constant 0 : i32
    %c0_i32_0 = arith.constant 0 : i32
    %c0_i32_1 = arith.constant 0 : i32
    return %c0_i32, %c0_i32_0 : i32, i32
  }
  func.func @transform_29(%arg0: i32) -> (i32, i32) {
    %c0_i32 = arith.constant 0 : i32
    %c0_i32_0 = arith.constant 0 : i32
    %c0_i32_1 = arith.constant 0 : i32
    return %c0_i32, %c0_i32_0 : i32, i32
  }
  func.func @transform_30(%arg0: i32) -> (i32, i32) {
    %c0_i32 = arith.constant 0 : i32
    %c0_i32_0 = arith.constant 0 : i32
    %c0_i32_1 = arith.constant 0 : i32
    return %c0_i32, %c0_i32_0 : i32, i32
  }
  func.func @transform_31(%arg0: i32) -> (i32, i32) {
    %c0_i32 = arith.constant 0 : i32
    %c0_i32_0 = arith.constant 0 : i32
    %c0_i32_1 = arith.constant 0 : i32
    return %c0_i32, %c0_i32_0 : i32, i32
  }
  func.func @transform_32(%arg0: i32) -> (i32, i32, i32) {
    %c0_i32 = arith.constant 0 : i32
    %c0_i32_0 = arith.constant 0 : i32
    %c0_i32_1 = arith.constant 0 : i32
    return %arg0, %c0_i32, %c0_i32_0 : i32, i32, i32
  }
}

</mosaic_0001>

<llo_original>
// kernel: bert_for_sequence_classification.1
$region0: #{bert_for_sequence_classification.1}
  #allocation0 [shape = 'u32[]', space=smem, size = 0x4, offset = 0x4, fixed_abs, tag = 'smem constant byte address 0x4 - core index']
  #allocation1 [shape = 'u32[144,128]{1,0:T(1,128)}', space=vmem, size = 0x12000, scoped, tag = 'internal scratch']
  %s0 = inlined_call_operand.smem [shape: u32[33], index: -1, kind: input, shape index: {}]
  %s1 = sld [smem:[%s0]]
  %s2 = scalar_lea.smem %s0, 1
  %s3 = sld [smem:[%s2]]
  %s4 = scalar_lea.smem %s0, 2
  %s5 = sld [smem:[%s4]]
  %s6 = scalar_lea.smem %s0, 3
  %s7 = sld [smem:[%s6]]
  %s8 = scalar_lea.smem %s0, 4
  %s9 = sld [smem:[%s8]]
  %s10 = scalar_lea.smem %s0, 5
  %s11 = sld [smem:[%s10]]
  %s12 = scalar_lea.smem %s0, 6
  %s13 = sld [smem:[%s12]]
  %s14 = scalar_lea.smem %s0, 7
  %s15 = sld [smem:[%s14]]
  %s16 = scalar_lea.smem %s0, 8
  %s17 = sld [smem:[%s16]]
  %s18 = scalar_lea.smem %s0, 9
  %s19 = sld [smem:[%s18]]
  %s20 = scalar_lea.smem %s0, 10
  %s21 = sld [smem:[%s20]]
  %s22 = scalar_lea.smem %s0, 11
  %s23 = sld [smem:[%s22]]
  %s24 = scalar_lea.smem %s0, 12
  %s25 = sld [smem:[%s24]]
  %s26 = scalar_lea.smem %s0, 13
  %s27 = sld [smem:[%s26]]
  %s28 = scalar_lea.smem %s0, 14
  %s29 = sld [smem:[%s28]]
  %s30 = scalar_lea.smem %s0, 15
  %s31 = sld [smem:[%s30]]
  %s32 = scalar_lea.smem %s0, 16
  %s33 = sld [smem:[%s32]]
  %s34 = scalar_lea.smem %s0, 17
  %s35 = sld [smem:[%s34]]
  %s36 = scalar_lea.smem %s0, 18
  %s37 = sld [smem:[%s36]]
  %s38 = scalar_lea.smem %s0, 19
  %s39 = sld [smem:[%s38]]
  %s40 = scalar_lea.smem %s0, 20
  %s41 = sld [smem:[%s40]]
  %s42 = scalar_lea.smem %s0, 21
  %s43 = sld [smem:[%s42]]
  %s44 = scalar_lea.smem %s0, 22
  %s45 = sld [smem:[%s44]]
  %s46 = scalar_lea.smem %s0, 23
  %s47 = sld [smem:[%s46]]
  %s48 = scalar_lea.smem %s0, 24
  %s49 = sld [smem:[%s48]]
  %s50 = scalar_lea.smem %s0, 25
  %s51 = sld [smem:[%s50]]
  %s52 = scalar_lea.smem %s0, 26
  %s53 = sld [smem:[%s52]]
  %s54 = scalar_lea.smem %s0, 27
  %s55 = sld [smem:[%s54]]
  %s56 = scalar_lea.smem %s0, 28
  %s57 = sld [smem:[%s56]]
  %s58 = scalar_lea.smem %s0, 29
  %s59 = sld [smem:[%s58]]
  %s60 = scalar_lea.smem %s0, 30
  %s61 = sld [smem:[%s60]]
  %s62 = scalar_lea.smem %s0, 31
  %s63 = sld [smem:[%s62]]
  %s64 = scalar_lea.smem %s0, 32
  %s65 = sld [smem:[%s64]]
  %s66 = sld [smem:[#allocation0]]
  $region161: #{bert_for_sequence_classification.1} parent=0
    _
  %s68 = ssub.s32 1, %s66
  %s69 = scalar_select 0, %s68, %s66
  $region1: #{bert_for_sequence_classification.1} parent=0
    #allocation2 [shape = 'u8[1024]{0}', space=vmem, size = 0x400, scoped, tag = 'output window, operand 0']
    #allocation3 [shape = 's32[2]{0}', space=sflag, size = 0x8, scoped, tag = 'scoped memory for bert_for_sequence_classification.1']
    %70 = vsyncpa [#allocation3], 0
    %s71 = scalar_lea.sflag [#allocation3], 1
    %72 = vsyncpa %s71, 0
    loop: start=0, step=1, limit=4
    $region2: #{bert_for_sequence_classification.1} parent=1 // loop_pre_header
      _
    $region3: #{bert_for_sequence_classification.1} parent=1 // loop_header
      %s74 = sphi 0, %s78
      %p75 = scmp.ge.s32.totalorder %s74, 4
      %s84 = sphi 0, %s86
      %s87 = sphi 0, %s84
      %s88 = sphi 0, %s87
      %s104 = sphi 0, %s88
      %s110 = sphi 0, %s112
      %s113 = sphi 0, %s110
      %s114 = sphi 0, %s113
      %s130 = sphi 0, %s114
      %s134 = sphi 0, %s134
      %s136 = sphi 0, %s134
      %s137 = sphi 0, %s136
      %s151 = sphi 0, %s137
      %s155 = sphi 0, %s155
      %s157 = sphi 0, %s155
      %s158 = sphi 0, %s157
      %s172 = sphi 0, %s158
      %s176 = sphi 0, %s176
      %s178 = sphi 0, %s176
      %s179 = sphi 0, %s178
      %s193 = sphi 0, %s179
      %s197 = sphi 0, %s197
      %s199 = sphi 0, %s197
      %s200 = sphi 0, %s199
      %s214 = sphi 0, %s200
      %s218 = sphi 0, %s218
      %s220 = sphi 0, %s218
      %s221 = sphi 0, %s220
      %s235 = sphi 0, %s221
      %s239 = sphi 0, %s239
      %s241 = sphi 0, %s239
      %s242 = sphi 0, %s241
      %s256 = sphi 0, %s242
      %s260 = sphi 0, %s260
      %s262 = sphi 0, %s260
      %s263 = sphi 0, %s262
      %s277 = sphi 0, %s263
      %s281 = sphi 0, %s281
      %s283 = sphi 0, %s281
      %s284 = sphi 0, %s283
      %s298 = sphi 0, %s284
      %s302 = sphi 0, %s302
      %s304 = sphi 0, %s302
      %s305 = sphi 0, %s304
      %s319 = sphi 0, %s305
      %s323 = sphi 0, %s323
      %s325 = sphi 0, %s323
      %s326 = sphi 0, %s325
      %s340 = sphi 0, %s326
      %s344 = sphi 0, %s344
      %s346 = sphi 0, %s344
      %s347 = sphi 0, %s346
      %s361 = sphi 0, %s347
      %s365 = sphi 0, %s365
      %s367 = sphi 0, %s365
      %s368 = sphi 0, %s367
      %s382 = sphi 0, %s368
      %s386 = sphi 0, %s386
      %s388 = sphi 0, %s386
      %s389 = sphi 0, %s388
      %s403 = sphi 0, %s389
      %s407 = sphi 0, %s407
      %s409 = sphi 0, %s407
      %s410 = sphi 0, %s409
      %s424 = sphi 0, %s410
      %s428 = sphi 0, %s428
      %s430 = sphi 0, %s428
      %s431 = sphi 0, %s430
      %s445 = sphi 0, %s431
      %s449 = sphi 0, %s449
      %s451 = sphi 0, %s449
      %s452 = sphi 0, %s451
      %s466 = sphi 0, %s452
      %s470 = sphi 0, %s470
      %s472 = sphi 0, %s470
      %s473 = sphi 0, %s472
      %s487 = sphi 0, %s473
      %s491 = sphi 0, %s491
      %s493 = sphi 0, %s491
      %s494 = sphi 0, %s493
      %s508 = sphi 0, %s494
      %s512 = sphi 0, %s512
      %s514 = sphi 0, %s512
      %s515 = sphi 0, %s514
      %s529 = sphi 0, %s515
      %s533 = sphi 0, %s533
      %s535 = sphi 0, %s533
      %s536 = sphi 0, %s535
      %s550 = sphi 0, %s536
      %s554 = sphi 0, %s554
      %s556 = sphi 0, %s554
      %s557 = sphi 0, %s556
      %s571 = sphi 0, %s557
      %s575 = sphi 0, %s575
      %s577 = sphi 0, %s575
      %s578 = sphi 0, %s577
      %s592 = sphi 0, %s578
      %s596 = sphi 0, %s596
      %s598 = sphi 0, %s596
      %s599 = sphi 0, %s598
      %s613 = sphi 0, %s599
      %s617 = sphi 0, %s617
      %s619 = sphi 0, %s617
      %s620 = sphi 0, %s619
      %s634 = sphi 0, %s620
      %s638 = sphi 0, %s638
      %s640 = sphi 0, %s638
      %s641 = sphi 0, %s640
      %s655 = sphi 0, %s641
      %s659 = sphi 0, %s659
      %s661 = sphi 0, %s659
      %s662 = sphi 0, %s661
      %s676 = sphi 0, %s662
      %s680 = sphi 0, %s680
      %s682 = sphi 0, %s680
      %s683 = sphi 0, %s682
      %s697 = sphi 0, %s683
      %s701 = sphi 0, %s701
      %s703 = sphi 0, %s701
      %s704 = sphi 0, %s703
      %s718 = sphi 0, %s704
      %s722 = sphi 0, %s722
      %s724 = sphi 0, %s722
      %s725 = sphi 0, %s724
      %s739 = sphi 0, %s725
      %s743 = sphi 0, %s743
      %s745 = sphi 0, %s743
      %s746 = sphi 0, %s745
      %s760 = sphi 0, %s746
      %s766 = sphi 0, %s768
      %s769 = sphi 0, %s766
      %s770 = sphi 0, %s769
      %s786 = sphi 0, %s770
    $region4: #{bert_for_sequence_classification.1} parent=1 // loop_header_branch
      %77 = sbr.rel (%p75) target = $region8
    $region5: #{bert_for_sequence_classification.1} parent=1 // loop_body
      %s79 = ssub.s32 %s74, 1
      %s80 = ssub.s32 %s74, 2
      %s81 = sadd.s32 %s74, 1
      %s82 = ssub.s32 %s74, %s81
      %p83 = scmp.eq.s32.totalorder %s82, 0
      %s85 = sadd.s32 %s84, 1
      %s86 = scalar_select %p83, %s84, %s85
      %p89 = pneg %p83
      %p90 = scmp.eq.s32.totalorder %s74, 1
      %p91 = por %p89, %p90
      %p92 = scmp.ne.s32.totalorder %s84, %s87
      %p93 = scmp.eq.s32.totalorder %s74, 0
      %p94 = por %p92, %p93
      %p95 = scmp.ne.s32.totalorder %s84, %s87
      %p96 = scmp.eq.s32.totalorder %s79, 1
      %p97 = por %p95, %p96
      %p98 = scmp.ne.s32.totalorder %s87, %s88
      %p99 = scmp.eq.s32.totalorder %s79, 0
      %p100 = por %p98, %p99
      %p101 = scmp.ne.s32.totalorder %s87, %s88
      %p102 = scmp.eq.s32.totalorder %s80, 1
      %p103 = por %p101, %p102
      %p105 = scmp.ne.s32.totalorder %s88, %s104
      %p106 = scmp.eq.s32.totalorder %s80, 0
      %p107 = por %p105, %p106
      %s108 = ssub.s32 %s74, %s81
      %p109 = scmp.eq.s32.totalorder %s108, 0
      %s111 = sadd.s32 %s110, 1
      %s112 = scalar_select %p109, %s110, %s111
      %p115 = pneg %p109
      %p116 = scmp.eq.s32.totalorder %s74, 1
      %p117 = por %p115, %p116
      %p118 = scmp.ne.s32.totalorder %s110, %s113
      %p119 = scmp.eq.s32.totalorder %s74, 0
      %p120 = por %p118, %p119
      %p121 = scmp.ne.s32.totalorder %s110, %s113
      %p122 = scmp.eq.s32.totalorder %s79, 1
      %p123 = por %p121, %p122
      %p124 = scmp.ne.s32.totalorder %s113, %s114
      %p125 = scmp.eq.s32.totalorder %s79, 0
      %p126 = por %p124, %p125
      %p127 = scmp.ne.s32.totalorder %s113, %s114
      %p128 = scmp.eq.s32.totalorder %s80, 1
      %p129 = por %p127, %p128
      %p131 = scmp.ne.s32.totalorder %s114, %s130
      %p132 = scmp.eq.s32.totalorder %s80, 0
      %p133 = por %p131, %p132
      %s135 = sadd.s32 %s134, 1
      %p138 = scmp.eq.s32.totalorder %s74, 1
      %p139 = scmp.ne.s32.totalorder %s134, %s136
      %p140 = scmp.eq.s32.totalorder %s74, 0
      %p141 = por %p139, %p140
      %p142 = scmp.ne.s32.totalorder %s134, %s136
      %p143 = scmp.eq.s32.totalorder %s79, 1
      %p144 = por %p142, %p143
      %p145 = scmp.ne.s32.totalorder %s136, %s137
      %p146 = scmp.eq.s32.totalorder %s79, 0
      %p147 = por %p145, %p146
      %p148 = scmp.ne.s32.totalorder %s136, %s137
      %p149 = scmp.eq.s32.totalorder %s80, 1
      %p150 = por %p148, %p149
      %p152 = scmp.ne.s32.totalorder %s137, %s151
      %p153 = scmp.eq.s32.totalorder %s80, 0
      %p154 = por %p152, %p153
      %s156 = sadd.s32 %s155, 1
      %p159 = scmp.eq.s32.totalorder %s74, 1
      %p160 = scmp.ne.s32.totalorder %s155, %s157
      %p161 = scmp.eq.s32.totalorder %s74, 0
      %p162 = por %p160, %p161
      %p163 = scmp.ne.s32.totalorder %s155, %s157
      %p164 = scmp.eq.s32.totalorder %s79, 1
      %p165 = por %p163, %p164
      %p166 = scmp.ne.s32.totalorder %s157, %s158
      %p167 = scmp.eq.s32.totalorder %s79, 0
      %p168 = por %p166, %p167
      %p169 = scmp.ne.s32.totalorder %s157, %s158
      %p170 = scmp.eq.s32.totalorder %s80, 1
      %p171 = por %p169, %p170
      %p173 = scmp.ne.s32.totalorder %s158, %s172
      %p174 = scmp.eq.s32.totalorder %s80, 0
      %p175 = por %p173, %p174
      %s177 = sadd.s32 %s176, 1
      %p180 = scmp.eq.s32.totalorder %s74, 1
      %p181 = scmp.ne.s32.totalorder %s176, %s178
      %p182 = scmp.eq.s32.totalorder %s74, 0
      %p183 = por %p181, %p182
      %p184 = scmp.ne.s32.totalorder %s176, %s178
      %p185 = scmp.eq.s32.totalorder %s79, 1
      %p186 = por %p184, %p185
      %p187 = scmp.ne.s32.totalorder %s178, %s179
      %p188 = scmp.eq.s32.totalorder %s79, 0
      %p189 = por %p187, %p188
      %p190 = scmp.ne.s32.totalorder %s178, %s179
      %p191 = scmp.eq.s32.totalorder %s80, 1
      %p192 = por %p190, %p191
      %p194 = scmp.ne.s32.totalorder %s179, %s193
      %p195 = scmp.eq.s32.totalorder %s80, 0
      %p196 = por %p194, %p195
      %s198 = sadd.s32 %s197, 1
      %p201 = scmp.eq.s32.totalorder %s74, 1
      %p202 = scmp.ne.s32.totalorder %s197, %s199
      %p203 = scmp.eq.s32.totalorder %s74, 0
      %p204 = por %p202, %p203
      %p205 = scmp.ne.s32.totalorder %s197, %s199
      %p206 = scmp.eq.s32.totalorder %s79, 1
      %p207 = por %p205, %p206
      %p208 = scmp.ne.s32.totalorder %s199, %s200
      %p209 = scmp.eq.s32.totalorder %s79, 0
      %p210 = por %p208, %p209
      %p211 = scmp.ne.s32.totalorder %s199, %s200
      %p212 = scmp.eq.s32.totalorder %s80, 1
      %p213 = por %p211, %p212
      %p215 = scmp.ne.s32.totalorder %s200, %s214
      %p216 = scmp.eq.s32.totalorder %s80, 0
      %p217 = por %p215, %p216
      %s219 = sadd.s32 %s218, 1
      %p222 = scmp.eq.s32.totalorder %s74, 1
      %p223 = scmp.ne.s32.totalorder %s218, %s220
      %p224 = scmp.eq.s32.totalorder %s74, 0
      %p225 = por %p223, %p224
      %p226 = scmp.ne.s32.totalorder %s218, %s220
      %p227 = scmp.eq.s32.totalorder %s79, 1
      %p228 = por %p226, %p227
      %p229 = scmp.ne.s32.totalorder %s220, %s221
      %p230 = scmp.eq.s32.totalorder %s79, 0
      %p231 = por %p229, %p230
      %p232 = scmp.ne.s32.totalorder %s220, %s221
      %p233 = scmp.eq.s32.totalorder %s80, 1
      %p234 = por %p232, %p233
      %p236 = scmp.ne.s32.totalorder %s221, %s235
      %p237 = scmp.eq.s32.totalorder %s80, 0
      %p238 = por %p236, %p237
      %s240 = sadd.s32 %s239, 1
      %p243 = scmp.eq.s32.totalorder %s74, 1
      %p244 = scmp.ne.s32.totalorder %s239, %s241
      %p245 = scmp.eq.s32.totalorder %s74, 0
      %p246 = por %p244, %p245
      %p247 = scmp.ne.s32.totalorder %s239, %s241
      %p248 = scmp.eq.s32.totalorder %s79, 1
      %p249 = por %p247, %p248
      %p250 = scmp.ne.s32.totalorder %s241, %s242
      %p251 = scmp.eq.s32.totalorder %s79, 0
      %p252 = por %p250, %p251
      %p253 = scmp.ne.s32.totalorder %s241, %s242
      %p254 = scmp.eq.s32.totalorder %s80, 1
      %p255 = por %p253, %p254
      %p257 = scmp.ne.s32.totalorder %s242, %s256
      %p258 = scmp.eq.s32.totalorder %s80, 0
      %p259 = por %p257, %p258
      %s261 = sadd.s32 %s260, 1
      %p264 = scmp.eq.s32.totalorder %s74, 1
      %p265 = scmp.ne.s32.totalorder %s260, %s262
      %p266 = scmp.eq.s32.totalorder %s74, 0
      %p267 = por %p265, %p266
      %p268 = scmp.ne.s32.totalorder %s260, %s262
      %p269 = scmp.eq.s32.totalorder %s79, 1
      %p270 = por %p268, %p269
      %p271 = scmp.ne.s32.totalorder %s262, %s263
      %p272 = scmp.eq.s32.totalorder %s79, 0
      %p273 = por %p271, %p272
      %p274 = scmp.ne.s32.totalorder %s262, %s263
      %p275 = scmp.eq.s32.totalorder %s80, 1
      %p276 = por %p274, %p275
      %p278 = scmp.ne.s32.totalorder %s263, %s277
      %p279 = scmp.eq.s32.totalorder %s80, 0
      %p280 = por %p278, %p279
      %s282 = sadd.s32 %s281, 1
      %p285 = scmp.eq.s32.totalorder %s74, 1
      %p286 = scmp.ne.s32.totalorder %s281, %s283
      %p287 = scmp.eq.s32.totalorder %s74, 0
      %p288 = por %p286, %p287
      %p289 = scmp.ne.s32.totalorder %s281, %s283
      %p290 = scmp.eq.s32.totalorder %s79, 1
      %p291 = por %p289, %p290
      %p292 = scmp.ne.s32.totalorder %s283, %s284
      %p293 = scmp.eq.s32.totalorder %s79, 0
      %p294 = por %p292, %p293
      %p295 = scmp.ne.s32.totalorder %s283, %s284
      %p296 = scmp.eq.s32.totalorder %s80, 1
      %p297 = por %p295, %p296
      %p299 = scmp.ne.s32.totalorder %s284, %s298
      %p300 = scmp.eq.s32.totalorder %s80, 0
      %p301 = por %p299, %p300
      %s303 = sadd.s32 %s302, 1
      %p306 = scmp.eq.s32.totalorder %s74, 1
      %p307 = scmp.ne.s32.totalorder %s302, %s304
      %p308 = scmp.eq.s32.totalorder %s74, 0
      %p309 = por %p307, %p308
      %p310 = scmp.ne.s32.totalorder %s302, %s304
      %p311 = scmp.eq.s32.totalorder %s79, 1
      %p312 = por %p310, %p311
      %p313 = scmp.ne.s32.totalorder %s304, %s305
      %p314 = scmp.eq.s32.totalorder %s79, 0
      %p315 = por %p313, %p314
      %p316 = scmp.ne.s32.totalorder %s304, %s305
      %p317 = scmp.eq.s32.totalorder %s80, 1
      %p318 = por %p316, %p317
      %p320 = scmp.ne.s32.totalorder %s305, %s319
      %p321 = scmp.eq.s32.totalorder %s80, 0
      %p322 = por %p320, %p321
      %s324 = sadd.s32 %s323, 1
      %p327 = scmp.eq.s32.totalorder %s74, 1
      %p328 = scmp.ne.s32.totalorder %s323, %s325
      %p329 = scmp.eq.s32.totalorder %s74, 0
      %p330 = por %p328, %p329
      %p331 = scmp.ne.s32.totalorder %s323, %s325
      %p332 = scmp.eq.s32.totalorder %s79, 1
      %p333 = por %p331, %p332
      %p334 = scmp.ne.s32.totalorder %s325, %s326
      %p335 = scmp.eq.s32.totalorder %s79, 0
      %p336 = por %p334, %p335
      %p337 = scmp.ne.s32.totalorder %s325, %s326
      %p338 = scmp.eq.s32.totalorder %s80, 1
      %p339 = por %p337, %p338
      %p341 = scmp.ne.s32.totalorder %s326, %s340
      %p342 = scmp.eq.s32.totalorder %s80, 0
      %p343 = por %p341, %p342
      %s345 = sadd.s32 %s344, 1
      %p348 = scmp.eq.s32.totalorder %s74, 1
      %p349 = scmp.ne.s32.totalorder %s344, %s346
      %p350 = scmp.eq.s32.totalorder %s74, 0
      %p351 = por %p349, %p350
      %p352 = scmp.ne.s32.totalorder %s344, %s346
      %p353 = scmp.eq.s32.totalorder %s79, 1
      %p354 = por %p352, %p353
      %p355 = scmp.ne.s32.totalorder %s346, %s347
      %p356 = scmp.eq.s32.totalorder %s79, 0
      %p357 = por %p355, %p356
      %p358 = scmp.ne.s32.totalorder %s346, %s347
      %p359 = scmp.eq.s32.totalorder %s80, 1
      %p360 = por %p358, %p359
      %p362 = scmp.ne.s32.totalorder %s347, %s361
      %p363 = scmp.eq.s32.totalorder %s80, 0
      %p364 = por %p362, %p363
      %s366 = sadd.s32 %s365, 1
      %p369 = scmp.eq.s32.totalorder %s74, 1
      %p370 = scmp.ne.s32.totalorder %s365, %s367
      %p371 = scmp.eq.s32.totalorder %s74, 0
      %p372 = por %p370, %p371
      %p373 = scmp.ne.s32.totalorder %s365, %s367
      %p374 = scmp.eq.s32.totalorder %s79, 1
      %p375 = por %p373, %p374
      %p376 = scmp.ne.s32.totalorder %s367, %s368
      %p377 = scmp.eq.s32.totalorder %s79, 0
      %p378 = por %p376, %p377
      %p379 = scmp.ne.s32.totalorder %s367, %s368
      %p380 = scmp.eq.s32.totalorder %s80, 1
      %p381 = por %p379, %p380
      %p383 = scmp.ne.s32.totalorder %s368, %s382
      %p384 = scmp.eq.s32.totalorder %s80, 0
      %p385 = por %p383, %p384
      %s387 = sadd.s32 %s386, 1
      %p390 = scmp.eq.s32.totalorder %s74, 1
      %p391 = scmp.ne.s32.totalorder %s386, %s388
      %p392 = scmp.eq.s32.totalorder %s74, 0
      %p393 = por %p391, %p392
      %p394 = scmp.ne.s32.totalorder %s386, %s388
      %p395 = scmp.eq.s32.totalorder %s79, 1
      %p396 = por %p394, %p395
      %p397 = scmp.ne.s32.totalorder %s388, %s389
      %p398 = scmp.eq.s32.totalorder %s79, 0
      %p399 = por %p397, %p398
      %p400 = scmp.ne.s32.totalorder %s388, %s389
      %p401 = scmp.eq.s32.totalorder %s80, 1
      %p402 = por %p400, %p401
      %p404 = scmp.ne.s32.totalorder %s389, %s403
      %p405 = scmp.eq.s32.totalorder %s80, 0
      %p406 = por %p404, %p405
      %s408 = sadd.s32 %s407, 1
      %p411 = scmp.eq.s32.totalorder %s74, 1
      %p412 = scmp.ne.s32.totalorder %s407, %s409
      %p413 = scmp.eq.s32.totalorder %s74, 0
      %p414 = por %p412, %p413
      %p415 = scmp.ne.s32.totalorder %s407, %s409
      %p416 = scmp.eq.s32.totalorder %s79, 1
      %p417 = por %p415, %p416
      %p418 = scmp.ne.s32.totalorder %s409, %s410
      %p419 = scmp.eq.s32.totalorder %s79, 0
      %p420 = por %p418, %p419
      %p421 = scmp.ne.s32.totalorder %s409, %s410
      %p422 = scmp.eq.s32.totalorder %s80, 1
      %p423 = por %p421, %p422
      %p425 = scmp.ne.s32.totalorder %s410, %s424
      %p426 = scmp.eq.s32.totalorder %s80, 0
      %p427 = por %p425, %p426
      %s429 = sadd.s32 %s428, 1
      %p432 = scmp.eq.s32.totalorder %s74, 1
      %p433 = scmp.ne.s32.totalorder %s428, %s430
      %p434 = scmp.eq.s32.totalorder %s74, 0
      %p435 = por %p433, %p434
      %p436 = scmp.ne.s32.totalorder %s428, %s430
      %p437 = scmp.eq.s32.totalorder %s79, 1
      %p438 = por %p436, %p437
      %p439 = scmp.ne.s32.totalorder %s430, %s431
      %p440 = scmp.eq.s32.totalorder %s79, 0
      %p441 = por %p439, %p440
      %p442 = scmp.ne.s32.totalorder %s430, %s431
      %p443 = scmp.eq.s32.totalorder %s80, 1
      %p444 = por %p442, %p443
      %p446 = scmp.ne.s32.totalorder %s431, %s445
      %p447 = scmp.eq.s32.totalorder %s80, 0
      %p448 = por %p446, %p447
      %s450 = sadd.s32 %s449, 1
      %p453 = scmp.eq.s32.totalorder %s74, 1
      %p454 = scmp.ne.s32.totalorder %s449, %s451
      %p455 = scmp.eq.s32.totalorder %s74, 0
      %p456 = por %p454, %p455
      %p457 = scmp.ne.s32.totalorder %s449, %s451
      %p458 = scmp.eq.s32.totalorder %s79, 1
      %p459 = por %p457, %p458
      %p460 = scmp.ne.s32.totalorder %s451, %s452
      %p461 = scmp.eq.s32.totalorder %s79, 0
      %p462 = por %p460, %p461
      %p463 = scmp.ne.s32.totalorder %s451, %s452
      %p464 = scmp.eq.s32.totalorder %s80, 1
      %p465 = por %p463, %p464
      %p467 = scmp.ne.s32.totalorder %s452, %s466
      %p468 = scmp.eq.s32.totalorder %s80, 0
      %p469 = por %p467, %p468
      %s471 = sadd.s32 %s470, 1
      %p474 = scmp.eq.s32.totalorder %s74, 1
      %p475 = scmp.ne.s32.totalorder %s470, %s472
      %p476 = scmp.eq.s32.totalorder %s74, 0
      %p477 = por %p475, %p476
      %p478 = scmp.ne.s32.totalorder %s470, %s472
      %p479 = scmp.eq.s32.totalorder %s79, 1
      %p480 = por %p478, %p479
      %p481 = scmp.ne.s32.totalorder %s472, %s473
      %p482 = scmp.eq.s32.totalorder %s79, 0
      %p483 = por %p481, %p482
      %p484 = scmp.ne.s32.totalorder %s472, %s473
      %p485 = scmp.eq.s32.totalorder %s80, 1
      %p486 = por %p484, %p485
      %p488 = scmp.ne.s32.totalorder %s473, %s487
      %p489 = scmp.eq.s32.totalorder %s80, 0
      %p490 = por %p488, %p489
      %s492 = sadd.s32 %s491, 1
      %p495 = scmp.eq.s32.totalorder %s74, 1
      %p496 = scmp.ne.s32.totalorder %s491, %s493
      %p497 = scmp.eq.s32.totalorder %s74, 0
      %p498 = por %p496, %p497
      %p499 = scmp.ne.s32.totalorder %s491, %s493
      %p500 = scmp.eq.s32.totalorder %s79, 1
      %p501 = por %p499, %p500
      %p502 = scmp.ne.s32.totalorder %s493, %s494
      %p503 = scmp.eq.s32.totalorder %s79, 0
      %p504 = por %p502, %p503
      %p505 = scmp.ne.s32.totalorder %s493, %s494
      %p506 = scmp.eq.s32.totalorder %s80, 1
      %p507 = por %p505, %p506
      %p509 = scmp.ne.s32.totalorder %s494, %s508
      %p510 = scmp.eq.s32.totalorder %s80, 0
      %p511 = por %p509, %p510
      %s513 = sadd.s32 %s512, 1
      %p516 = scmp.eq.s32.totalorder %s74, 1
      %p517 = scmp.ne.s32.totalorder %s512, %s514
      %p518 = scmp.eq.s32.totalorder %s74, 0
      %p519 = por %p517, %p518
      %p520 = scmp.ne.s32.totalorder %s512, %s514
      %p521 = scmp.eq.s32.totalorder %s79, 1
      %p522 = por %p520, %p521
      %p523 = scmp.ne.s32.totalorder %s514, %s515
      %p524 = scmp.eq.s32.totalorder %s79, 0
      %p525 = por %p523, %p524
      %p526 = scmp.ne.s32.totalorder %s514, %s515
      %p527 = scmp.eq.s32.totalorder %s80, 1
      %p528 = por %p526, %p527
      %p530 = scmp.ne.s32.totalorder %s515, %s529
      %p531 = scmp.eq.s32.totalorder %s80, 0
      %p532 = por %p530, %p531
      %s534 = sadd.s32 %s533, 1
      %p537 = scmp.eq.s32.totalorder %s74, 1
      %p538 = scmp.ne.s32.totalorder %s533, %s535
      %p539 = scmp.eq.s32.totalorder %s74, 0
      %p540 = por %p538, %p539
      %p541 = scmp.ne.s32.totalorder %s533, %s535
      %p542 = scmp.eq.s32.totalorder %s79, 1
      %p543 = por %p541, %p542
      %p544 = scmp.ne.s32.totalorder %s535, %s536
      %p545 = scmp.eq.s32.totalorder %s79, 0
      %p546 = por %p544, %p545
      %p547 = scmp.ne.s32.totalorder %s535, %s536
      %p548 = scmp.eq.s32.totalorder %s80, 1
      %p549 = por %p547, %p548
      %p551 = scmp.ne.s32.totalorder %s536, %s550
      %p552 = scmp.eq.s32.totalorder %s80, 0
      %p553 = por %p551, %p552
      %s555 = sadd.s32 %s554, 1
      %p558 = scmp.eq.s32.totalorder %s74, 1
      %p559 = scmp.ne.s32.totalorder %s554, %s556
      %p560 = scmp.eq.s32.totalorder %s74, 0
      %p561 = por %p559, %p560
      %p562 = scmp.ne.s32.totalorder %s554, %s556
      %p563 = scmp.eq.s32.totalorder %s79, 1
      %p564 = por %p562, %p563
      %p565 = scmp.ne.s32.totalorder %s556, %s557
      %p566 = scmp.eq.s32.totalorder %s79, 0
      %p567 = por %p565, %p566
      %p568 = scmp.ne.s32.totalorder %s556, %s557
      %p569 = scmp.eq.s32.totalorder %s80, 1
      %p570 = por %p568, %p569
      %p572 = scmp.ne.s32.totalorder %s557, %s571
      %p573 = scmp.eq.s32.totalorder %s80, 0
      %p574 = por %p572, %p573
      %s576 = sadd.s32 %s575, 1
      %p579 = scmp.eq.s32.totalorder %s74, 1
      %p580 = scmp.ne.s32.totalorder %s575, %s577
      %p581 = scmp.eq.s32.totalorder %s74, 0
      %p582 = por %p580, %p581
      %p583 = scmp.ne.s32.totalorder %s575, %s577
      %p584 = scmp.eq.s32.totalorder %s79, 1
      %p585 = por %p583, %p584
      %p586 = scmp.ne.s32.totalorder %s577, %s578
      %p587 = scmp.eq.s32.totalorder %s79, 0
      %p588 = por %p586, %p587
      %p589 = scmp.ne.s32.totalorder %s577, %s578
      %p590 = scmp.eq.s32.totalorder %s80, 1
      %p591 = por %p589, %p590
      %p593 = scmp.ne.s32.totalorder %s578, %s592
      %p594 = scmp.eq.s32.totalorder %s80, 0
      %p595 = por %p593, %p594
      %s597 = sadd.s32 %s596, 1
      %p600 = scmp.eq.s32.totalorder %s74, 1
      %p601 = scmp.ne.s32.totalorder %s596, %s598
      %p602 = scmp.eq.s32.totalorder %s74, 0
      %p603 = por %p601, %p602
      %p604 = scmp.ne.s32.totalorder %s596, %s598
      %p605 = scmp.eq.s32.totalorder %s79, 1
      %p606 = por %p604, %p605
      %p607 = scmp.ne.s32.totalorder %s598, %s599
      %p608 = scmp.eq.s32.totalorder %s79, 0
      %p609 = por %p607, %p608
      %p610 = scmp.ne.s32.totalorder %s598, %s599
      %p611 = scmp.eq.s32.totalorder %s80, 1
      %p612 = por %p610, %p611
      %p614 = scmp.ne.s32.totalorder %s599, %s613
      %p615 = scmp.eq.s32.totalorder %s80, 0
      %p616 = por %p614, %p615
      %s618 = sadd.s32 %s617, 1
      %p621 = scmp.eq.s32.totalorder %s74, 1
      %p622 = scmp.ne.s32.totalorder %s617, %s619
      %p623 = scmp.eq.s32.totalorder %s74, 0
      %p624 = por %p622, %p623
      %p625 = scmp.ne.s32.totalorder %s617, %s619
      %p626 = scmp.eq.s32.totalorder %s79, 1
      %p627 = por %p625, %p626
      %p628 = scmp.ne.s32.totalorder %s619, %s620
      %p629 = scmp.eq.s32.totalorder %s79, 0
      %p630 = por %p628, %p629
      %p631 = scmp.ne.s32.totalorder %s619, %s620
      %p632 = scmp.eq.s32.totalorder %s80, 1
      %p633 = por %p631, %p632
      %p635 = scmp.ne.s32.totalorder %s620, %s634
      %p636 = scmp.eq.s32.totalorder %s80, 0
      %p637 = por %p635, %p636
      %s639 = sadd.s32 %s638, 1
      %p642 = scmp.eq.s32.totalorder %s74, 1
      %p643 = scmp.ne.s32.totalorder %s638, %s640
      %p644 = scmp.eq.s32.totalorder %s74, 0
      %p645 = por %p643, %p644
      %p646 = scmp.ne.s32.totalorder %s638, %s640
      %p647 = scmp.eq.s32.totalorder %s79, 1
      %p648 = por %p646, %p647
      %p649 = scmp.ne.s32.totalorder %s640, %s641
      %p650 = scmp.eq.s32.totalorder %s79, 0
      %p651 = por %p649, %p650
      %p652 = scmp.ne.s32.totalorder %s640, %s641
      %p653 = scmp.eq.s32.totalorder %s80, 1
      %p654 = por %p652, %p653
      %p656 = scmp.ne.s32.totalorder %s641, %s655
      %p657 = scmp.eq.s32.totalorder %s80, 0
      %p658 = por %p656, %p657
      %s660 = sadd.s32 %s659, 1
      %p663 = scmp.eq.s32.totalorder %s74, 1
      %p664 = scmp.ne.s32.totalorder %s659, %s661
      %p665 = scmp.eq.s32.totalorder %s74, 0
      %p666 = por %p664, %p665
      %p667 = scmp.ne.s32.totalorder %s659, %s661
      %p668 = scmp.eq.s32.totalorder %s79, 1
      %p669 = por %p667, %p668
      %p670 = scmp.ne.s32.totalorder %s661, %s662
      %p671 = scmp.eq.s32.totalorder %s79, 0
      %p672 = por %p670, %p671
      %p673 = scmp.ne.s32.totalorder %s661, %s662
      %p674 = scmp.eq.s32.totalorder %s80, 1
      %p675 = por %p673, %p674
      %p677 = scmp.ne.s32.totalorder %s662, %s676
      %p678 = scmp.eq.s32.totalorder %s80, 0
      %p679 = por %p677, %p678
      %s681 = sadd.s32 %s680, 1
      %p684 = scmp.eq.s32.totalorder %s74, 1
      %p685 = scmp.ne.s32.totalorder %s680, %s682
      %p686 = scmp.eq.s32.totalorder %s74, 0
      %p687 = por %p685, %p686
      %p688 = scmp.ne.s32.totalorder %s680, %s682
      %p689 = scmp.eq.s32.totalorder %s79, 1
      %p690 = por %p688, %p689
      %p691 = scmp.ne.s32.totalorder %s682, %s683
      %p692 = scmp.eq.s32.totalorder %s79, 0
      %p693 = por %p691, %p692
      %p694 = scmp.ne.s32.totalorder %s682, %s683
      %p695 = scmp.eq.s32.totalorder %s80, 1
      %p696 = por %p694, %p695
      %p698 = scmp.ne.s32.totalorder %s683, %s697
      %p699 = scmp.eq.s32.totalorder %s80, 0
      %p700 = por %p698, %p699
      %s702 = sadd.s32 %s701, 1
      %p705 = scmp.eq.s32.totalorder %s74, 1
      %p706 = scmp.ne.s32.totalorder %s701, %s703
      %p707 = scmp.eq.s32.totalorder %s74, 0
      %p708 = por %p706, %p707
      %p709 = scmp.ne.s32.totalorder %s701, %s703
      %p710 = scmp.eq.s32.totalorder %s79, 1
      %p711 = por %p709, %p710
      %p712 = scmp.ne.s32.totalorder %s703, %s704
      %p713 = scmp.eq.s32.totalorder %s79, 0
      %p714 = por %p712, %p713
      %p715 = scmp.ne.s32.totalorder %s703, %s704
      %p716 = scmp.eq.s32.totalorder %s80, 1
      %p717 = por %p715, %p716
      %p719 = scmp.ne.s32.totalorder %s704, %s718
      %p720 = scmp.eq.s32.totalorder %s80, 0
      %p721 = por %p719, %p720
      %s723 = sadd.s32 %s722, 1
      %p726 = scmp.eq.s32.totalorder %s74, 1
      %p727 = scmp.ne.s32.totalorder %s722, %s724
      %p728 = scmp.eq.s32.totalorder %s74, 0
      %p729 = por %p727, %p728
      %p730 = scmp.ne.s32.totalorder %s722, %s724
      %p731 = scmp.eq.s32.totalorder %s79, 1
      %p732 = por %p730, %p731
      %p733 = scmp.ne.s32.totalorder %s724, %s725
      %p734 = scmp.eq.s32.totalorder %s79, 0
      %p735 = por %p733, %p734
      %p736 = scmp.ne.s32.totalorder %s724, %s725
      %p737 = scmp.eq.s32.totalorder %s80, 1
      %p738 = por %p736, %p737
      %p740 = scmp.ne.s32.totalorder %s725, %s739
      %p741 = scmp.eq.s32.totalorder %s80, 0
      %p742 = por %p740, %p741
      %s744 = sadd.s32 %s743, 1
      %p747 = scmp.eq.s32.totalorder %s74, 1
      %p748 = scmp.ne.s32.totalorder %s743, %s745
      %p749 = scmp.eq.s32.totalorder %s74, 0
      %p750 = por %p748, %p749
      %p751 = scmp.ne.s32.totalorder %s743, %s745
      %p752 = scmp.eq.s32.totalorder %s79, 1
      %p753 = por %p751, %p752
      %p754 = scmp.ne.s32.totalorder %s745, %s746
      %p755 = scmp.eq.s32.totalorder %s79, 0
      %p756 = por %p754, %p755
      %p757 = scmp.ne.s32.totalorder %s745, %s746
      %p758 = scmp.eq.s32.totalorder %s80, 1
      %p759 = por %p757, %p758
      %p761 = scmp.ne.s32.totalorder %s746, %s760
      %p762 = scmp.eq.s32.totalorder %s80, 0
      %p763 = por %p761, %p762
      %s764 = ssub.s32 %s74, %s81
      %p765 = scmp.eq.s32.totalorder %s764, 0
      %s767 = sadd.s32 %s766, 1
      %s768 = scalar_select %p765, %s766, %s767
      %p771 = pneg %p765
      %p772 = scmp.eq.s32.totalorder %s74, 1
      %p773 = por %p771, %p772
      %p774 = scmp.ne.s32.totalorder %s766, %s769
      %p775 = scmp.eq.s32.totalorder %s74, 0
      %p776 = por %p774, %p775
      %p777 = scmp.ne.s32.totalorder %s766, %s769
      %p778 = scmp.eq.s32.totalorder %s79, 1
      %p779 = por %p777, %p778
      %p780 = scmp.ne.s32.totalorder %s769, %s770
      %p781 = scmp.eq.s32.totalorder %s79, 0
      %p782 = por %p780, %p781
      %p783 = scmp.ne.s32.totalorder %s769, %s770
      %p784 = scmp.eq.s32.totalorder %s80, 1
      %p785 = por %p783, %p784
      %p787 = scmp.ne.s32.totalorder %s770, %s786
      %p788 = scmp.eq.s32.totalorder %s80, 0
      %p789 = por %p787, %p788
      %p790 = scmp.le.s32.totalorder 1, %s74
      %p791 = scmp.lt.s32.totalorder %s74, 3
      %p792 = pnand %p790, %p791
      %p793 = pneg %p792
      // Predicated region
      $region9: #{bert_for_sequence_classification.1} parent=5 // pred_check
        _
      $region10: #{bert_for_sequence_classification.1} parent=5 // pred_check_branch
        %795 = sbr.rel (%p792) target = $region12
      $region11: #{bert_for_sequence_classification.1} parent=5 // pred_region
        %s796 = ssub.s32 %s74, 1
        // Predicated region
        $region13: #{bert_for_sequence_classification.1} parent=11 // pred_check
          %p797 = pneg %p147
        $region14: #{bert_for_sequence_classification.1} parent=11 // pred_check_branch
          %799 = sbr.rel (%p797) target = $region16
        $region15: #{bert_for_sequence_classification.1} parent=11 // pred_region
          _
        $region16: #{bert_for_sequence_classification.1} parent=11 // pred_fallthru
          _
        // Predicated region
        $region17: #{bert_for_sequence_classification.1} parent=11 // pred_check
          %p800 = pneg %p168
        $region18: #{bert_for_sequence_classification.1} parent=11 // pred_check_branch
          %802 = sbr.rel (%p800) target = $region20
        $region19: #{bert_for_sequence_classification.1} parent=11 // pred_region
          _
        $region20: #{bert_for_sequence_classification.1} parent=11 // pred_fallthru
          _
        // Predicated region
        $region21: #{bert_for_sequence_classification.1} parent=11 // pred_check
          %p803 = pneg %p189
        $region22: #{bert_for_sequence_classification.1} parent=11 // pred_check_branch
          %805 = sbr.rel (%p803) target = $region24
        $region23: #{bert_for_sequence_classification.1} parent=11 // pred_region
          _
        $region24: #{bert_for_sequence_classification.1} parent=11 // pred_fallthru
          _
        // Predicated region
        $region25: #{bert_for_sequence_classification.1} parent=11 // pred_check
          %p806 = pneg %p210
        $region26: #{bert_for_sequence_classification.1} parent=11 // pred_check_branch
          %808 = sbr.rel (%p806) target = $region28
        $region27: #{bert_for_sequence_classification.1} parent=11 // pred_region
          _
        $region28: #{bert_for_sequence_classification.1} parent=11 // pred_fallthru
          _
        // Predicated region
        $region29: #{bert_for_sequence_classification.1} parent=11 // pred_check
          %p809 = pneg %p231
        $region30: #{bert_for_sequence_classification.1} parent=11 // pred_check_branch
          %811 = sbr.rel (%p809) target = $region32
        $region31: #{bert_for_sequence_classification.1} parent=11 // pred_region
          _
        $region32: #{bert_for_sequence_classification.1} parent=11 // pred_fallthru
          _
        // Predicated region
        $region33: #{bert_for_sequence_classification.1} parent=11 // pred_check
          %p812 = pneg %p252
        $region34: #{bert_for_sequence_classification.1} parent=11 // pred_check_branch
          %814 = sbr.rel (%p812) target = $region36
        $region35: #{bert_for_sequence_classification.1} parent=11 // pred_region
          _
        $region36: #{bert_for_sequence_classification.1} parent=11 // pred_fallthru
          _
        // Predicated region
        $region37: #{bert_for_sequence_classification.1} parent=11 // pred_check
          %p815 = pneg %p273
        $region38: #{bert_for_sequence_classification.1} parent=11 // pred_check_branch
          %817 = sbr.rel (%p815) target = $region40
        $region39: #{bert_for_sequence_classification.1} parent=11 // pred_region
          _
        $region40: #{bert_for_sequence_classification.1} parent=11 // pred_fallthru
          _
        // Predicated region
        $region41: #{bert_for_sequence_classification.1} parent=11 // pred_check
          %p818 = pneg %p294
        $region42: #{bert_for_sequence_classification.1} parent=11 // pred_check_branch
          %820 = sbr.rel (%p818) target = $region44
        $region43: #{bert_for_sequence_classification.1} parent=11 // pred_region
          _
        $region44: #{bert_for_sequence_classification.1} parent=11 // pred_fallthru
          _
        // Predicated region
        $region45: #{bert_for_sequence_classification.1} parent=11 // pred_check
          %p821 = pneg %p315
        $region46: #{bert_for_sequence_classification.1} parent=11 // pred_check_branch
          %823 = sbr.rel (%p821) target = $region48
        $region47: #{bert_for_sequence_classification.1} parent=11 // pred_region
          _
        $region48: #{bert_for_sequence_classification.1} parent=11 // pred_fallthru
          _
        // Predicated region
        $region49: #{bert_for_sequence_classification.1} parent=11 // pred_check
          %p824 = pneg %p336
        $region50: #{bert_for_sequence_classification.1} parent=11 // pred_check_branch
          %826 = sbr.rel (%p824) target = $region52
        $region51: #{bert_for_sequence_classification.1} parent=11 // pred_region
          _
        $region52: #{bert_for_sequence_classification.1} parent=11 // pred_fallthru
          _
        // Predicated region
        $region53: #{bert_for_sequence_classification.1} parent=11 // pred_check
          %p827 = pneg %p357
        $region54: #{bert_for_sequence_classification.1} parent=11 // pred_check_branch
          %829 = sbr.rel (%p827) target = $region56
        $region55: #{bert_for_sequence_classification.1} parent=11 // pred_region
          _
        $region56: #{bert_for_sequence_classification.1} parent=11 // pred_fallthru
          _
        // Predicated region
        $region57: #{bert_for_sequence_classification.1} parent=11 // pred_check
          %p830 = pneg %p378
        $region58: #{bert_for_sequence_classification.1} parent=11 // pred_check_branch
          %832 = sbr.rel (%p830) target = $region60
        $region59: #{bert_for_sequence_classification.1} parent=11 // pred_region
          _
        $region60: #{bert_for_sequence_classification.1} parent=11 // pred_fallthru
          _
        // Predicated region
        $region61: #{bert_for_sequence_classification.1} parent=11 // pred_check
          %p833 = pneg %p399
        $region62: #{bert_for_sequence_classification.1} parent=11 // pred_check_branch
          %835 = sbr.rel (%p833) target = $region64
        $region63: #{bert_for_sequence_classification.1} parent=11 // pred_region
          _
        $region64: #{bert_for_sequence_classification.1} parent=11 // pred_fallthru
          _
        // Predicated region
        $region65: #{bert_for_sequence_classification.1} parent=11 // pred_check
          %p836 = pneg %p420
        $region66: #{bert_for_sequence_classification.1} parent=11 // pred_check_branch
          %838 = sbr.rel (%p836) target = $region68
        $region67: #{bert_for_sequence_classification.1} parent=11 // pred_region
          _
        $region68: #{bert_for_sequence_classification.1} parent=11 // pred_fallthru
          _
        // Predicated region
        $region69: #{bert_for_sequence_classification.1} parent=11 // pred_check
          %p839 = pneg %p441
        $region70: #{bert_for_sequence_classification.1} parent=11 // pred_check_branch
          %841 = sbr.rel (%p839) target = $region72
        $region71: #{bert_for_sequence_classification.1} parent=11 // pred_region
          _
        $region72: #{bert_for_sequence_classification.1} parent=11 // pred_fallthru
          _
        // Predicated region
        $region73: #{bert_for_sequence_classification.1} parent=11 // pred_check
          %p842 = pneg %p462
        $region74: #{bert_for_sequence_classification.1} parent=11 // pred_check_branch
          %844 = sbr.rel (%p842) target = $region76
        $region75: #{bert_for_sequence_classification.1} parent=11 // pred_region
          _
        $region76: #{bert_for_sequence_classification.1} parent=11 // pred_fallthru
          _
        // Predicated region
        $region77: #{bert_for_sequence_classification.1} parent=11 // pred_check
          %p845 = pneg %p483
        $region78: #{bert_for_sequence_classification.1} parent=11 // pred_check_branch
          %847 = sbr.rel (%p845) target = $region80
        $region79: #{bert_for_sequence_classification.1} parent=11 // pred_region
          _
        $region80: #{bert_for_sequence_classification.1} parent=11 // pred_fallthru
          _
        // Predicated region
        $region81: #{bert_for_sequence_classification.1} parent=11 // pred_check
          %p848 = pneg %p504
        $region82: #{bert_for_sequence_classification.1} parent=11 // pred_check_branch
          %850 = sbr.rel (%p848) target = $region84
        $region83: #{bert_for_sequence_classification.1} parent=11 // pred_region
          _
        $region84: #{bert_for_sequence_classification.1} parent=11 // pred_fallthru
          _
        // Predicated region
        $region85: #{bert_for_sequence_classification.1} parent=11 // pred_check
          %p851 = pneg %p525
        $region86: #{bert_for_sequence_classification.1} parent=11 // pred_check_branch
          %853 = sbr.rel (%p851) target = $region88
        $region87: #{bert_for_sequence_classification.1} parent=11 // pred_region
          _
        $region88: #{bert_for_sequence_classification.1} parent=11 // pred_fallthru
          _
        // Predicated region
        $region89: #{bert_for_sequence_classification.1} parent=11 // pred_check
          %p854 = pneg %p546
        $region90: #{bert_for_sequence_classification.1} parent=11 // pred_check_branch
          %856 = sbr.rel (%p854) target = $region92
        $region91: #{bert_for_sequence_classification.1} parent=11 // pred_region
          _
        $region92: #{bert_for_sequence_classification.1} parent=11 // pred_fallthru
          _
        // Predicated region
        $region93: #{bert_for_sequence_classification.1} parent=11 // pred_check
          %p857 = pneg %p567
        $region94: #{bert_for_sequence_classification.1} parent=11 // pred_check_branch
          %859 = sbr.rel (%p857) target = $region96
        $region95: #{bert_for_sequence_classification.1} parent=11 // pred_region
          _
        $region96: #{bert_for_sequence_classification.1} parent=11 // pred_fallthru
          _
        // Predicated region
        $region97: #{bert_for_sequence_classification.1} parent=11 // pred_check
          %p860 = pneg %p588
        $region98: #{bert_for_sequence_classification.1} parent=11 // pred_check_branch
          %862 = sbr.rel (%p860) target = $region100
        $region99: #{bert_for_sequence_classification.1} parent=11 // pred_region
          _
        $region100: #{bert_for_sequence_classification.1} parent=11 // pred_fallthru
          _
        // Predicated region
        $region101: #{bert_for_sequence_classification.1} parent=11 // pred_check
          %p863 = pneg %p609
        $region102: #{bert_for_sequence_classification.1} parent=11 // pred_check_branch
          %865 = sbr.rel (%p863) target = $region104
        $region103: #{bert_for_sequence_classification.1} parent=11 // pred_region
          _
        $region104: #{bert_for_sequence_classification.1} parent=11 // pred_fallthru
          _
        // Predicated region
        $region105: #{bert_for_sequence_classification.1} parent=11 // pred_check
          %p866 = pneg %p630
        $region106: #{bert_for_sequence_classification.1} parent=11 // pred_check_branch
          %868 = sbr.rel (%p866) target = $region108
        $region107: #{bert_for_sequence_classification.1} parent=11 // pred_region
          _
        $region108: #{bert_for_sequence_classification.1} parent=11 // pred_fallthru
          _
        // Predicated region
        $region109: #{bert_for_sequence_classification.1} parent=11 // pred_check
          %p869 = pneg %p651
        $region110: #{bert_for_sequence_classification.1} parent=11 // pred_check_branch
          %871 = sbr.rel (%p869) target = $region112
        $region111: #{bert_for_sequence_classification.1} parent=11 // pred_region
          _
        $region112: #{bert_for_sequence_classification.1} parent=11 // pred_fallthru
          _
        // Predicated region
        $region113: #{bert_for_sequence_classification.1} parent=11 // pred_check
          %p872 = pneg %p672
        $region114: #{bert_for_sequence_classification.1} parent=11 // pred_check_branch
          %874 = sbr.rel (%p872) target = $region116
        $region115: #{bert_for_sequence_classification.1} parent=11 // pred_region
          _
        $region116: #{bert_for_sequence_classification.1} parent=11 // pred_fallthru
          _
        // Predicated region
        $region117: #{bert_for_sequence_classification.1} parent=11 // pred_check
          %p875 = pneg %p693
        $region118: #{bert_for_sequence_classification.1} parent=11 // pred_check_branch
          %877 = sbr.rel (%p875) target = $region120
        $region119: #{bert_for_sequence_classification.1} parent=11 // pred_region
          _
        $region120: #{bert_for_sequence_classification.1} parent=11 // pred_fallthru
          _
        // Predicated region
        $region121: #{bert_for_sequence_classification.1} parent=11 // pred_check
          %p878 = pneg %p714
        $region122: #{bert_for_sequence_classification.1} parent=11 // pred_check_branch
          %880 = sbr.rel (%p878) target = $region124
        $region123: #{bert_for_sequence_classification.1} parent=11 // pred_region
          _
        $region124: #{bert_for_sequence_classification.1} parent=11 // pred_fallthru
          _
        // Predicated region
        $region125: #{bert_for_sequence_classification.1} parent=11 // pred_check
          %p881 = pneg %p735
        $region126: #{bert_for_sequence_classification.1} parent=11 // pred_check_branch
          %883 = sbr.rel (%p881) target = $region128
        $region127: #{bert_for_sequence_classification.1} parent=11 // pred_region
          _
        $region128: #{bert_for_sequence_classification.1} parent=11 // pred_fallthru
          _
        // Predicated region
        $region129: #{bert_for_sequence_classification.1} parent=11 // pred_check
          %p884 = pneg %p756
        $region130: #{bert_for_sequence_classification.1} parent=11 // pred_check_branch
          %886 = sbr.rel (%p884) target = $region132
        $region131: #{bert_for_sequence_classification.1} parent=11 // pred_region
          _
        $region132: #{bert_for_sequence_classification.1} parent=11 // pred_fallthru
          _
      $region12: #{bert_for_sequence_classification.1} parent=5 // pred_fallthru
        _
      %p887 = scmp.lt.s32.totalorder %s74, 2
      // Predicated region
      $region133: #{bert_for_sequence_classification.1} parent=5 // pred_check
        %p888 = pneg %p887
      $region134: #{bert_for_sequence_classification.1} parent=5 // pred_check_branch
        %890 = sbr.rel (%p888) target = $region136
      $region135: #{bert_for_sequence_classification.1} parent=5 // pred_region
        // Predicated region
        $region137: #{bert_for_sequence_classification.1} parent=135 // pred_check
          %p891 = pneg %p94
        $region138: #{bert_for_sequence_classification.1} parent=135 // pred_check_branch
          %893 = sbr.rel (%p891) target = $region140
        $region139: #{bert_for_sequence_classification.1} parent=135 // pred_region
          %p894 = scmp.lt.s32.totalorder %s74, 1
          %s895 = scalar_select %p894, %s74, 1
          %s896 = smul.addr %s895, 8
          %s897 = scalar_lea.vmem %s1, %s896
        $region140: #{bert_for_sequence_classification.1} parent=135 // pred_fallthru
          _
        // Predicated region
        $region141: #{bert_for_sequence_classification.1} parent=135 // pred_check
          %p898 = pneg %p120
        $region142: #{bert_for_sequence_classification.1} parent=135 // pred_check_branch
          %900 = sbr.rel (%p898) target = $region144
        $region143: #{bert_for_sequence_classification.1} parent=135 // pred_region
          %p901 = scmp.lt.s32.totalorder %s74, 1
          %s902 = scalar_select %p901, %s74, 1
          %s903 = scalar_lea.vmem %s3, %s902
        $region144: #{bert_for_sequence_classification.1} parent=135 // pred_fallthru
          _
      $region136: #{bert_for_sequence_classification.1} parent=5 // pred_fallthru
        _
      %p904 = scmp.le.s32.totalorder 1, %s74
      %p905 = scmp.lt.s32.totalorder %s74, 3
      %p906 = pnand %p904, %p905
      %p907 = pneg %p906
      // Predicated region
      $region145: #{bert_for_sequence_classification.1} parent=5 // pred_check
        _
      $region146: #{bert_for_sequence_classification.1} parent=5 // pred_check_branch
        %909 = sbr.rel (%p906) target = $region148
      $region147: #{bert_for_sequence_classification.1} parent=5 // pred_region
        %s910 = ssub.s32 %s74, 1
        %p911 = scmp.lt.s32.totalorder %s79, 1
        %s912 = scalar_select %p911, %s79, 1
        %s913 = smul.addr %s912, 8
        %s914 = scalar_lea.vmem %s1, %s913
        %p915 = pneg %p100
        %p916 = pneg %p97
        %p917 = scmp.lt.s32.totalorder %s79, 1
        %s918 = scalar_select %p917, %s79, 1
        %s919 = scalar_lea.vmem %s3, %s918
        %p920 = pneg %p126
        %p921 = pneg %p123
        %p922 = pneg %p147
        %p923 = pneg %p144
        %p924 = pneg %p168
        %p925 = pneg %p165
        %p926 = pneg %p189
        %p927 = pneg %p186
        %p928 = pneg %p210
        %p929 = pneg %p207
        %p930 = pneg %p231
        %p931 = pneg %p228
        %p932 = pneg %p252
        %p933 = pneg %p249
        %p934 = pneg %p273
        %p935 = pneg %p270
        %p936 = pneg %p294
        %p937 = pneg %p291
        %p938 = pneg %p315
        %p939 = pneg %p312
        %p940 = pneg %p336
        %p941 = pneg %p333
        %p942 = pneg %p357
        %p943 = pneg %p354
        %p944 = pneg %p378
        %p945 = pneg %p375
        %p946 = pneg %p399
        %p947 = pneg %p396
        %p948 = pneg %p420
        %p949 = pneg %p417
        %p950 = pneg %p441
        %p951 = pneg %p438
        %p952 = pneg %p462
        %p953 = pneg %p459
        %p954 = pneg %p483
        %p955 = pneg %p480
        %p956 = pneg %p504
        %p957 = pneg %p501
        %p958 = pneg %p525
        %p959 = pneg %p522
        %p960 = pneg %p546
        %p961 = pneg %p543
        %p962 = pneg %p567
        %p963 = pneg %p564
        %p964 = pneg %p588
        %p965 = pneg %p585
        %p966 = pneg %p609
        %p967 = pneg %p606
        %p968 = pneg %p630
        %p969 = pneg %p627
        %p970 = pneg %p651
        %p971 = pneg %p648
        %p972 = pneg %p672
        %p973 = pneg %p669
        %p974 = pneg %p693
        %p975 = pneg %p690
        %p976 = pneg %p714
        %p977 = pneg %p711
        %p978 = pneg %p735
        %p979 = pneg %p732
        %p980 = pneg %p756
        %p981 = pneg %p753
        %p982 = pneg %p782
        %p983 = pneg %p779
        %s984 = sand.u32 %s769, 1
        %s985 = scalar_lea.sflag [#allocation3], %s984
        %s986 = sand.u32 %s769, 1
        %s987 = scalar_lea.vmem [#allocation2], %s986
        %p988 = scmp.lt.s32.totalorder %s79, 1
        %s989 = scalar_select %p988, %s79, 1
        %s990 = smul.addr %s989, 8
        %s991 = scalar_lea.vmem %s1, %s990
        %p992 = scmp.lt.s32.totalorder %s79, 1
        %s993 = scalar_select %p992, %s79, 1
        %s994 = scalar_lea.vmem %s3, %s993
        %v996 = vld [vmem:[%s994] sm:$0x1]
        %v997 = vld [vmem:[%s991] sm:$0xff]
        %v998 = vld [vmem:[%s5] sm:$0x1]
        %v999 = vld [vmem:[%s7] sm:$0x1]
        %vm1000 = vcmask 261120
        %v1001 = vsel %vm1000, %v997, 0.0
        %1002 = vadd.xlane.f32.xlu0 %v1001
        %v1003 = vpop.xlane.xlu0 %1002
        %v1004 = vrcp.pop 32.0
        %v1005 = vmul.f32 %v1003, %v1004
        %v1006 = vsub.f32 %v997, %v1005
        %v1007 = vmul.f32 %v1006, %v1006
        %v1008 = vsel %vm1000, %v1007, 0.0
        %1009 = vadd.xlane.f32.xlu0 %v1008
        %v1010 = vpop.xlane.xlu0 %1009
        %v1011 = vmul.f32 %v1010, %v1004
        %v1012 = vadd.f32 %v1011, 1e-12
        %v1013 = vrsqrt.pop %v1012
        %v1014 = vmul.f32 %v1006, %v1013
        %v1016 = vlaneseq
        %v1017 = vshrl.u32 %v1016, 7
        %v1018 = vsub.s32 0, %v1017
        %v1019 = vrot.slane %v998, %v1018
        %v1021 = vmul.f32 %v1014, %v1019
        %v1023 = vlaneseq
        %v1024 = vshrl.u32 %v1023, 7
        %v1025 = vsub.s32 0, %v1024
        %v1026 = vrot.slane %v999, %v1025
        %v1028 = vadd.f32 %v1021, %v1026
        %v1029 = vpack.c.bf16 %v1028, %v1028
        %v1030 = vld [vmem:[%s9] sm:$0xf]
        %v1031 = vld [vmem:[%s9 + $0x4] sm:$0xf]
        %v1032 = vld [vmem:[%s9 + $0x8] sm:$0xf]
        %v1033 = vld [vmem:[%s9 + $0xc] sm:$0xf]
        %v1034 = vld [vmem:[%s11] sm:$0x1]
        %v1036 = vlaneseq
        %v1037 = vshrl.u32 %v1036, 7
        %v1038 = vsub.s32 0, %v1037
        %v1039 = vrot.slane %v1034, %v1038
        %v1045 = vunpack.c.l.b16 %v1030
        %v1046 = vunpack.c.l.b16 %v1031
        %v1047 = vunpack.c.l.b16 %v1032
        %v1048 = vunpack.c.l.b16 %v1033
        %v1049 = vpack.c.b16 %v1046, %v1045
        %v1050 = vpack.c.b16 %v1048, %v1047
        %v1054 = vsel %vm1000, %v1029, 0
        %1056 = vmatprep.subr.bf16.mxu0 0
        %1057 = vmatpush1.bf16.msra.mxu0 %v1049
        %1058 = vmatprep.subr.bf16.mxu0 0
        %1059 = vmatpush1.bf16.msra.mxu0 %v1050
        %1060 = vmatprep.subr.bf16.mxu0 0
        %1061 = vmatpush1.bf16.msra.mxu0 0
        %1062 = vmatprep.subr.bf16.mxu0 0
        %1063 = vmatpush1.bf16.msra.mxu0 0
        %1064 = vmatprep.subr.bf16.mxu0 0
        %1065 = vmatpush1.bf16.msra.mxu0 0
        %1066 = vmatprep.subr.bf16.mxu0 0
        %1067 = vmatpush1.bf16.msra.mxu0 0
        %1068 = vmatprep.subr.bf16.mxu0 0
        %1069 = vmatpush1.bf16.msra.mxu0 0
        %1070 = vmatprep.subr.bf16.mxu0 0
        %1071 = vmatpush1.bf16.msra.mxu0 0
        %1072 = vmatprep.subr.bf16.mxu0 0
        %1073 = vmatpush1.bf16.msra.mxu0 0
        %1074 = vmatprep.subr.bf16.mxu0 0
        %1075 = vmatpush1.bf16.msra.mxu0 0
        %1076 = vmatprep.subr.bf16.mxu0 0
        %1077 = vmatpush1.bf16.msra.mxu0 0
        %1078 = vmatprep.subr.bf16.mxu0 0
        %1079 = vmatpush1.bf16.msra.mxu0 0
        %1080 = vmatprep.subr.bf16.mxu0 0
        %1081 = vmatpush1.bf16.msra.mxu0 0
        %1082 = vmatprep.subr.bf16.mxu0 0
        %1083 = vmatpush1.bf16.msra.mxu0 0
        %1084 = vmatprep.subr.bf16.mxu0 0
        %1085 = vmatpush1.bf16.msra.mxu0 0
        %1086 = vmatprep.subr.bf16.mxu0 0
        %1087 = vmatpush1.bf16.msra.mxu0 0
        %1088 = vmatprep.mubr.bf16.mxu0 0
        %1089 = vmatmul.mubr.bf16.gmra.mrb[0].mxu0 %v1054
        %v1090 = vpop.f32.mrb[0].mxu0
        %v1091 = vadd.f32 %v1039, %v1090
        %v1092 = vpop.f32.mrb[0].mxu0
        %v1093 = vpop.f32.mrb[0].mxu0
        %v1094 = vpop.f32.mrb[0].mxu0
        %1095 = vdwg.mxu0
        %v1096 = vpack.c.bf16 %v1091, %v1091
        %1098 = vrot.lane.b32.xlu0 %v1096, 96
        %v1099 = vpop.permute.xlu0 %1098
        %vm1100 = vcmask 130048
        %v1102 = vsel %vm1100, %v1096, 0
        %v1105 = vsel %vm1100, %v1099, 0
        %1107 = vmatprep.subr.bf16.mxu0 0
        %1108 = vmatpush1.bf16.xpose.msra.mxu0 %v1105
        %1109 = vmatprep.subr.bf16.mxu0 0
        %1110 = vmatpush1.bf16.xpose.msra.mxu0 0
        %1111 = vmatprep.subr.bf16.mxu0 0
        %1112 = vmatpush1.bf16.xpose.msra.mxu0 0
        %1113 = vmatprep.subr.bf16.mxu0 0
        %1114 = vmatpush1.bf16.xpose.msra.mxu0 0
        %1115 = vmatprep.subr.bf16.mxu0 0
        %1116 = vmatpush1.bf16.xpose.msra.mxu0 0
        %1117 = vmatprep.subr.bf16.mxu0 0
        %1118 = vmatpush1.bf16.xpose.msra.mxu0 0
        %1119 = vmatprep.subr.bf16.mxu0 0
        %1120 = vmatpush1.bf16.xpose.msra.mxu0 0
        %1121 = vmatprep.subr.bf16.mxu0 0
        %1122 = vmatpush1.bf16.xpose.msra.mxu0 0
        %1123 = vmatprep.subr.bf16.mxu0 0
        %1124 = vmatpush1.bf16.xpose.msra.mxu0 0
        %1125 = vmatprep.subr.bf16.mxu0 0
        %1126 = vmatpush1.bf16.xpose.msra.mxu0 0
        %1127 = vmatprep.subr.bf16.mxu0 0
        %1128 = vmatpush1.bf16.xpose.msra.mxu0 0
        %1129 = vmatprep.subr.bf16.mxu0 0
        %1130 = vmatpush1.bf16.xpose.msra.mxu0 0
        %1131 = vmatprep.subr.bf16.mxu0 0
        %1132 = vmatpush1.bf16.xpose.msra.mxu0 0
        %1133 = vmatprep.subr.bf16.mxu0 0
        %1134 = vmatpush1.bf16.xpose.msra.mxu0 0
        %1135 = vmatprep.subr.bf16.mxu0 0
        %1136 = vmatpush1.bf16.xpose.msra.mxu0 0
        %1137 = vmatprep.subr.bf16.mxu0 0
        %1138 = vmatpush1.bf16.xpose.msra.mxu0 0
        %1139 = vmatprep.mubr.bf16.mxu0 0
        %1140 = vmatmul.mubr.bf16.gmra.mrb[0].mxu0 %v1102
        %v1141 = vpop.f32.mrb[0].mxu0
        %v1142 = vadd.f32 0.0, %v1141
        %v1143 = vpop.f32.mrb[0].mxu0
        %v1144 = vpop.f32.mrb[0].mxu0
        %v1145 = vpop.f32.mrb[0].mxu0
        %1146 = vdwg.mxu0
        %v1147 = vmul.f32 %v1142, 0.25
        %v1149 = vlaneseq
        %v1150 = vshrl.u32 %v1149, 7
        %v1151 = vsub.s32 0, %v1150
        %v1152 = vrot.slane %v996, %v1151
        %v1154 = vadd.f32 %v1147, %v1152
        %vm1155 = vcmask 64512
        %v1156 = vsel %vm1155, %v1154, -inf
        %1157 = vmax.xlane.f32.xlu0 %v1156
        %v1158 = vpop.xlane.xlu0 %1157
        %v1159 = vsub.f32 %v1154, %v1158
        %v1160 = vmul.f32 %v1159, 1.442695
        %v1161 = vpow.pop %v1160
        %v1162 = vsel %vm1155, %v1161, 0.0
        %1163 = vadd.xlane.f32.xlu0 %v1162
        %v1164 = vpop.xlane.xlu0 %1163
        %v1165 = vrcp.pop %v1164
        %v1166 = vmul.f32 %v1161, %v1165
        %v1167 = vpack.c.bf16 %v1166, %v1166
        %1168 = vrot.lane.b32.xlu0 %v1096, 64
        %v1169 = vpop.permute.xlu0 %1168
        %v1171 = vsel %vm1155, %v1167, 0
        %vm1173 = vcmask 1043456
        %v1175 = vsel %vm1173, %v1169, 0
        %1177 = vmatprep.subr.bf16.mxu0 0
        %1178 = vmatpush1.bf16.msra.mxu0 %v1175
        %1179 = vmatprep.subr.bf16.mxu0 0
        %1180 = vmatpush1.bf16.msra.mxu0 0
        %1181 = vmatprep.subr.bf16.mxu0 0
        %1182 = vmatpush1.bf16.msra.mxu0 0
        %1183 = vmatprep.subr.bf16.mxu0 0
        %1184 = vmatpush1.bf16.msra.mxu0 0
        %1185 = vmatprep.subr.bf16.mxu0 0
        %1186 = vmatpush1.bf16.msra.mxu0 0
        %1187 = vmatprep.subr.bf16.mxu0 0
        %1188 = vmatpush1.bf16.msra.mxu0 0
        %1189 = vmatprep.subr.bf16.mxu0 0
        %1190 = vmatpush1.bf16.msra.mxu0 0
        %1191 = vmatprep.subr.bf16.mxu0 0
        %1192 = vmatpush1.bf16.msra.mxu0 0
        %1193 = vmatprep.subr.bf16.mxu0 0
        %1194 = vmatpush1.bf16.msra.mxu0 0
        %1195 = vmatprep.subr.bf16.mxu0 0
        %1196 = vmatpush1.bf16.msra.mxu0 0
        %1197 = vmatprep.subr.bf16.mxu0 0
        %1198 = vmatpush1.bf16.msra.mxu0 0
        %1199 = vmatprep.subr.bf16.mxu0 0
        %1200 = vmatpush1.bf16.msra.mxu0 0
        %1201 = vmatprep.subr.bf16.mxu0 0
        %1202 = vmatpush1.bf16.msra.mxu0 0
        %1203 = vmatprep.subr.bf16.mxu0 0
        %1204 = vmatpush1.bf16.msra.mxu0 0
        %1205 = vmatprep.subr.bf16.mxu0 0
        %1206 = vmatpush1.bf16.msra.mxu0 0
        %1207 = vmatprep.subr.bf16.mxu0 0
        %1208 = vmatpush1.bf16.msra.mxu0 0
        %1209 = vmatprep.mubr.bf16.mxu0 0
        %1210 = vmatmul.mubr.bf16.gmra.mrb[0].mxu0 %v1171
        %v1211 = vpop.f32.mrb[0].mxu0
        %v1212 = vadd.f32 0.0, %v1211
        %v1213 = vpop.f32.mrb[0].mxu0
        %v1214 = vpop.f32.mrb[0].mxu0
        %v1215 = vpop.f32.mrb[0].mxu0
        %1216 = vdwg.mxu0
        %1217 = vrot.lane.b32.xlu0 %v1096, 112
        %v1218 = vpop.permute.xlu0 %1217
        %1219 = vrot.lane.b32.xlu0 %v1096, 80
        %v1220 = vpop.permute.xlu0 %1219
        %v1222 = vsel %vm1100, %v1218, 0
        %v1225 = vsel %vm1100, %v1220, 0
        %1227 = vmatprep.subr.bf16.mxu0 0
        %1228 = vmatpush1.bf16.xpose.msra.mxu0 %v1225
        %1229 = vmatprep.subr.bf16.mxu0 0
        %1230 = vmatpush1.bf16.xpose.msra.mxu0 0
        %1231 = vmatprep.subr.bf16.mxu0 0
        %1232 = vmatpush1.bf16.xpose.msra.mxu0 0
        %1233 = vmatprep.subr.bf16.mxu0 0
        %1234 = vmatpush1.bf16.xpose.msra.mxu0 0
        %1235 = vmatprep.subr.bf16.mxu0 0
        %1236 = vmatpush1.bf16.xpose.msra.mxu0 0
        %1237 = vmatprep.subr.bf16.mxu0 0
        %1238 = vmatpush1.bf16.xpose.msra.mxu0 0
        %1239 = vmatprep.subr.bf16.mxu0 0
        %1240 = vmatpush1.bf16.xpose.msra.mxu0 0
        %1241 = vmatprep.subr.bf16.mxu0 0
        %1242 = vmatpush1.bf16.xpose.msra.mxu0 0
        %1243 = vmatprep.subr.bf16.mxu0 0
        %1244 = vmatpush1.bf16.xpose.msra.mxu0 0
        %1245 = vmatprep.subr.bf16.mxu0 0
        %1246 = vmatpush1.bf16.xpose.msra.mxu0 0
        %1247 = vmatprep.subr.bf16.mxu0 0
        %1248 = vmatpush1.bf16.xpose.msra.mxu0 0
        %1249 = vmatprep.subr.bf16.mxu0 0
        %1250 = vmatpush1.bf16.xpose.msra.mxu0 0
        %1251 = vmatprep.subr.bf16.mxu0 0
        %1252 = vmatpush1.bf16.xpose.msra.mxu0 0
        %1253 = vmatprep.subr.bf16.mxu0 0
        %1254 = vmatpush1.bf16.xpose.msra.mxu0 0
        %1255 = vmatprep.subr.bf16.mxu0 0
        %1256 = vmatpush1.bf16.xpose.msra.mxu0 0
        %1257 = vmatprep.subr.bf16.mxu0 0
        %1258 = vmatpush1.bf16.xpose.msra.mxu0 0
        %1259 = vmatprep.mubr.bf16.mxu0 0
        %1260 = vmatmul.mubr.bf16.gmra.mrb[0].mxu0 %v1222
        %v1261 = vpop.f32.mrb[0].mxu0
        %v1262 = vadd.f32 0.0, %v1261
        %v1263 = vpop.f32.mrb[0].mxu0
        %v1264 = vpop.f32.mrb[0].mxu0
        %v1265 = vpop.f32.mrb[0].mxu0
        %1266 = vdwg.mxu0
        %v1267 = vmul.f32 %v1262, 0.25
        %v1268 = vadd.f32 %v1267, %v1152
        %v1269 = vsel %vm1155, %v1268, -inf
        %1270 = vmax.xlane.f32.xlu0 %v1269
        %v1271 = vpop.xlane.xlu0 %1270
        %v1272 = vsub.f32 %v1268, %v1271
        %v1273 = vmul.f32 %v1272, 1.442695
        %v1274 = vpow.pop %v1273
        %v1275 = vsel %vm1155, %v1274, 0.0
        %1276 = vadd.xlane.f32.xlu0 %v1275
        %v1277 = vpop.xlane.xlu0 %1276
        %v1278 = vrcp.pop %v1277
        %v1279 = vmul.f32 %v1274, %v1278
        %v1280 = vpack.c.bf16 %v1279, %v1279
        %1281 = vrot.lane.b32.xlu0 %v1096, 48
        %v1282 = vpop.permute.xlu0 %1281
        %v1284 = vsel %vm1155, %v1280, 0
        %v1287 = vsel %vm1173, %v1282, 0
        %1289 = vmatprep.subr.bf16.mxu0 0
        %1290 = vmatpush1.bf16.msra.mxu0 %v1287
        %1291 = vmatprep.subr.bf16.mxu0 0
        %1292 = vmatpush1.bf16.msra.mxu0 0
        %1293 = vmatprep.subr.bf16.mxu0 0
        %1294 = vmatpush1.bf16.msra.mxu0 0
        %1295 = vmatprep.subr.bf16.mxu0 0
        %1296 = vmatpush1.bf16.msra.mxu0 0
        %1297 = vmatprep.subr.bf16.mxu0 0
        %1298 = vmatpush1.bf16.msra.mxu0 0
        %1299 = vmatprep.subr.bf16.mxu0 0
        %1300 = vmatpush1.bf16.msra.mxu0 0
        %1301 = vmatprep.subr.bf16.mxu0 0
        %1302 = vmatpush1.bf16.msra.mxu0 0
        %1303 = vmatprep.subr.bf16.mxu0 0
        %1304 = vmatpush1.bf16.msra.mxu0 0
        %1305 = vmatprep.subr.bf16.mxu0 0
        %1306 = vmatpush1.bf16.msra.mxu0 0
        %1307 = vmatprep.subr.bf16.mxu0 0
        %1308 = vmatpush1.bf16.msra.mxu0 0
        %1309 = vmatprep.subr.bf16.mxu0 0
        %1310 = vmatpush1.bf16.msra.mxu0 0
        %1311 = vmatprep.subr.bf16.mxu0 0
        %1312 = vmatpush1.bf16.msra.mxu0 0
        %1313 = vmatprep.subr.bf16.mxu0 0
        %1314 = vmatpush1.bf16.msra.mxu0 0
        %1315 = vmatprep.subr.bf16.mxu0 0
        %1316 = vmatpush1.bf16.msra.mxu0 0
        %1317 = vmatprep.subr.bf16.mxu0 0
        %1318 = vmatpush1.bf16.msra.mxu0 0
        %1319 = vmatprep.subr.bf16.mxu0 0
        %1320 = vmatpush1.bf16.msra.mxu0 0
        %1321 = vmatprep.mubr.bf16.mxu0 0
        %1322 = vmatmul.mubr.bf16.gmra.mrb[0].mxu0 %v1284
        %v1323 = vpop.f32.mrb[0].mxu0
        %v1324 = vadd.f32 0.0, %v1323
        %v1325 = vpop.f32.mrb[0].mxu0
        %v1326 = vpop.f32.mrb[0].mxu0
        %v1327 = vpop.f32.mrb[0].mxu0
        %1328 = vdwg.mxu0
        %1330 = vrot.lane.b32.xlu0 %v1324, 16
        %v1331 = vpop.permute.xlu0 %1330
        %v1333 = vsel %vm1100, %v1212, %v1331
        %v1334 = vpack.c.bf16 %v1333, %v1333
        %v1335 = vld [vmem:[%s13] sm:$0xf]
        %v1336 = vld [vmem:[%s13 + $0x4] sm:$0xf]
        %v1337 = vld [vmem:[%s13 + $0x8] sm:$0xf]
        %v1338 = vld [vmem:[%s13 + $0xc] sm:$0xf]
        %v1339 = vld [vmem:[%s15] sm:$0x1]
        %v1341 = vlaneseq
        %v1342 = vshrl.u32 %v1341, 7
        %v1343 = vsub.s32 0, %v1342
        %v1344 = vrot.slane %v1339, %v1343
        %v1350 = vunpack.c.l.b16 %v1335
        %v1351 = vunpack.c.l.b16 %v1336
        %v1352 = vunpack.c.l.b16 %v1337
        %v1353 = vunpack.c.l.b16 %v1338
        %v1354 = vpack.c.b16 %v1351, %v1350
        %v1355 = vpack.c.b16 %v1353, %v1352
        %v1359 = vsel %vm1000, %v1334, 0
        %1361 = vmatprep.subr.bf16.mxu0 0
        %1362 = vmatpush1.bf16.msra.mxu0 %v1354
        %1363 = vmatprep.subr.bf16.mxu0 0
        %1364 = vmatpush1.bf16.msra.mxu0 %v1355
        %1365 = vmatprep.subr.bf16.mxu0 0
        %1366 = vmatpush1.bf16.msra.mxu0 0
        %1367 = vmatprep.subr.bf16.mxu0 0
        %1368 = vmatpush1.bf16.msra.mxu0 0
        %1369 = vmatprep.subr.bf16.mxu0 0
        %1370 = vmatpush1.bf16.msra.mxu0 0
        %1371 = vmatprep.subr.bf16.mxu0 0
        %1372 = vmatpush1.bf16.msra.mxu0 0
        %1373 = vmatprep.subr.bf16.mxu0 0
        %1374 = vmatpush1.bf16.msra.mxu0 0
        %1375 = vmatprep.subr.bf16.mxu0 0
        %1376 = vmatpush1.bf16.msra.mxu0 0
        %1377 = vmatprep.subr.bf16.mxu0 0
        %1378 = vmatpush1.bf16.msra.mxu0 0
        %1379 = vmatprep.subr.bf16.mxu0 0
        %1380 = vmatpush1.bf16.msra.mxu0 0
        %1381 = vmatprep.subr.bf16.mxu0 0
        %1382 = vmatpush1.bf16.msra.mxu0 0
        %1383 = vmatprep.subr.bf16.mxu0 0
        %1384 = vmatpush1.bf16.msra.mxu0 0
        %1385 = vmatprep.subr.bf16.mxu0 0
        %1386 = vmatpush1.bf16.msra.mxu0 0
        %1387 = vmatprep.subr.bf16.mxu0 0
        %1388 = vmatpush1.bf16.msra.mxu0 0
        %1389 = vmatprep.subr.bf16.mxu0 0
        %1390 = vmatpush1.bf16.msra.mxu0 0
        %1391 = vmatprep.subr.bf16.mxu0 0
        %1392 = vmatpush1.bf16.msra.mxu0 0
        %1393 = vmatprep.mubr.bf16.mxu0 0
        %1394 = vmatmul.mubr.bf16.gmra.mrb[0].mxu0 %v1359
        %v1395 = vpop.f32.mrb[0].mxu0
        %v1396 = vadd.f32 %v1344, %v1395
        %v1397 = vpop.f32.mrb[0].mxu0
        %v1398 = vpop.f32.mrb[0].mxu0
        %v1399 = vpop.f32.mrb[0].mxu0
        %1400 = vdwg.mxu0
        %v1401 = vadd.f32 %v1396, %v1028
        %v1402 = vld [vmem:[%s17] sm:$0x1]
        %v1403 = vld [vmem:[%s19] sm:$0x1]
        %v1404 = vsel %vm1000, %v1401, 0.0
        %1405 = vadd.xlane.f32.xlu0 %v1404
        %v1406 = vpop.xlane.xlu0 %1405
        %v1407 = vmul.f32 %v1406, %v1004
        %v1408 = vsub.f32 %v1401, %v1407
        %v1409 = vmul.f32 %v1408, %v1408
        %v1410 = vsel %vm1000, %v1409, 0.0
        %1411 = vadd.xlane.f32.xlu0 %v1410
        %v1412 = vpop.xlane.xlu0 %1411
        %v1413 = vmul.f32 %v1412, %v1004
        %v1414 = vadd.f32 %v1413, 1e-12
        %v1415 = vrsqrt.pop %v1414
        %v1416 = vmul.f32 %v1408, %v1415
        %v1418 = vlaneseq
        %v1419 = vshrl.u32 %v1418, 7
        %v1420 = vsub.s32 0, %v1419
        %v1421 = vrot.slane %v1402, %v1420
        %v1423 = vmul.f32 %v1416, %v1421
        %v1425 = vlaneseq
        %v1426 = vshrl.u32 %v1425, 7
        %v1427 = vsub.s32 0, %v1426
        %v1428 = vrot.slane %v1403, %v1427
        %v1430 = vadd.f32 %v1423, %v1428
        %v1431 = vpack.c.bf16 %v1430, %v1430
        %v1432 = vld [vmem:[%s21] sm:$0xf]
        %v1433 = vld [vmem:[%s21 + $0x4] sm:$0xf]
        %v1434 = vld [vmem:[%s21 + $0x8] sm:$0xf]
        %v1435 = vld [vmem:[%s21 + $0xc] sm:$0xf]
        %v1436 = vld [vmem:[%s23] sm:$0x1]
        %v1438 = vlaneseq
        %v1439 = vshrl.u32 %v1438, 7
        %v1440 = vsub.s32 0, %v1439
        %v1441 = vrot.slane %v1436, %v1440
        %v1447 = vunpack.c.l.b16 %v1432
        %v1448 = vunpack.c.l.b16 %v1433
        %v1449 = vunpack.c.l.b16 %v1434
        %v1450 = vunpack.c.l.b16 %v1435
        %v1451 = vpack.c.b16 %v1448, %v1447
        %v1452 = vpack.c.b16 %v1450, %v1449
        %v1456 = vsel %vm1000, %v1431, 0
        %1458 = vmatprep.subr.bf16.mxu0 0
        %1459 = vmatpush1.bf16.msra.mxu0 %v1451
        %1460 = vmatprep.subr.bf16.mxu0 0
        %1461 = vmatpush1.bf16.msra.mxu0 %v1452
        %1462 = vmatprep.subr.bf16.mxu0 0
        %1463 = vmatpush1.bf16.msra.mxu0 0
        %1464 = vmatprep.subr.bf16.mxu0 0
        %1465 = vmatpush1.bf16.msra.mxu0 0
        %1466 = vmatprep.subr.bf16.mxu0 0
        %1467 = vmatpush1.bf16.msra.mxu0 0
        %1468 = vmatprep.subr.bf16.mxu0 0
        %1469 = vmatpush1.bf16.msra.mxu0 0
        %1470 = vmatprep.subr.bf16.mxu0 0
        %1471 = vmatpush1.bf16.msra.mxu0 0
        %1472 = vmatprep.subr.bf16.mxu0 0
        %1473 = vmatpush1.bf16.msra.mxu0 0
        %1474 = vmatprep.subr.bf16.mxu0 0
        %1475 = vmatpush1.bf16.msra.mxu0 0
        %1476 = vmatprep.subr.bf16.mxu0 0
        %1477 = vmatpush1.bf16.msra.mxu0 0
        %1478 = vmatprep.subr.bf16.mxu0 0
        %1479 = vmatpush1.bf16.msra.mxu0 0
        %1480 = vmatprep.subr.bf16.mxu0 0
        %1481 = vmatpush1.bf16.msra.mxu0 0
        %1482 = vmatprep.subr.bf16.mxu0 0
        %1483 = vmatpush1.bf16.msra.mxu0 0
        %1484 = vmatprep.subr.bf16.mxu0 0
        %1485 = vmatpush1.bf16.msra.mxu0 0
        %1486 = vmatprep.subr.bf16.mxu0 0
        %1487 = vmatpush1.bf16.msra.mxu0 0
        %1488 = vmatprep.subr.bf16.mxu0 0
        %1489 = vmatpush1.bf16.msra.mxu0 0
        %1490 = vmatprep.mubr.bf16.mxu0 0
        %1491 = vmatmul.mubr.bf16.gmra.mrb[0].mxu0 %v1456
        %v1492 = vpop.f32.mrb[0].mxu0
        %v1493 = vadd.f32 %v1441, %v1492
        %v1494 = vpop.f32.mrb[0].mxu0
        %v1495 = vpop.f32.mrb[0].mxu0
        %v1496 = vpop.f32.mrb[0].mxu0
        %1497 = vdwg.mxu0
        %v1498 = vmul.f32 %v1493, 0.5
        %v1499 = vmul.f32 %v1493, 0.70710677
        %v1500 = vand.u32 2147483647, %v1499
        %v1501 = vmul.f32 %v1500, 0.3275911
        %v1502 = vadd.f32 %v1501, 1.0
        %v1503 = vrcp.pop %v1502
        %v1504 = vmul.f32 1.0, %v1503
        %v1505 = vmul.f32 %v1504, 1.0614054
        %v1506 = vadd.f32 %v1505, -1.4531521
        %v1507 = vmul.f32 %v1506, %v1504
        %v1508 = vadd.f32 %v1507, 1.4214138
        %v1509 = vmul.f32 %v1508, %v1504
        %v1510 = vadd.f32 %v1509, -0.28449672
        %v1511 = vmul.f32 %v1510, %v1504
        %v1512 = vadd.f32 %v1511, 0.2548296
        %v1513 = vmul.f32 %v1512, %v1504
        %v1514 = vsub.f32 0.0, %v1500
        %v1515 = vmul.f32 %v1514, %v1500
        %v1516 = vmul.f32 %v1515, 1.442695
        %v1517 = vpow.pop %v1516
        %v1518 = vmul.f32 %v1513, %v1517
        %v1519 = vsub.f32 1.0, %v1518
        %vm1520 = vcmp.ge.f32.partialorder %v1499, 0.0
        %v1521 = vsub.f32 0.0, %v1519
        %v1522 = vsel %vm1520, %v1519, %v1521
        %v1523 = vadd.f32 %v1522, 1.0
        %v1524 = vmul.f32 %v1498, %v1523
        %v1525 = vpack.c.bf16 %v1524, %v1524
        %v1526 = vld [vmem:[%s25] sm:$0xf]
        %v1527 = vld [vmem:[%s25 + $0x4] sm:$0xf]
        %v1528 = vld [vmem:[%s25 + $0x8] sm:$0xf]
        %v1529 = vld [vmem:[%s25 + $0xc] sm:$0xf]
        %v1530 = vld [vmem:[%s25 + $0x10] sm:$0xf]
        %v1531 = vld [vmem:[%s25 + $0x14] sm:$0xf]
        %v1532 = vld [vmem:[%s25 + $0x18] sm:$0xf]
        %v1533 = vld [vmem:[%s25 + $0x1c] sm:$0xf]
        %v1534 = vld [vmem:[%s27] sm:$0x1]
        %v1536 = vlaneseq
        %v1537 = vshrl.u32 %v1536, 7
        %v1538 = vsub.s32 0, %v1537
        %v1539 = vrot.slane %v1534, %v1538
        %v1549 = vunpack.c.l.b16 %v1526
        %v1550 = vunpack.c.l.b16 %v1527
        %v1551 = vunpack.c.l.b16 %v1528
        %v1552 = vunpack.c.l.b16 %v1529
        %v1553 = vunpack.c.l.b16 %v1530
        %v1554 = vunpack.c.l.b16 %v1531
        %v1555 = vunpack.c.l.b16 %v1532
        %v1556 = vunpack.c.l.b16 %v1533
        %v1557 = vpack.c.b16 %v1550, %v1549
        %v1558 = vpack.c.b16 %v1552, %v1551
        %v1559 = vpack.c.b16 %v1554, %v1553
        %v1560 = vpack.c.b16 %v1556, %v1555
        %vm1565 = vcmask 523264
        %v1567 = vsel %vm1565, %v1525, 0
        %1569 = vmatprep.subr.bf16.mxu0 0
        %1570 = vmatpush1.bf16.msra.mxu0 %v1557
        %1571 = vmatprep.subr.bf16.mxu0 0
        %1572 = vmatpush1.bf16.msra.mxu0 %v1558
        %1573 = vmatprep.subr.bf16.mxu0 0
        %1574 = vmatpush1.bf16.msra.mxu0 %v1559
        %1575 = vmatprep.subr.bf16.mxu0 0
        %1576 = vmatpush1.bf16.msra.mxu0 %v1560
        %1577 = vmatprep.subr.bf16.mxu0 0
        %1578 = vmatpush1.bf16.msra.mxu0 0
        %1579 = vmatprep.subr.bf16.mxu0 0
        %1580 = vmatpush1.bf16.msra.mxu0 0
        %1581 = vmatprep.subr.bf16.mxu0 0
        %1582 = vmatpush1.bf16.msra.mxu0 0
        %1583 = vmatprep.subr.bf16.mxu0 0
        %1584 = vmatpush1.bf16.msra.mxu0 0
        %1585 = vmatprep.subr.bf16.mxu0 0
        %1586 = vmatpush1.bf16.msra.mxu0 0
        %1587 = vmatprep.subr.bf16.mxu0 0
        %1588 = vmatpush1.bf16.msra.mxu0 0
        %1589 = vmatprep.subr.bf16.mxu0 0
        %1590 = vmatpush1.bf16.msra.mxu0 0
        %1591 = vmatprep.subr.bf16.mxu0 0
        %1592 = vmatpush1.bf16.msra.mxu0 0
        %1593 = vmatprep.subr.bf16.mxu0 0
        %1594 = vmatpush1.bf16.msra.mxu0 0
        %1595 = vmatprep.subr.bf16.mxu0 0
        %1596 = vmatpush1.bf16.msra.mxu0 0
        %1597 = vmatprep.subr.bf16.mxu0 0
        %1598 = vmatpush1.bf16.msra.mxu0 0
        %1599 = vmatprep.subr.bf16.mxu0 0
        %1600 = vmatpush1.bf16.msra.mxu0 0
        %1601 = vmatprep.mubr.bf16.mxu0 0
        %1602 = vmatmul.mubr.bf16.gmra.mrb[0].mxu0 %v1567
        %v1603 = vpop.f32.mrb[0].mxu0
        %v1604 = vadd.f32 %v1539, %v1603
        %v1605 = vpop.f32.mrb[0].mxu0
        %v1606 = vpop.f32.mrb[0].mxu0
        %v1607 = vpop.f32.mrb[0].mxu0
        %1608 = vdwg.mxu0
        %v1609 = vadd.f32 %v1604, %v1430
        %v1610 = vld [vmem:[%s29] sm:$0x1]
        %v1611 = vld [vmem:[%s31] sm:$0x1]
        %v1612 = vsel %vm1000, %v1609, 0.0
        %1613 = vadd.xlane.f32.xlu0 %v1612
        %v1614 = vpop.xlane.xlu0 %1613
        %v1615 = vmul.f32 %v1614, %v1004
        %v1616 = vsub.f32 %v1609, %v1615
        %v1617 = vmul.f32 %v1616, %v1616
        %v1618 = vsel %vm1000, %v1617, 0.0
        %1619 = vadd.xlane.f32.xlu0 %v1618
        %v1620 = vpop.xlane.xlu0 %1619
        %v1621 = vmul.f32 %v1620, %v1004
        %v1622 = vadd.f32 %v1621, 1e-12
        %v1623 = vrsqrt.pop %v1622
        %v1624 = vmul.f32 %v1616, %v1623
        %v1626 = vlaneseq
        %v1627 = vshrl.u32 %v1626, 7
        %v1628 = vsub.s32 0, %v1627
        %v1629 = vrot.slane %v1610, %v1628
        %v1631 = vmul.f32 %v1624, %v1629
        %v1633 = vlaneseq
        %v1634 = vshrl.u32 %v1633, 7
        %v1635 = vsub.s32 0, %v1634
        %v1636 = vrot.slane %v1611, %v1635
        %v1638 = vadd.f32 %v1631, %v1636
        %v1639 = vpack.c.bf16 %v1638, %v1638
        %v1640 = vld [vmem:[%s33] sm:$0xf]
        %v1641 = vld [vmem:[%s33 + $0x4] sm:$0xf]
        %v1642 = vld [vmem:[%s33 + $0x8] sm:$0xf]
        %v1643 = vld [vmem:[%s33 + $0xc] sm:$0xf]
        %v1644 = vld [vmem:[%s35] sm:$0x1]
        %v1646 = vlaneseq
        %v1647 = vshrl.u32 %v1646, 7
        %v1648 = vsub.s32 0, %v1647
        %v1649 = vrot.slane %v1644, %v1648
        %v1655 = vunpack.c.l.b16 %v1640
        %v1656 = vunpack.c.l.b16 %v1641
        %v1657 = vunpack.c.l.b16 %v1642
        %v1658 = vunpack.c.l.b16 %v1643
        %v1659 = vpack.c.b16 %v1656, %v1655
        %v1660 = vpack.c.b16 %v1658, %v1657
        %v1664 = vsel %vm1000, %v1639, 0
        %1666 = vmatprep.subr.bf16.mxu0 0
        %1667 = vmatpush1.bf16.msra.mxu0 %v1659
        %1668 = vmatprep.subr.bf16.mxu0 0
        %1669 = vmatpush1.bf16.msra.mxu0 %v1660
        %1670 = vmatprep.subr.bf16.mxu0 0
        %1671 = vmatpush1.bf16.msra.mxu0 0
        %1672 = vmatprep.subr.bf16.mxu0 0
        %1673 = vmatpush1.bf16.msra.mxu0 0
        %1674 = vmatprep.subr.bf16.mxu0 0
        %1675 = vmatpush1.bf16.msra.mxu0 0
        %1676 = vmatprep.subr.bf16.mxu0 0
        %1677 = vmatpush1.bf16.msra.mxu0 0
        %1678 = vmatprep.subr.bf16.mxu0 0
        %1679 = vmatpush1.bf16.msra.mxu0 0
        %1680 = vmatprep.subr.bf16.mxu0 0
        %1681 = vmatpush1.bf16.msra.mxu0 0
        %1682 = vmatprep.subr.bf16.mxu0 0
        %1683 = vmatpush1.bf16.msra.mxu0 0
        %1684 = vmatprep.subr.bf16.mxu0 0
        %1685 = vmatpush1.bf16.msra.mxu0 0
        %1686 = vmatprep.subr.bf16.mxu0 0
        %1687 = vmatpush1.bf16.msra.mxu0 0
        %1688 = vmatprep.subr.bf16.mxu0 0
        %1689 = vmatpush1.bf16.msra.mxu0 0
        %1690 = vmatprep.subr.bf16.mxu0 0
        %1691 = vmatpush1.bf16.msra.mxu0 0
        %1692 = vmatprep.subr.bf16.mxu0 0
        %1693 = vmatpush1.bf16.msra.mxu0 0
        %1694 = vmatprep.subr.bf16.mxu0 0
        %1695 = vmatpush1.bf16.msra.mxu0 0
        %1696 = vmatprep.subr.bf16.mxu0 0
        %1697 = vmatpush1.bf16.msra.mxu0 0
        %1698 = vmatprep.mubr.bf16.mxu0 0
        %1699 = vmatmul.mubr.bf16.gmra.mrb[0].mxu0 %v1664
        %v1700 = vpop.f32.mrb[0].mxu0
        %v1701 = vadd.f32 %v1649, %v1700
        %v1702 = vpop.f32.mrb[0].mxu0
        %v1703 = vpop.f32.mrb[0].mxu0
        %v1704 = vpop.f32.mrb[0].mxu0
        %1705 = vdwg.mxu0
        %v1706 = vpack.c.bf16 %v1701, %v1701
        %1708 = vrot.lane.b32.xlu0 %v1706, 96
        %v1709 = vpop.permute.xlu0 %1708
        %v1711 = vsel %vm1100, %v1706, 0
        %v1714 = vsel %vm1100, %v1709, 0
        %1716 = vmatprep.subr.bf16.mxu0 0
        %1717 = vmatpush1.bf16.xpose.msra.mxu0 %v1714
        %1718 = vmatprep.subr.bf16.mxu0 0
        %1719 = vmatpush1.bf16.xpose.msra.mxu0 0
        %1720 = vmatprep.subr.bf16.mxu0 0
        %1721 = vmatpush1.bf16.xpose.msra.mxu0 0
        %1722 = vmatprep.subr.bf16.mxu0 0
        %1723 = vmatpush1.bf16.xpose.msra.mxu0 0
        %1724 = vmatprep.subr.bf16.mxu0 0
        %1725 = vmatpush1.bf16.xpose.msra.mxu0 0
        %1726 = vmatprep.subr.bf16.mxu0 0
        %1727 = vmatpush1.bf16.xpose.msra.mxu0 0
        %1728 = vmatprep.subr.bf16.mxu0 0
        %1729 = vmatpush1.bf16.xpose.msra.mxu0 0
        %1730 = vmatprep.subr.bf16.mxu0 0
        %1731 = vmatpush1.bf16.xpose.msra.mxu0 0
        %1732 = vmatprep.subr.bf16.mxu0 0
        %1733 = vmatpush1.bf16.xpose.msra.mxu0 0
        %1734 = vmatprep.subr.bf16.mxu0 0
        %1735 = vmatpush1.bf16.xpose.msra.mxu0 0
        %1736 = vmatprep.subr.bf16.mxu0 0
        %1737 = vmatpush1.bf16.xpose.msra.mxu0 0
        %1738 = vmatprep.subr.bf16.mxu0 0
        %1739 = vmatpush1.bf16.xpose.msra.mxu0 0
        %1740 = vmatprep.subr.bf16.mxu0 0
        %1741 = vmatpush1.bf16.xpose.msra.mxu0 0
        %1742 = vmatprep.subr.bf16.mxu0 0
        %1743 = vmatpush1.bf16.xpose.msra.mxu0 0
        %1744 = vmatprep.subr.bf16.mxu0 0
        %1745 = vmatpush1.bf16.xpose.msra.mxu0 0
        %1746 = vmatprep.subr.bf16.mxu0 0
        %1747 = vmatpush1.bf16.xpose.msra.mxu0 0
        %1748 = vmatprep.mubr.bf16.mxu0 0
        %1749 = vmatmul.mubr.bf16.gmra.mrb[0].mxu0 %v1711
        %v1750 = vpop.f32.mrb[0].mxu0
        %v1751 = vadd.f32 0.0, %v1750
        %v1752 = vpop.f32.mrb[0].mxu0
        %v1753 = vpop.f32.mrb[0].mxu0
        %v1754 = vpop.f32.mrb[0].mxu0
        %1755 = vdwg.mxu0
        %v1756 = vmul.f32 %v1751, 0.25
        %v1757 = vadd.f32 %v1756, %v1152
        %v1758 = vsel %vm1155, %v1757, -inf
        %1759 = vmax.xlane.f32.xlu0 %v1758
        %v1760 = vpop.xlane.xlu0 %1759
        %v1761 = vsub.f32 %v1757, %v1760
        %v1762 = vmul.f32 %v1761, 1.442695
        %v1763 = vpow.pop %v1762
        %v1764 = vsel %vm1155, %v1763, 0.0
        %1765 = vadd.xlane.f32.xlu0 %v1764
        %v1766 = vpop.xlane.xlu0 %1765
        %v1767 = vrcp.pop %v1766
        %v1768 = vmul.f32 %v1763, %v1767
        %v1769 = vpack.c.bf16 %v1768, %v1768
        %1770 = vrot.lane.b32.xlu0 %v1706, 64
        %v1771 = vpop.permute.xlu0 %1770
        %v1773 = vsel %vm1155, %v1769, 0
        %v1776 = vsel %vm1173, %v1771, 0
        %1778 = vmatprep.subr.bf16.mxu0 0
        %1779 = vmatpush1.bf16.msra.mxu0 %v1776
        %1780 = vmatprep.subr.bf16.mxu0 0
        %1781 = vmatpush1.bf16.msra.mxu0 0
        %1782 = vmatprep.subr.bf16.mxu0 0
        %1783 = vmatpush1.bf16.msra.mxu0 0
        %1784 = vmatprep.subr.bf16.mxu0 0
        %1785 = vmatpush1.bf16.msra.mxu0 0
        %1786 = vmatprep.subr.bf16.mxu0 0
        %1787 = vmatpush1.bf16.msra.mxu0 0
        %1788 = vmatprep.subr.bf16.mxu0 0
        %1789 = vmatpush1.bf16.msra.mxu0 0
        %1790 = vmatprep.subr.bf16.mxu0 0
        %1791 = vmatpush1.bf16.msra.mxu0 0
        %1792 = vmatprep.subr.bf16.mxu0 0
        %1793 = vmatpush1.bf16.msra.mxu0 0
        %1794 = vmatprep.subr.bf16.mxu0 0
        %1795 = vmatpush1.bf16.msra.mxu0 0
        %1796 = vmatprep.subr.bf16.mxu0 0
        %1797 = vmatpush1.bf16.msra.mxu0 0
        %1798 = vmatprep.subr.bf16.mxu0 0
        %1799 = vmatpush1.bf16.msra.mxu0 0
        %1800 = vmatprep.subr.bf16.mxu0 0
        %1801 = vmatpush1.bf16.msra.mxu0 0
        %1802 = vmatprep.subr.bf16.mxu0 0
        %1803 = vmatpush1.bf16.msra.mxu0 0
        %1804 = vmatprep.subr.bf16.mxu0 0
        %1805 = vmatpush1.bf16.msra.mxu0 0
        %1806 = vmatprep.subr.bf16.mxu0 0
        %1807 = vmatpush1.bf16.msra.mxu0 0
        %1808 = vmatprep.subr.bf16.mxu0 0
        %1809 = vmatpush1.bf16.msra.mxu0 0
        %1810 = vmatprep.mubr.bf16.mxu0 0
        %1811 = vmatmul.mubr.bf16.gmra.mrb[0].mxu0 %v1773
        %v1812 = vpop.f32.mrb[0].mxu0
        %v1813 = vadd.f32 0.0, %v1812
        %v1814 = vpop.f32.mrb[0].mxu0
        %v1815 = vpop.f32.mrb[0].mxu0
        %v1816 = vpop.f32.mrb[0].mxu0
        %1817 = vdwg.mxu0
        %1818 = vrot.lane.b32.xlu0 %v1706, 112
        %v1819 = vpop.permute.xlu0 %1818
        %1820 = vrot.lane.b32.xlu0 %v1706, 80
        %v1821 = vpop.permute.xlu0 %1820
        %v1823 = vsel %vm1100, %v1819, 0
        %v1826 = vsel %vm1100, %v1821, 0
        %1828 = vmatprep.subr.bf16.mxu0 0
        %1829 = vmatpush1.bf16.xpose.msra.mxu0 %v1826
        %1830 = vmatprep.subr.bf16.mxu0 0
        %1831 = vmatpush1.bf16.xpose.msra.mxu0 0
        %1832 = vmatprep.subr.bf16.mxu0 0
        %1833 = vmatpush1.bf16.xpose.msra.mxu0 0
        %1834 = vmatprep.subr.bf16.mxu0 0
        %1835 = vmatpush1.bf16.xpose.msra.mxu0 0
        %1836 = vmatprep.subr.bf16.mxu0 0
        %1837 = vmatpush1.bf16.xpose.msra.mxu0 0
        %1838 = vmatprep.subr.bf16.mxu0 0
        %1839 = vmatpush1.bf16.xpose.msra.mxu0 0
        %1840 = vmatprep.subr.bf16.mxu0 0
        %1841 = vmatpush1.bf16.xpose.msra.mxu0 0
        %1842 = vmatprep.subr.bf16.mxu0 0
        %1843 = vmatpush1.bf16.xpose.msra.mxu0 0
        %1844 = vmatprep.subr.bf16.mxu0 0
        %1845 = vmatpush1.bf16.xpose.msra.mxu0 0
        %1846 = vmatprep.subr.bf16.mxu0 0
        %1847 = vmatpush1.bf16.xpose.msra.mxu0 0
        %1848 = vmatprep.subr.bf16.mxu0 0
        %1849 = vmatpush1.bf16.xpose.msra.mxu0 0
        %1850 = vmatprep.subr.bf16.mxu0 0
        %1851 = vmatpush1.bf16.xpose.msra.mxu0 0
        %1852 = vmatprep.subr.bf16.mxu0 0
        %1853 = vmatpush1.bf16.xpose.msra.mxu0 0
        %1854 = vmatprep.subr.bf16.mxu0 0
        %1855 = vmatpush1.bf16.xpose.msra.mxu0 0
        %1856 = vmatprep.subr.bf16.mxu0 0
        %1857 = vmatpush1.bf16.xpose.msra.mxu0 0
        %1858 = vmatprep.subr.bf16.mxu0 0
        %1859 = vmatpush1.bf16.xpose.msra.mxu0 0
        %1860 = vmatprep.mubr.bf16.mxu0 0
        %1861 = vmatmul.mubr.bf16.gmra.mrb[0].mxu0 %v1823
        %v1862 = vpop.f32.mrb[0].mxu0
        %v1863 = vadd.f32 0.0, %v1862
        %v1864 = vpop.f32.mrb[0].mxu0
        %v1865 = vpop.f32.mrb[0].mxu0
        %v1866 = vpop.f32.mrb[0].mxu0
        %1867 = vdwg.mxu0
        %v1868 = vmul.f32 %v1863, 0.25
        %v1869 = vadd.f32 %v1868, %v1152
        %v1870 = vsel %vm1155, %v1869, -inf
        %1871 = vmax.xlane.f32.xlu0 %v1870
        %v1872 = vpop.xlane.xlu0 %1871
        %v1873 = vsub.f32 %v1869, %v1872
        %v1874 = vmul.f32 %v1873, 1.442695
        %v1875 = vpow.pop %v1874
        %v1876 = vsel %vm1155, %v1875, 0.0
        %1877 = vadd.xlane.f32.xlu0 %v1876
        %v1878 = vpop.xlane.xlu0 %1877
        %v1879 = vrcp.pop %v1878
        %v1880 = vmul.f32 %v1875, %v1879
        %v1881 = vpack.c.bf16 %v1880, %v1880
        %1882 = vrot.lane.b32.xlu0 %v1706, 48
        %v1883 = vpop.permute.xlu0 %1882
        %v1885 = vsel %vm1155, %v1881, 0
        %v1888 = vsel %vm1173, %v1883, 0
        %1890 = vmatprep.subr.bf16.mxu0 0
        %1891 = vmatpush1.bf16.msra.mxu0 %v1888
        %1892 = vmatprep.subr.bf16.mxu0 0
        %1893 = vmatpush1.bf16.msra.mxu0 0
        %1894 = vmatprep.subr.bf16.mxu0 0
        %1895 = vmatpush1.bf16.msra.mxu0 0
        %1896 = vmatprep.subr.bf16.mxu0 0
        %1897 = vmatpush1.bf16.msra.mxu0 0
        %1898 = vmatprep.subr.bf16.mxu0 0
        %1899 = vmatpush1.bf16.msra.mxu0 0
        %1900 = vmatprep.subr.bf16.mxu0 0
        %1901 = vmatpush1.bf16.msra.mxu0 0
        %1902 = vmatprep.subr.bf16.mxu0 0
        %1903 = vmatpush1.bf16.msra.mxu0 0
        %1904 = vmatprep.subr.bf16.mxu0 0
        %1905 = vmatpush1.bf16.msra.mxu0 0
        %1906 = vmatprep.subr.bf16.mxu0 0
        %1907 = vmatpush1.bf16.msra.mxu0 0
        %1908 = vmatprep.subr.bf16.mxu0 0
        %1909 = vmatpush1.bf16.msra.mxu0 0
        %1910 = vmatprep.subr.bf16.mxu0 0
        %1911 = vmatpush1.bf16.msra.mxu0 0
        %1912 = vmatprep.subr.bf16.mxu0 0
        %1913 = vmatpush1.bf16.msra.mxu0 0
        %1914 = vmatprep.subr.bf16.mxu0 0
        %1915 = vmatpush1.bf16.msra.mxu0 0
        %1916 = vmatprep.subr.bf16.mxu0 0
        %1917 = vmatpush1.bf16.msra.mxu0 0
        %1918 = vmatprep.subr.bf16.mxu0 0
        %1919 = vmatpush1.bf16.msra.mxu0 0
        %1920 = vmatprep.subr.bf16.mxu0 0
        %1921 = vmatpush1.bf16.msra.mxu0 0
        %1922 = vmatprep.mubr.bf16.mxu0 0
        %1923 = vmatmul.mubr.bf16.gmra.mrb[0].mxu0 %v1885
        %v1924 = vpop.f32.mrb[0].mxu0
        %v1925 = vadd.f32 0.0, %v1924
        %v1926 = vpop.f32.mrb[0].mxu0
        %v1927 = vpop.f32.mrb[0].mxu0
        %v1928 = vpop.f32.mrb[0].mxu0
        %1929 = vdwg.mxu0
        %1931 = vrot.lane.b32.xlu0 %v1925, 16
        %v1932 = vpop.permute.xlu0 %1931
        %v1934 = vsel %vm1100, %v1813, %v1932
        %v1935 = vpack.c.bf16 %v1934, %v1934
        %v1936 = vld [vmem:[%s37] sm:$0xf]
        %v1937 = vld [vmem:[%s37 + $0x4] sm:$0xf]
        %v1938 = vld [vmem:[%s37 + $0x8] sm:$0xf]
        %v1939 = vld [vmem:[%s37 + $0xc] sm:$0xf]
        %v1940 = vld [vmem:[%s39] sm:$0x1]
        %v1942 = vlaneseq
        %v1943 = vshrl.u32 %v1942, 7
        %v1944 = vsub.s32 0, %v1943
        %v1945 = vrot.slane %v1940, %v1944
        %v1951 = vunpack.c.l.b16 %v1936
        %v1952 = vunpack.c.l.b16 %v1937
        %v1953 = vunpack.c.l.b16 %v1938
        %v1954 = vunpack.c.l.b16 %v1939
        %v1955 = vpack.c.b16 %v1952, %v1951
        %v1956 = vpack.c.b16 %v1954, %v1953
        %v1960 = vsel %vm1000, %v1935, 0
        %1962 = vmatprep.subr.bf16.mxu0 0
        %1963 = vmatpush1.bf16.msra.mxu0 %v1955
        %1964 = vmatprep.subr.bf16.mxu0 0
        %1965 = vmatpush1.bf16.msra.mxu0 %v1956
        %1966 = vmatprep.subr.bf16.mxu0 0
        %1967 = vmatpush1.bf16.msra.mxu0 0
        %1968 = vmatprep.subr.bf16.mxu0 0
        %1969 = vmatpush1.bf16.msra.mxu0 0
        %1970 = vmatprep.subr.bf16.mxu0 0
        %1971 = vmatpush1.bf16.msra.mxu0 0
        %1972 = vmatprep.subr.bf16.mxu0 0
        %1973 = vmatpush1.bf16.msra.mxu0 0
        %1974 = vmatprep.subr.bf16.mxu0 0
        %1975 = vmatpush1.bf16.msra.mxu0 0
        %1976 = vmatprep.subr.bf16.mxu0 0
        %1977 = vmatpush1.bf16.msra.mxu0 0
        %1978 = vmatprep.subr.bf16.mxu0 0
        %1979 = vmatpush1.bf16.msra.mxu0 0
        %1980 = vmatprep.subr.bf16.mxu0 0
        %1981 = vmatpush1.bf16.msra.mxu0 0
        %1982 = vmatprep.subr.bf16.mxu0 0
        %1983 = vmatpush1.bf16.msra.mxu0 0
        %1984 = vmatprep.subr.bf16.mxu0 0
        %1985 = vmatpush1.bf16.msra.mxu0 0
        %1986 = vmatprep.subr.bf16.mxu0 0
        %1987 = vmatpush1.bf16.msra.mxu0 0
        %1988 = vmatprep.subr.bf16.mxu0 0
        %1989 = vmatpush1.bf16.msra.mxu0 0
        %1990 = vmatprep.subr.bf16.mxu0 0
        %1991 = vmatpush1.bf16.msra.mxu0 0
        %1992 = vmatprep.subr.bf16.mxu0 0
        %1993 = vmatpush1.bf16.msra.mxu0 0
        %1994 = vmatprep.mubr.bf16.mxu0 0
        %1995 = vmatmul.mubr.bf16.gmra.mrb[0].mxu0 %v1960
        %v1996 = vpop.f32.mrb[0].mxu0
        %v1997 = vadd.f32 %v1945, %v1996
        %v1998 = vpop.f32.mrb[0].mxu0
        %v1999 = vpop.f32.mrb[0].mxu0
        %v2000 = vpop.f32.mrb[0].mxu0
        %2001 = vdwg.mxu0
        %v2002 = vadd.f32 %v1997, %v1638
        %v2003 = vld [vmem:[%s41] sm:$0x1]
        %v2004 = vld [vmem:[%s43] sm:$0x1]
        %v2005 = vsel %vm1000, %v2002, 0.0
        %2006 = vadd.xlane.f32.xlu0 %v2005
        %v2007 = vpop.xlane.xlu0 %2006
        %v2008 = vmul.f32 %v2007, %v1004
        %v2009 = vsub.f32 %v2002, %v2008
        %v2010 = vmul.f32 %v2009, %v2009
        %v2011 = vsel %vm1000, %v2010, 0.0
        %2012 = vadd.xlane.f32.xlu0 %v2011
        %v2013 = vpop.xlane.xlu0 %2012
        %v2014 = vmul.f32 %v2013, %v1004
        %v2015 = vadd.f32 %v2014, 1e-12
        %v2016 = vrsqrt.pop %v2015
        %v2017 = vmul.f32 %v2009, %v2016
        %v2019 = vlaneseq
        %v2020 = vshrl.u32 %v2019, 7
        %v2021 = vsub.s32 0, %v2020
        %v2022 = vrot.slane %v2003, %v2021
        %v2024 = vmul.f32 %v2017, %v2022
        %v2026 = vlaneseq
        %v2027 = vshrl.u32 %v2026, 7
        %v2028 = vsub.s32 0, %v2027
        %v2029 = vrot.slane %v2004, %v2028
        %v2031 = vadd.f32 %v2024, %v2029
        %v2032 = vpack.c.bf16 %v2031, %v2031
        %v2033 = vld [vmem:[%s45] sm:$0xf]
        %v2034 = vld [vmem:[%s45 + $0x4] sm:$0xf]
        %v2035 = vld [vmem:[%s45 + $0x8] sm:$0xf]
        %v2036 = vld [vmem:[%s45 + $0xc] sm:$0xf]
        %v2037 = vld [vmem:[%s47] sm:$0x1]
        %v2039 = vlaneseq
        %v2040 = vshrl.u32 %v2039, 7
        %v2041 = vsub.s32 0, %v2040
        %v2042 = vrot.slane %v2037, %v2041
        %v2048 = vunpack.c.l.b16 %v2033
        %v2049 = vunpack.c.l.b16 %v2034
        %v2050 = vunpack.c.l.b16 %v2035
        %v2051 = vunpack.c.l.b16 %v2036
        %v2052 = vpack.c.b16 %v2049, %v2048
        %v2053 = vpack.c.b16 %v2051, %v2050
        %v2057 = vsel %vm1000, %v2032, 0
        %2059 = vmatprep.subr.bf16.mxu0 0
        %2060 = vmatpush1.bf16.msra.mxu0 %v2052
        %2061 = vmatprep.subr.bf16.mxu0 0
        %2062 = vmatpush1.bf16.msra.mxu0 %v2053
        %2063 = vmatprep.subr.bf16.mxu0 0
        %2064 = vmatpush1.bf16.msra.mxu0 0
        %2065 = vmatprep.subr.bf16.mxu0 0
        %2066 = vmatpush1.bf16.msra.mxu0 0
        %2067 = vmatprep.subr.bf16.mxu0 0
        %2068 = vmatpush1.bf16.msra.mxu0 0
        %2069 = vmatprep.subr.bf16.mxu0 0
        %2070 = vmatpush1.bf16.msra.mxu0 0
        %2071 = vmatprep.subr.bf16.mxu0 0
        %2072 = vmatpush1.bf16.msra.mxu0 0
        %2073 = vmatprep.subr.bf16.mxu0 0
        %2074 = vmatpush1.bf16.msra.mxu0 0
        %2075 = vmatprep.subr.bf16.mxu0 0
        %2076 = vmatpush1.bf16.msra.mxu0 0
        %2077 = vmatprep.subr.bf16.mxu0 0
        %2078 = vmatpush1.bf16.msra.mxu0 0
        %2079 = vmatprep.subr.bf16.mxu0 0
        %2080 = vmatpush1.bf16.msra.mxu0 0
        %2081 = vmatprep.subr.bf16.mxu0 0
        %2082 = vmatpush1.bf16.msra.mxu0 0
        %2083 = vmatprep.subr.bf16.mxu0 0
        %2084 = vmatpush1.bf16.msra.mxu0 0
        %2085 = vmatprep.subr.bf16.mxu0 0
        %2086 = vmatpush1.bf16.msra.mxu0 0
        %2087 = vmatprep.subr.bf16.mxu0 0
        %2088 = vmatpush1.bf16.msra.mxu0 0
        %2089 = vmatprep.subr.bf16.mxu0 0
        %2090 = vmatpush1.bf16.msra.mxu0 0
        %2091 = vmatprep.mubr.bf16.mxu0 0
        %2092 = vmatmul.mubr.bf16.gmra.mrb[0].mxu0 %v2057
        %v2093 = vpop.f32.mrb[0].mxu0
        %v2094 = vadd.f32 %v2042, %v2093
        %v2095 = vpop.f32.mrb[0].mxu0
        %v2096 = vpop.f32.mrb[0].mxu0
        %v2097 = vpop.f32.mrb[0].mxu0
        %2098 = vdwg.mxu0
        %v2099 = vmul.f32 %v2094, 0.5
        %v2100 = vmul.f32 %v2094, 0.70710677
        %v2101 = vand.u32 2147483647, %v2100
        %v2102 = vmul.f32 %v2101, 0.3275911
        %v2103 = vadd.f32 %v2102, 1.0
        %v2104 = vrcp.pop %v2103
        %v2105 = vmul.f32 1.0, %v2104
        %v2106 = vmul.f32 %v2105, 1.0614054
        %v2107 = vadd.f32 %v2106, -1.4531521
        %v2108 = vmul.f32 %v2107, %v2105
        %v2109 = vadd.f32 %v2108, 1.4214138
        %v2110 = vmul.f32 %v2109, %v2105
        %v2111 = vadd.f32 %v2110, -0.28449672
        %v2112 = vmul.f32 %v2111, %v2105
        %v2113 = vadd.f32 %v2112, 0.2548296
        %v2114 = vmul.f32 %v2113, %v2105
        %v2115 = vsub.f32 0.0, %v2101
        %v2116 = vmul.f32 %v2115, %v2101
        %v2117 = vmul.f32 %v2116, 1.442695
        %v2118 = vpow.pop %v2117
        %v2119 = vmul.f32 %v2114, %v2118
        %v2120 = vsub.f32 1.0, %v2119
        %vm2121 = vcmp.ge.f32.partialorder %v2100, 0.0
        %v2122 = vsub.f32 0.0, %v2120
        %v2123 = vsel %vm2121, %v2120, %v2122
        %v2124 = vadd.f32 %v2123, 1.0
        %v2125 = vmul.f32 %v2099, %v2124
        %v2126 = vpack.c.bf16 %v2125, %v2125
        %v2127 = vld [vmem:[%s49] sm:$0xf]
        %v2128 = vld [vmem:[%s49 + $0x4] sm:$0xf]
        %v2129 = vld [vmem:[%s49 + $0x8] sm:$0xf]
        %v2130 = vld [vmem:[%s49 + $0xc] sm:$0xf]
        %v2131 = vld [vmem:[%s49 + $0x10] sm:$0xf]
        %v2132 = vld [vmem:[%s49 + $0x14] sm:$0xf]
        %v2133 = vld [vmem:[%s49 + $0x18] sm:$0xf]
        %v2134 = vld [vmem:[%s49 + $0x1c] sm:$0xf]
        %v2135 = vld [vmem:[%s51] sm:$0x1]
        %v2137 = vlaneseq
        %v2138 = vshrl.u32 %v2137, 7
        %v2139 = vsub.s32 0, %v2138
        %v2140 = vrot.slane %v2135, %v2139
        %v2150 = vunpack.c.l.b16 %v2127
        %v2151 = vunpack.c.l.b16 %v2128
        %v2152 = vunpack.c.l.b16 %v2129
        %v2153 = vunpack.c.l.b16 %v2130
        %v2154 = vunpack.c.l.b16 %v2131
        %v2155 = vunpack.c.l.b16 %v2132
        %v2156 = vunpack.c.l.b16 %v2133
        %v2157 = vunpack.c.l.b16 %v2134
        %v2158 = vpack.c.b16 %v2151, %v2150
        %v2159 = vpack.c.b16 %v2153, %v2152
        %v2160 = vpack.c.b16 %v2155, %v2154
        %v2161 = vpack.c.b16 %v2157, %v2156
        %v2167 = vsel %vm1565, %v2126, 0
        %2169 = vmatprep.subr.bf16.mxu0 0
        %2170 = vmatpush1.bf16.msra.mxu0 %v2158
        %2171 = vmatprep.subr.bf16.mxu0 0
        %2172 = vmatpush1.bf16.msra.mxu0 %v2159
        %2173 = vmatprep.subr.bf16.mxu0 0
        %2174 = vmatpush1.bf16.msra.mxu0 %v2160
        %2175 = vmatprep.subr.bf16.mxu0 0
        %2176 = vmatpush1.bf16.msra.mxu0 %v2161
        %2177 = vmatprep.subr.bf16.mxu0 0
        %2178 = vmatpush1.bf16.msra.mxu0 0
        %2179 = vmatprep.subr.bf16.mxu0 0
        %2180 = vmatpush1.bf16.msra.mxu0 0
        %2181 = vmatprep.subr.bf16.mxu0 0
        %2182 = vmatpush1.bf16.msra.mxu0 0
        %2183 = vmatprep.subr.bf16.mxu0 0
        %2184 = vmatpush1.bf16.msra.mxu0 0
        %2185 = vmatprep.subr.bf16.mxu0 0
        %2186 = vmatpush1.bf16.msra.mxu0 0
        %2187 = vmatprep.subr.bf16.mxu0 0
        %2188 = vmatpush1.bf16.msra.mxu0 0
        %2189 = vmatprep.subr.bf16.mxu0 0
        %2190 = vmatpush1.bf16.msra.mxu0 0
        %2191 = vmatprep.subr.bf16.mxu0 0
        %2192 = vmatpush1.bf16.msra.mxu0 0
        %2193 = vmatprep.subr.bf16.mxu0 0
        %2194 = vmatpush1.bf16.msra.mxu0 0
        %2195 = vmatprep.subr.bf16.mxu0 0
        %2196 = vmatpush1.bf16.msra.mxu0 0
        %2197 = vmatprep.subr.bf16.mxu0 0
        %2198 = vmatpush1.bf16.msra.mxu0 0
        %2199 = vmatprep.subr.bf16.mxu0 0
        %2200 = vmatpush1.bf16.msra.mxu0 0
        %2201 = vmatprep.mubr.bf16.mxu0 0
        %2202 = vmatmul.mubr.bf16.gmra.mrb[0].mxu0 %v2167
        %v2203 = vpop.f32.mrb[0].mxu0
        %v2204 = vadd.f32 %v2140, %v2203
        %v2205 = vpop.f32.mrb[0].mxu0
        %v2206 = vpop.f32.mrb[0].mxu0
        %v2207 = vpop.f32.mrb[0].mxu0
        %2208 = vdwg.mxu0
        %v2209 = vadd.f32 %v2204, %v2031
        %v2210 = vld [vmem:[%s53] sm:$0x1]
        %v2211 = vld [vmem:[%s55] sm:$0x1]
        %v2212 = vsel %vm1000, %v2209, 0.0
        %2213 = vadd.xlane.f32.xlu0 %v2212
        %v2214 = vpop.xlane.xlu0 %2213
        %v2215 = vmul.f32 %v2214, %v1004
        %v2216 = vsub.f32 %v2209, %v2215
        %v2217 = vmul.f32 %v2216, %v2216
        %v2218 = vsel %vm1000, %v2217, 0.0
        %2219 = vadd.xlane.f32.xlu0 %v2218
        %v2220 = vpop.xlane.xlu0 %2219
        %v2221 = vmul.f32 %v2220, %v1004
        %v2222 = vadd.f32 %v2221, 1e-12
        %v2223 = vrsqrt.pop %v2222
        %v2224 = vmul.f32 %v2216, %v2223
        %v2226 = vlaneseq
        %v2227 = vshrl.u32 %v2226, 7
        %v2228 = vsub.s32 0, %v2227
        %v2229 = vrot.slane %v2210, %v2228
        %v2231 = vmul.f32 %v2224, %v2229
        %v2233 = vlaneseq
        %v2234 = vshrl.u32 %v2233, 7
        %v2235 = vsub.s32 0, %v2234
        %v2236 = vrot.slane %v2211, %v2235
        %v2238 = vadd.f32 %v2231, %v2236
        %v2239 = vpack.c.bf16 %v2238, %v2238
        %v2240 = vld [vmem:[%s57] sm:$0xf]
        %v2241 = vld [vmem:[%s57 + $0x4] sm:$0xf]
        %v2242 = vld [vmem:[%s57 + $0x8] sm:$0xf]
        %v2243 = vld [vmem:[%s57 + $0xc] sm:$0xf]
        %v2244 = vld [vmem:[%s59] sm:$0x1]
        %v2249 = vunpack.c.l.b16 %v2240
        %v2250 = vunpack.c.l.b16 %v2241
        %v2251 = vunpack.c.l.b16 %v2242
        %v2252 = vunpack.c.l.b16 %v2243
        %v2253 = vpack.c.b16 %v2250, %v2249
        %v2254 = vpack.c.b16 %v2252, %v2251
        %v2258 = vsel %vm1000, %v2239, 0
        %2260 = vmatprep.subr.bf16.mxu0 0
        %2261 = vmatpush1.bf16.msra.mxu0 %v2253
        %2262 = vmatprep.subr.bf16.mxu0 0
        %2263 = vmatpush1.bf16.msra.mxu0 %v2254
        %2264 = vmatprep.subr.bf16.mxu0 0
        %2265 = vmatpush1.bf16.msra.mxu0 0
        %2266 = vmatprep.subr.bf16.mxu0 0
        %2267 = vmatpush1.bf16.msra.mxu0 0
        %2268 = vmatprep.subr.bf16.mxu0 0
        %2269 = vmatpush1.bf16.msra.mxu0 0
        %2270 = vmatprep.subr.bf16.mxu0 0
        %2271 = vmatpush1.bf16.msra.mxu0 0
        %2272 = vmatprep.subr.bf16.mxu0 0
        %2273 = vmatpush1.bf16.msra.mxu0 0
        %2274 = vmatprep.subr.bf16.mxu0 0
        %2275 = vmatpush1.bf16.msra.mxu0 0
        %2276 = vmatprep.subr.bf16.mxu0 0
        %2277 = vmatpush1.bf16.msra.mxu0 0
        %2278 = vmatprep.subr.bf16.mxu0 0
        %2279 = vmatpush1.bf16.msra.mxu0 0
        %2280 = vmatprep.subr.bf16.mxu0 0
        %2281 = vmatpush1.bf16.msra.mxu0 0
        %2282 = vmatprep.subr.bf16.mxu0 0
        %2283 = vmatpush1.bf16.msra.mxu0 0
        %2284 = vmatprep.subr.bf16.mxu0 0
        %2285 = vmatpush1.bf16.msra.mxu0 0
        %2286 = vmatprep.subr.bf16.mxu0 0
        %2287 = vmatpush1.bf16.msra.mxu0 0
        %2288 = vmatprep.subr.bf16.mxu0 0
        %2289 = vmatpush1.bf16.msra.mxu0 0
        %2290 = vmatprep.subr.bf16.mxu0 0
        %2291 = vmatpush1.bf16.msra.mxu0 0
        %2292 = vmatprep.mubr.bf16.mxu0 0
        %2293 = vmatmul.mubr.bf16.gmra.mrb[0].mxu0 %v2258
        %v2294 = vpop.f32.mrb[0].mxu0
        %v2295 = vadd.f32 %v2244, %v2294
        %v2296 = vpop.f32.mrb[0].mxu0
        %v2297 = vpop.f32.mrb[0].mxu0
        %v2298 = vpop.f32.mrb[0].mxu0
        %2299 = vdwg.mxu0
        %v2300 = vtanh.pop %v2295
        %v2301 = vpack.c.bf16 %v2300, %v2300
        %v2302 = vld [vmem:[%s61] sm:$0xf]
        %v2303 = vld [vmem:[%s61 + $0x4] sm:$0xf]
        %v2304 = vld [vmem:[%s61 + $0x8] sm:$0xf]
        %v2305 = vld [vmem:[%s61 + $0xc] sm:$0xf]
        %v2306 = vld [vmem:[%s63] sm:$0x1]
        %v2311 = vunpack.c.l.b16 %v2302
        %v2312 = vunpack.c.l.b16 %v2303
        %v2313 = vunpack.c.l.b16 %v2304
        %v2314 = vunpack.c.l.b16 %v2305
        %v2315 = vpack.c.b16 %v2312, %v2311
        %v2316 = vpack.c.b16 %v2314, %v2313
        %v2320 = vsel %vm1000, %v2301, 0
        %2322 = vmatprep.subr.bf16.mxu0 0
        %2323 = vmatpush1.bf16.msra.mxu0 %v2315
        %2324 = vmatprep.subr.bf16.mxu0 0
        %2325 = vmatpush1.bf16.msra.mxu0 %v2316
        %2326 = vmatprep.subr.bf16.mxu0 0
        %2327 = vmatpush1.bf16.msra.mxu0 0
        %2328 = vmatprep.subr.bf16.mxu0 0
        %2329 = vmatpush1.bf16.msra.mxu0 0
        %2330 = vmatprep.subr.bf16.mxu0 0
        %2331 = vmatpush1.bf16.msra.mxu0 0
        %2332 = vmatprep.subr.bf16.mxu0 0
        %2333 = vmatpush1.bf16.msra.mxu0 0
        %2334 = vmatprep.subr.bf16.mxu0 0
        %2335 = vmatpush1.bf16.msra.mxu0 0
        %2336 = vmatprep.subr.bf16.mxu0 0
        %2337 = vmatpush1.bf16.msra.mxu0 0
        %2338 = vmatprep.subr.bf16.mxu0 0
        %2339 = vmatpush1.bf16.msra.mxu0 0
        %2340 = vmatprep.subr.bf16.mxu0 0
        %2341 = vmatpush1.bf16.msra.mxu0 0
        %2342 = vmatprep.subr.bf16.mxu0 0
        %2343 = vmatpush1.bf16.msra.mxu0 0
        %2344 = vmatprep.subr.bf16.mxu0 0
        %2345 = vmatpush1.bf16.msra.mxu0 0
        %2346 = vmatprep.subr.bf16.mxu0 0
        %2347 = vmatpush1.bf16.msra.mxu0 0
        %2348 = vmatprep.subr.bf16.mxu0 0
        %2349 = vmatpush1.bf16.msra.mxu0 0
        %2350 = vmatprep.subr.bf16.mxu0 0
        %2351 = vmatpush1.bf16.msra.mxu0 0
        %2352 = vmatprep.subr.bf16.mxu0 0
        %2353 = vmatpush1.bf16.msra.mxu0 0
        %2354 = vmatprep.mubr.bf16.mxu0 0
        %2355 = vmatmul.mubr.bf16.gmra.mrb[0].mxu0 %v2320
        %v2356 = vpop.f32.mrb[0].mxu0
        %v2357 = vadd.f32 %v2306, %v2356
        %v2358 = vpop.f32.mrb[0].mxu0
        %v2359 = vpop.f32.mrb[0].mxu0
        %v2360 = vpop.f32.mrb[0].mxu0
        %2361 = vdwg.mxu0
        %vm2362 = vcmask 16384
        %2363 = vst.msk [vmem:[%s987] sm:$0x1] %vm2362, %v2357
        %s2364 = sand.u32 %s769, 1
        %s2365 = scalar_lea.sflag [#allocation3], %s2364
        %s2366 = sand.u32 %s769, 1
        %s2367 = scalar_lea.vmem [#allocation2], %s2366
        // Predicated region
        $region149: #{bert_for_sequence_classification.1} parent=147 // pred_check
          %p2368 = pneg %p779
        $region150: #{bert_for_sequence_classification.1} parent=147 // pred_check_branch
          %2370 = sbr.rel (%p2368) target = $region152
        $region151: #{bert_for_sequence_classification.1} parent=147 // pred_region
          %s2372 = ssub.s32 16, 16
          %2373 = vsyncadd %s2365, %s2372
          %s2374 = smul.addr %s79, 16
          %s2375 = scalar_lea.hbm %s65, %s2374
          %s2377 = sshll.u32 %s2367, 4
          %s2378 = int_to_ptr.vmem [resolvable:$true] %s2377
          %2380 = dma.vmem_to_hbm [thread:$0]  %s2378, 16, %s2375, %s2365
        $region152: #{bert_for_sequence_classification.1} parent=147 // pred_fallthru
          _
      $region148: #{bert_for_sequence_classification.1} parent=5 // pred_fallthru
        _
      %p2381 = scmp.le.s32.totalorder 2, %s74
      // Predicated region
      $region153: #{bert_for_sequence_classification.1} parent=5 // pred_check
        %p2382 = pneg %p2381
      $region154: #{bert_for_sequence_classification.1} parent=5 // pred_check_branch
        %2384 = sbr.rel (%p2382) target = $region156
      $region155: #{bert_for_sequence_classification.1} parent=5 // pred_region
        %s2385 = ssub.s32 %s74, 2
        // Predicated region
        $region157: #{bert_for_sequence_classification.1} parent=155 // pred_check
          %p2386 = pneg %p785
        $region158: #{bert_for_sequence_classification.1} parent=155 // pred_check_branch
          %2388 = sbr.rel (%p2386) target = $region160
        $region159: #{bert_for_sequence_classification.1} parent=155 // pred_region
          %s2389 = sand.u32 %s770, 1
          %s2390 = scalar_lea.sflag [#allocation3], %s2389
          %s2391 = sand.u32 %s770, 1
          %s2392 = scalar_lea.vmem [#allocation2], %s2391
          %2393 = dma.done %s2390, 16
        $region160: #{bert_for_sequence_classification.1} parent=155 // pred_fallthru
          _
      $region156: #{bert_for_sequence_classification.1} parent=5 // pred_fallthru
        _
    $region6: #{bert_for_sequence_classification.1} parent=1 // loop_footer
      %s78 = sadd.s32 1, %s74
    $region7: #{bert_for_sequence_classification.1} parent=1 // loop_footer_branch
      %73 = sbr.rel target = $region3
    $region8: #{bert_for_sequence_classification.1} parent=1 // loop_exit
      _
    %2394 = vsyncpa [#allocation3], 1
    %s2395 = scalar_lea.sflag [#allocation3], 1
    %2396 = vsyncpa %s2395, 1

</llo_original>
